<compile_context>
chip_gen: v5e
topology: v5e:2x2
jax: 0.10.0
libtpu: 0.0.40
codegen_flags: <defaults>
</compile_context>

<pallas_src>
import functools

import jax
import jax.numpy as jnp
from jax.experimental import pallas as pl
from jax.experimental.pallas import tpu as pltpu


# ----------------------------------------------------------------------------
# Kernel
# ----------------------------------------------------------------------------
def _make_fused_kernel(n_hidden):
    # packed parameter refs, in order:
    #   U2 (H, 2*O*M), R (M, 2*O*M), S (2*O*M, 2*O),
    #   WlT (H, 2O), WrT (M, 2O), b_bil (1, 2O),
    #   W0_bil (2O, 2HID), W0_h (H, 2HID), W0_m (M, 2HID), b0 (1, 2HID),
    #   [Wi (2HID, 2HID), bi (1, 2HID)] * n_hidden,
    #   Wout (2HID, 2O), bout (1, 2O)
    n_params = 10 + 2 * n_hidden + 2

    def kernel(*refs):
        h_ref, m_ref = refs[0], refs[1]
        prefs = refs[2:2 + n_params]
        out_ref = refs[2 + n_params]

        (u2_ref, rep_ref, sel_ref, wl_ref, wr_ref, bb_ref,
         w0b_ref, w0h_ref, w0m_ref, b0_ref) = prefs[:10]
        hid_refs = prefs[10:10 + 2 * n_hidden]
        wout_ref, bout_ref = prefs[10 + 2 * n_hidden:]

        # Keep inputs in their native dtype; MXU accumulates in f32.
        h = h_ref[...]
        m = m_ref[...]

        # --- bilinear term, both heads at once, all lane-dense matmuls ---
        t = jnp.dot(h, u2_ref[...], preferred_element_type=jnp.float32)      # (T, 2OM)
        m_rep = jnp.dot(m, rep_ref[...], preferred_element_type=jnp.float32)  # (T, 2OM)
        bil = jnp.dot(t * m_rep, sel_ref[...],
                      preferred_element_type=jnp.float32)                     # (T, 2O)
        bil = (bil
               + jnp.dot(h, wl_ref[...], preferred_element_type=jnp.float32)
               + jnp.dot(m, wr_ref[...], preferred_element_type=jnp.float32)
               + bb_ref[...])

        # --- MLP on concat([bil, h, m], -1); concat folded into layer 0 ---
        x = (jnp.dot(bil, w0b_ref[...], preferred_element_type=jnp.float32)
             + jnp.dot(h, w0h_ref[...], preferred_element_type=jnp.float32)
             + jnp.dot(m, w0m_ref[...], preferred_element_type=jnp.float32)
             + b0_ref[...])
        x = jnp.maximum(x, 0.0)                       # ReLU (dropout = identity)
        for i in range(n_hidden):
            w = hid_refs[2 * i][...]
            b = hid_refs[2 * i + 1][...]
            x = jnp.maximum(
                jnp.dot(x, w, preferred_element_type=jnp.float32) + b, 0.0)

        out = (jnp.dot(x, wout_ref[...], preferred_element_type=jnp.float32)
               + bout_ref[...])                        # (T, 2O) lane-dense slab
        out_ref[...] = out.astype(out_ref.dtype)

    return kernel, n_params


# ----------------------------------------------------------------------------
# Wrapper-side weight packing (fuse attr + mask heads)
# ----------------------------------------------------------------------------
def _block_diag(a, b):
    za = jnp.zeros((a.shape[0], b.shape[1]), a.dtype)
    zb = jnp.zeros((b.shape[0], a.shape[1]), b.dtype)
    return jnp.concatenate(
        [jnp.concatenate([a, za], axis=1),
         jnp.concatenate([zb, b], axis=1)], axis=0)


def _pack_params(attr_params, mask_params, n_hidden):
    Ua, WlTa, WrTa, bba, W0ba, W0ha, W0ma, b0a = attr_params[:8]
    Um, WlTm, WrTm, bbm, W0bm, W0hm, W0mm, b0m = mask_params[:8]
    hid_a = attr_params[8:8 + 2 * n_hidden]
    hid_m = mask_params[8:8 + 2 * n_hidden]
    Wouta, bouta = attr_params[8 + 2 * n_hidden:]
    Woutm, boutm = mask_params[8 + 2 * n_hidden:]

    O, H, M = Ua.shape
    # U packed so that column o*M+j of the attr half holds U[o, :, j]
    u2a = jnp.transpose(Ua, (1, 0, 2)).reshape(H, O * M)
    u2m = jnp.transpose(Um, (1, 0, 2)).reshape(H, O * M)
    u2 = jnp.concatenate([u2a, u2m], axis=1)                          # (H, 2OM)
    # R replicates m across the 2O groups:  (m @ R)[:, g*M+j] = m[:, j]
    rep = jnp.tile(jnp.eye(M, dtype=jnp.float32), (1, 2 * O))         # (M, 2OM)
    # S sums each contiguous group of M lanes: (p @ S)[:, g] = sum_j p[:, g*M+j]
    sel = jnp.repeat(jnp.eye(2 * O, dtype=jnp.float32), M, axis=0)    # (2OM, 2O)

    packed = [
        u2, rep, sel,
        jnp.concatenate([WlTa, WlTm], axis=1),     # (H, 2O)
        jnp.concatenate([WrTa, WrTm], axis=1),     # (M, 2O)
        jnp.concatenate([bba, bbm], axis=1),       # (1, 2O)
        _block_diag(W0ba, W0bm),                   # (2O, 2HID)
        jnp.concatenate([W0ha, W0hm], axis=1),     # (H, 2HID)
        jnp.concatenate([W0ma, W0mm], axis=1),     # (M, 2HID)
        jnp.concatenate([b0a, b0m], axis=1),       # (1, 2HID)
    ]
    for i in range(n_hidden):
        packed.append(_block_diag(hid_a[2 * i], hid_m[2 * i]))          # (2HID, 2HID)
        packed.append(jnp.concatenate([hid_a[2 * i + 1], hid_m[2 * i + 1]], axis=1))
    packed.append(_block_diag(Wouta, Woutm))       # (2HID, 2O)
    packed.append(jnp.concatenate([bouta, boutm], axis=1))              # (1, 2O)
    return packed


# ----------------------------------------------------------------------------
# Wrapper
# ----------------------------------------------------------------------------
@functools.partial(jax.jit, static_argnames=("n_layers",))
def edge_attribute_decoder(edge_h, edge_m, attr_params, mask_params, *, n_layers):
    B, S, H = edge_h.shape
    M = edge_m.shape[-1]
    O = attr_params[0].shape[0]          # U is (O, H, M)
    n_hidden = n_layers - 1
    N = B * S

    h2 = edge_h.reshape(N, H)
    m2 = edge_m.reshape(N, M)

    packed = _pack_params(attr_params, mask_params, n_hidden)

    # Row tiling: bounded VMEM, software pipelining, >=2 grid steps when
    # possible so the "parallel" axis can be sharded across TensorCores.
    if N >= 1024:
        tile = 512
    elif N >= 16:
        tile = max(8, ((N // 2) // 8) * 8)
    else:
        tile = N
    n_blocks = pl.cdiv(N, tile)
    N_pad = n_blocks * tile
    if N_pad != N:                        # remainder rows: zero-pad, slice later
        pad = N_pad - N
        h2 = jnp.pad(h2, ((0, pad), (0, 0)))
        m2 = jnp.pad(m2, ((0, pad), (0, 0)))

    kernel, _ = _make_fused_kernel(n_hidden)

    def row_spec(d):
        return pl.BlockSpec((tile, d), lambda i: (i, 0))

    def full_spec(shape):
        nd = len(shape)
        return pl.BlockSpec(shape, lambda i, _nd=nd: (0,) * _nd)

    in_specs = ([row_spec(H), row_spec(M)]
                + [full_spec(p.shape) for p in packed])
    out_specs = row_spec(2 * O)

    out = pl.pallas_call(
        kernel,
        out_shape=jax.ShapeDtypeStruct((N_pad, 2 * O), edge_h.dtype),
        grid=(n_blocks,),
        in_specs=in_specs,
        out_specs=out_specs,
        compiler_params=pltpu.CompilerParams(
            dimension_semantics=("parallel",)),
    )(h2, m2, *packed)

    out = out[:N]
    attr = out[:, :O].reshape(B, S, O)
    mask = out[:, O:].reshape(B, S, O)
    return dict(pred_attributes=attr, pred_mask=mask)


# ----------------------------------------------------------------------------
# Deterministic synthetic parameter init (shapes from __init__)
# ----------------------------------------------------------------------------
def init_head_params(key, h_dim, m_dim, out_dim, hidden_dim, n_layers, scale=0.1):
    n_hidden = n_layers - 1
    ks = iter(jax.random.split(key, 10 + 2 * n_hidden + 2))
    p = []
    p.append(scale * jax.random.normal(next(ks), (out_dim, h_dim, m_dim), jnp.float32))  # U
    p.append(scale * jax.random.normal(next(ks), (h_dim, out_dim), jnp.float32))         # Wl^T
    p.append(scale * jax.random.normal(next(ks), (m_dim, out_dim), jnp.float32))         # Wr^T
    p.append(scale * jax.random.normal(next(ks), (1, out_dim), jnp.float32))             # b_bil
    # MLP layer 0: Linear(out_dim + h_dim + m_dim, hidden), weight split by input block
    p.append(scale * jax.random.normal(next(ks), (out_dim, hidden_dim), jnp.float32))    # W0 (bil rows)
    p.append(scale * jax.random.normal(next(ks), (h_dim, hidden_dim), jnp.float32))      # W0 (h rows)
    p.append(scale * jax.random.normal(next(ks), (m_dim, hidden_dim), jnp.float32))      # W0 (m rows)
    p.append(scale * jax.random.normal(next(ks), (1, hidden_dim), jnp.float32))          # b0
    for _ in range(n_hidden):                                                            # hidden layers
        p.append(scale * jax.random.normal(next(ks), (hidden_dim, hidden_dim), jnp.float32))
        p.append(scale * jax.random.normal(next(ks), (1, hidden_dim), jnp.float32))
    p.append(scale * jax.random.normal(next(ks), (hidden_dim, out_dim), jnp.float32))    # Wout
    p.append(scale * jax.random.normal(next(ks), (1, out_dim), jnp.float32))             # bout
    return p


# ----------------------------------------------------------------------------
# Pure-JAX reference (for correctness check)
# ----------------------------------------------------------------------------
def ref_head(h2, m2, params, n_layers):
    n_hidden = n_layers - 1
    U, WlT, WrT, bb, W0b, W0h, W0m, b0 = params[:8]
    hid = params[8:8 + 2 * n_hidden]
    Wout, bout = params[8 + 2 * n_hidden:]
    bil = jnp.einsum('ni,oij,nj->no', h2, U, m2) + h2 @ WlT + m2 @ WrT + bb
    x = jnp.maximum(bil @ W0b + h2 @ W0h + m2 @ W0m + b0, 0.0)
    for i in range(n_hidden):
        x = jnp.maximum(x @ hid[2 * i] + hid[2 * i + 1], 0.0)
    return x @ Wout + bout


def ref_decoder(edge_h, edge_m, attr_params, mask_params, n_layers):
    B, S, H = edge_h.shape
    h2 = edge_h.reshape(-1, H)
    m2 = edge_m.reshape(-1, edge_m.shape[-1])
    a = ref_head(h2, m2, attr_params, n_layers)
    k = ref_head(h2, m2, mask_params, n_layers)
    O = a.shape[-1]
    return a.reshape(B, S, O), k.reshape(B, S, O)


# ----------------------------------------------------------------------------
if __name__ == "__main__":
    B, S = 2, 8
    h_input_dim = 32          # m_input_dim == h_input_dim in the module
    hidden_dim = 32
    output_dim = 16
    n_layers = 2

    key = jax.random.PRNGKey(0)
    k_h, k_m, k_attr, k_mask = jax.random.split(key, 4)

    edge_h = jax.random.normal(k_h, (B, S, h_input_dim), jnp.float32)
    edge_m = jax.random.normal(k_m, (B, S, h_input_dim), jnp.float32)

    attr_params = init_head_params(k_attr, h_input_dim, h_input_dim,
                                   output_dim, hidden_dim, n_layers)
    mask_params = init_head_params(k_mask, h_input_dim, h_input_dim,
                                   output_dim, hidden_dim, n_layers)

    out = edge_attribute_decoder(edge_h, edge_m, attr_params, mask_params,
                                 n_layers=n_layers)
    jax.block_until_ready(out)

    ref_attr, ref_mask = ref_decoder(edge_h, edge_m, attr_params, mask_params, n_layers)
    assert jnp.allclose(out["pred_attributes"], ref_attr, rtol=1e-4, atol=1e-4)
    assert jnp.allclose(out["pred_mask"], ref_mask, rtol=1e-4, atol=1e-4)
    assert out["pred_attributes"].shape == (B, S, output_dim)
    assert out["pred_mask"].shape == (B, S, output_dim)

    print("KERNEL_OK")
</pallas_src>

<mosaic_0001>
module attributes {stable_mosaic.version = 11 : i64} {
  func.func @kernel(%arg0: i32, %arg1: memref<8x32xf32, #tpu.memory_space<vmem>>, %arg2: memref<8x32xf32, #tpu.memory_space<vmem>>, %arg3: memref<32x1024xf32, #tpu.memory_space<vmem>>, %arg4: memref<32x1024xf32, #tpu.memory_space<vmem>>, %arg5: memref<1024x32xf32, #tpu.memory_space<vmem>>, %arg6: memref<32x32xf32, #tpu.memory_space<vmem>>, %arg7: memref<32x32xf32, #tpu.memory_space<vmem>>, %arg8: memref<1x32xf32, #tpu.memory_space<vmem>>, %arg9: memref<32x64xf32, #tpu.memory_space<vmem>>, %arg10: memref<32x64xf32, #tpu.memory_space<vmem>>, %arg11: memref<32x64xf32, #tpu.memory_space<vmem>>, %arg12: memref<1x64xf32, #tpu.memory_space<vmem>>, %arg13: memref<64x64xf32, #tpu.memory_space<vmem>>, %arg14: memref<1x64xf32, #tpu.memory_space<vmem>>, %arg15: memref<64x32xf32, #tpu.memory_space<vmem>>, %arg16: memref<1x32xf32, #tpu.memory_space<vmem>>, %arg17: memref<8x32xf32, #tpu.memory_space<vmem>>) attributes {dimension_semantics = [#tpu.dimension_semantics<parallel>], iteration_bounds = array<i64: 2>, scalar_prefetch = 0 : i64, scratch_operands = 0 : i64, tpu.core_type = #tpu.core_type<tc>, window_params = [{transform_indices = @transform_0, window_bounds = array<i64: 8, 32>}, {transform_indices = @transform_1, window_bounds = array<i64: 8, 32>}, {pipeline_mode = #tpu.pipeline_mode<synchronous>, transform_indices = @transform_2, window_bounds = array<i64: 32, 1024>}, {pipeline_mode = #tpu.pipeline_mode<synchronous>, transform_indices = @transform_3, window_bounds = array<i64: 32, 1024>}, {pipeline_mode = #tpu.pipeline_mode<synchronous>, transform_indices = @transform_4, window_bounds = array<i64: 1024, 32>}, {pipeline_mode = #tpu.pipeline_mode<synchronous>, transform_indices = @transform_5, window_bounds = array<i64: 32, 32>}, {pipeline_mode = #tpu.pipeline_mode<synchronous>, transform_indices = @transform_6, window_bounds = array<i64: 32, 32>}, {pipeline_mode = #tpu.pipeline_mode<synchronous>, transform_indices = @transform_7, window_bounds = array<i64: 1, 32>}, {pipeline_mode = #tpu.pipeline_mode<synchronous>, transform_indices = @transform_8, window_bounds = array<i64: 32, 64>}, {pipeline_mode = #tpu.pipeline_mode<synchronous>, transform_indices = @transform_9, window_bounds = array<i64: 32, 64>}, {pipeline_mode = #tpu.pipeline_mode<synchronous>, transform_indices = @transform_10, window_bounds = array<i64: 32, 64>}, {pipeline_mode = #tpu.pipeline_mode<synchronous>, transform_indices = @transform_11, window_bounds = array<i64: 1, 64>}, {pipeline_mode = #tpu.pipeline_mode<synchronous>, transform_indices = @transform_12, window_bounds = array<i64: 64, 64>}, {pipeline_mode = #tpu.pipeline_mode<synchronous>, transform_indices = @transform_13, window_bounds = array<i64: 1, 64>}, {pipeline_mode = #tpu.pipeline_mode<synchronous>, transform_indices = @transform_14, window_bounds = array<i64: 64, 32>}, {pipeline_mode = #tpu.pipeline_mode<synchronous>, transform_indices = @transform_15, window_bounds = array<i64: 1, 32>}, {transform_indices = @transform_16, window_bounds = array<i64: 8, 32>}]} {
    %c0 = arith.constant 0 : index
    %c0_0 = arith.constant 0 : index
    %0 = vector.load %arg1[%c0, %c0_0] : memref<8x32xf32, #tpu.memory_space<vmem>>, vector<8x32xf32>
    %c0_1 = arith.constant 0 : index
    %c0_2 = arith.constant 0 : index
    %1 = vector.load %arg2[%c0_1, %c0_2] : memref<8x32xf32, #tpu.memory_space<vmem>>, vector<8x32xf32>
    %c0_3 = arith.constant 0 : index
    %c0_4 = arith.constant 0 : index
    %2 = vector.load %arg3[%c0_3, %c0_4] : memref<32x1024xf32, #tpu.memory_space<vmem>>, vector<32x1024xf32>
    %cst = arith.constant dense<0.000000e+00> : vector<8x1024xf32>
    %3 = tpu.matmul %0, %2, %cst {dimension_numbers = #tpu.dot_dimension_numbers<[1], [0], [0], [1], [0, 0, 1, 1], [], []>} : vector<8x32xf32>, vector<32x1024xf32>, vector<8x1024xf32> -> vector<8x1024xf32>
    %c0_5 = arith.constant 0 : index
    %c0_6 = arith.constant 0 : index
    %4 = vector.load %arg4[%c0_5, %c0_6] : memref<32x1024xf32, #tpu.memory_space<vmem>>, vector<32x1024xf32>
    %cst_7 = arith.constant dense<0.000000e+00> : vector<8x1024xf32>
    %5 = tpu.matmul %1, %4, %cst_7 {dimension_numbers = #tpu.dot_dimension_numbers<[1], [0], [0], [1], [0, 0, 1, 1], [], []>} : vector<8x32xf32>, vector<32x1024xf32>, vector<8x1024xf32> -> vector<8x1024xf32>
    %6 = arith.mulf %3, %5 : vector<8x1024xf32>
    %c0_8 = arith.constant 0 : index
    %c0_9 = arith.constant 0 : index
    %7 = vector.load %arg5[%c0_8, %c0_9] : memref<1024x32xf32, #tpu.memory_space<vmem>>, vector<1024x32xf32>
    %cst_10 = arith.constant dense<0.000000e+00> : vector<8x32xf32>
    %8 = tpu.matmul %6, %7, %cst_10 {dimension_numbers = #tpu.dot_dimension_numbers<[1], [0], [0], [1], [0, 0, 1, 1], [], []>} : vector<8x1024xf32>, vector<1024x32xf32>, vector<8x32xf32> -> vector<8x32xf32>
    %c0_11 = arith.constant 0 : index
    %c0_12 = arith.constant 0 : index
    %9 = vector.load %arg6[%c0_11, %c0_12] : memref<32x32xf32, #tpu.memory_space<vmem>>, vector<32x32xf32>
    %cst_13 = arith.constant dense<0.000000e+00> : vector<8x32xf32>
    %10 = tpu.matmul %0, %9, %cst_13 {dimension_numbers = #tpu.dot_dimension_numbers<[1], [0], [0], [1], [0, 0, 1, 1], [], []>} : vector<8x32xf32>, vector<32x32xf32>, vector<8x32xf32> -> vector<8x32xf32>
    %11 = arith.addf %8, %10 : vector<8x32xf32>
    %c0_14 = arith.constant 0 : index
    %c0_15 = arith.constant 0 : index
    %12 = vector.load %arg7[%c0_14, %c0_15] : memref<32x32xf32, #tpu.memory_space<vmem>>, vector<32x32xf32>
    %cst_16 = arith.constant dense<0.000000e+00> : vector<8x32xf32>
    %13 = tpu.matmul %1, %12, %cst_16 {dimension_numbers = #tpu.dot_dimension_numbers<[1], [0], [0], [1], [0, 0, 1, 1], [], []>} : vector<8x32xf32>, vector<32x32xf32>, vector<8x32xf32> -> vector<8x32xf32>
    %14 = arith.addf %11, %13 : vector<8x32xf32>
    %c0_17 = arith.constant 0 : index
    %c0_18 = arith.constant 0 : index
    %15 = vector.load %arg8[%c0_17, %c0_18] : memref<1x32xf32, #tpu.memory_space<vmem>>, vector<1x32xf32>
    %16 = vector.broadcast %15 : vector<1x32xf32> to vector<8x32xf32>
    %17 = arith.addf %14, %16 : vector<8x32xf32>
    %c0_19 = arith.constant 0 : index
    %c0_20 = arith.constant 0 : index
    %18 = vector.load %arg9[%c0_19, %c0_20] : memref<32x64xf32, #tpu.memory_space<vmem>>, vector<32x64xf32>
    %cst_21 = arith.constant dense<0.000000e+00> : vector<8x64xf32>
    %19 = tpu.matmul %17, %18, %cst_21 {dimension_numbers = #tpu.dot_dimension_numbers<[1], [0], [0], [1], [0, 0, 1, 1], [], []>} : vector<8x32xf32>, vector<32x64xf32>, vector<8x64xf32> -> vector<8x64xf32>
    %c0_22 = arith.constant 0 : index
    %c0_23 = arith.constant 0 : index
    %20 = vector.load %arg10[%c0_22, %c0_23] : memref<32x64xf32, #tpu.memory_space<vmem>>, vector<32x64xf32>
    %cst_24 = arith.constant dense<0.000000e+00> : vector<8x64xf32>
    %21 = tpu.matmul %0, %20, %cst_24 {dimension_numbers = #tpu.dot_dimension_numbers<[1], [0], [0], [1], [0, 0, 1, 1], [], []>} : vector<8x32xf32>, vector<32x64xf32>, vector<8x64xf32> -> vector<8x64xf32>
    %22 = arith.addf %19, %21 : vector<8x64xf32>
    %c0_25 = arith.constant 0 : index
    %c0_26 = arith.constant 0 : index
    %23 = vector.load %arg11[%c0_25, %c0_26] : memref<32x64xf32, #tpu.memory_space<vmem>>, vector<32x64xf32>
    %cst_27 = arith.constant dense<0.000000e+00> : vector<8x64xf32>
    %24 = tpu.matmul %1, %23, %cst_27 {dimension_numbers = #tpu.dot_dimension_numbers<[1], [0], [0], [1], [0, 0, 1, 1], [], []>} : vector<8x32xf32>, vector<32x64xf32>, vector<8x64xf32> -> vector<8x64xf32>
    %25 = arith.addf %22, %24 : vector<8x64xf32>
    %c0_28 = arith.constant 0 : index
    %c0_29 = arith.constant 0 : index
    %26 = vector.load %arg12[%c0_28, %c0_29] : memref<1x64xf32, #tpu.memory_space<vmem>>, vector<1x64xf32>
    %27 = vector.broadcast %26 : vector<1x64xf32> to vector<8x64xf32>
    %28 = arith.addf %25, %27 : vector<8x64xf32>
    %cst_30 = arith.constant 0.000000e+00 : f32
    %29 = vector.broadcast %cst_30 : f32 to vector<8x64xf32>
    %30 = arith.maximumf %28, %29 : vector<8x64xf32>
    %c0_31 = arith.constant 0 : index
    %c0_32 = arith.constant 0 : index
    %31 = vector.load %arg13[%c0_31, %c0_32] : memref<64x64xf32, #tpu.memory_space<vmem>>, vector<64x64xf32>
    %c0_33 = arith.constant 0 : index
    %c0_34 = arith.constant 0 : index
    %32 = vector.load %arg14[%c0_33, %c0_34] : memref<1x64xf32, #tpu.memory_space<vmem>>, vector<1x64xf32>
    %cst_35 = arith.constant dense<0.000000e+00> : vector<8x64xf32>
    %33 = tpu.matmul %30, %31, %cst_35 {dimension_numbers = #tpu.dot_dimension_numbers<[1], [0], [0], [1], [0, 0, 1, 1], [], []>} : vector<8x64xf32>, vector<64x64xf32>, vector<8x64xf32> -> vector<8x64xf32>
    %34 = vector.broadcast %32 : vector<1x64xf32> to vector<8x64xf32>
    %35 = arith.addf %33, %34 : vector<8x64xf32>
    %cst_36 = arith.constant 0.000000e+00 : f32
    %36 = vector.broadcast %cst_36 : f32 to vector<8x64xf32>
    %37 = arith.maximumf %35, %36 : vector<8x64xf32>
    %c0_37 = arith.constant 0 : index
    %c0_38 = arith.constant 0 : index
    %38 = vector.load %arg15[%c0_37, %c0_38] : memref<64x32xf32, #tpu.memory_space<vmem>>, vector<64x32xf32>
    %cst_39 = arith.constant dense<0.000000e+00> : vector<8x32xf32>
    %39 = tpu.matmul %37, %38, %cst_39 {dimension_numbers = #tpu.dot_dimension_numbers<[1], [0], [0], [1], [0, 0, 1, 1], [], []>} : vector<8x64xf32>, vector<64x32xf32>, vector<8x32xf32> -> vector<8x32xf32>
    %c0_40 = arith.constant 0 : index
    %c0_41 = arith.constant 0 : index
    %40 = vector.load %arg16[%c0_40, %c0_41] : memref<1x32xf32, #tpu.memory_space<vmem>>, vector<1x32xf32>
    %41 = vector.broadcast %40 : vector<1x32xf32> to vector<8x32xf32>
    %42 = arith.addf %39, %41 : vector<8x32xf32>
    %c0_42 = arith.constant 0 : index
    %c0_43 = arith.constant 0 : index
    %43 = vector.load %arg17[%c0_42, %c0_43] : memref<8x32xf32, #tpu.memory_space<vmem>>, vector<8x32xf32>
    tpu.vector_store %arg17[%c0_42, %c0_43], %42 {strides = array<i32>} : memref<8x32xf32, #tpu.memory_space<vmem>>, vector<8x32xf32>,
    return
  }
  func.func @transform_0(%arg0: i32) -> (i32, i32) {
    %c0_i32 = arith.constant 0 : i32
    %c0_i32_0 = arith.constant 0 : i32
    return %arg0, %c0_i32 : i32, i32
  }
  func.func @transform_1(%arg0: i32) -> (i32, i32) {
    %c0_i32 = arith.constant 0 : i32
    %c0_i32_0 = arith.constant 0 : i32
    return %arg0, %c0_i32 : i32, i32
  }
  func.func @transform_2(%arg0: i32) -> (i32, i32) {
    %c0_i32 = arith.constant 0 : i32
    %c0_i32_0 = arith.constant 0 : i32
    %c0_i32_1 = arith.constant 0 : i32
    return %c0_i32, %c0_i32_0 : i32, i32
  }
  func.func @transform_3(%arg0: i32) -> (i32, i32) {
    %c0_i32 = arith.constant 0 : i32
    %c0_i32_0 = arith.constant 0 : i32
    %c0_i32_1 = arith.constant 0 : i32
    return %c0_i32, %c0_i32_0 : i32, i32
  }
  func.func @transform_4(%arg0: i32) -> (i32, i32) {
    %c0_i32 = arith.constant 0 : i32
    %c0_i32_0 = arith.constant 0 : i32
    %c0_i32_1 = arith.constant 0 : i32
    return %c0_i32, %c0_i32_0 : i32, i32
  }
  func.func @transform_5(%arg0: i32) -> (i32, i32) {
    %c0_i32 = arith.constant 0 : i32
    %c0_i32_0 = arith.constant 0 : i32
    %c0_i32_1 = arith.constant 0 : i32
    return %c0_i32, %c0_i32_0 : i32, i32
  }
  func.func @transform_6(%arg0: i32) -> (i32, i32) {
    %c0_i32 = arith.constant 0 : i32
    %c0_i32_0 = arith.constant 0 : i32
    %c0_i32_1 = arith.constant 0 : i32
    return %c0_i32, %c0_i32_0 : i32, i32
  }
  func.func @transform_7(%arg0: i32) -> (i32, i32) {
    %c0_i32 = arith.constant 0 : i32
    %c0_i32_0 = arith.constant 0 : i32
    %c0_i32_1 = arith.constant 0 : i32
    return %c0_i32, %c0_i32_0 : i32, i32
  }
  func.func @transform_8(%arg0: i32) -> (i32, i32) {
    %c0_i32 = arith.constant 0 : i32
    %c0_i32_0 = arith.constant 0 : i32
    %c0_i32_1 = arith.constant 0 : i32
    return %c0_i32, %c0_i32_0 : i32, i32
  }
  func.func @transform_9(%arg0: i32) -> (i32, i32) {
    %c0_i32 = arith.constant 0 : i32
    %c0_i32_0 = arith.constant 0 : i32
    %c0_i32_1 = arith.constant 0 : i32
    return %c0_i32, %c0_i32_0 : i32, i32
  }
  func.func @transform_10(%arg0: i32) -> (i32, i32) {
    %c0_i32 = arith.constant 0 : i32
    %c0_i32_0 = arith.constant 0 : i32
    %c0_i32_1 = arith.constant 0 : i32
    return %c0_i32, %c0_i32_0 : i32, i32
  }
  func.func @transform_11(%arg0: i32) -> (i32, i32) {
    %c0_i32 = arith.constant 0 : i32
    %c0_i32_0 = arith.constant 0 : i32
    %c0_i32_1 = arith.constant 0 : i32
    return %c0_i32, %c0_i32_0 : i32, i32
  }
  func.func @transform_12(%arg0: i32) -> (i32, i32) {
    %c0_i32 = arith.constant 0 : i32
    %c0_i32_0 = arith.constant 0 : i32
    %c0_i32_1 = arith.constant 0 : i32
    return %c0_i32, %c0_i32_0 : i32, i32
  }
  func.func @transform_13(%arg0: i32) -> (i32, i32) {
    %c0_i32 = arith.constant 0 : i32
    %c0_i32_0 = arith.constant 0 : i32
    %c0_i32_1 = arith.constant 0 : i32
    return %c0_i32, %c0_i32_0 : i32, i32
  }
  func.func @transform_14(%arg0: i32) -> (i32, i32) {
    %c0_i32 = arith.constant 0 : i32
    %c0_i32_0 = arith.constant 0 : i32
    %c0_i32_1 = arith.constant 0 : i32
    return %c0_i32, %c0_i32_0 : i32, i32
  }
  func.func @transform_15(%arg0: i32) -> (i32, i32) {
    %c0_i32 = arith.constant 0 : i32
    %c0_i32_0 = arith.constant 0 : i32
    %c0_i32_1 = arith.constant 0 : i32
    return %c0_i32, %c0_i32_0 : i32, i32
  }
  func.func @transform_16(%arg0: i32) -> (i32, i32) {
    %c0_i32 = arith.constant 0 : i32
    %c0_i32_0 = arith.constant 0 : i32
    return %arg0, %c0_i32 : i32, i32
  }
}

</mosaic_0001>

<llo_original>
// kernel: tile.9
$region0: #{tile.9}
  %s0 = inlined_call_operand.vmem [shape: f32[32,32,32], index: 0, kind: input, shape index: {}]
  %s1 = inlined_call_operand.vmem [shape: f32[32,1024], index: 1, kind: output, shape index: {}]
  %v2 = vld [vmem:[%s0] ss:$4 sm:$0xff]
  %vm3 = vcmask 261120
  %4 = vst.msk [vmem:[%s1] ss:$8 sm:$0xf] %vm3, %v2
  %5 = vst.msk [vmem:[%s1] ss:$8 sm:$0xf0] %vm3, %v2
  %s6 = scalar_lea.vmem %s0, 32
  %v7 = vld [vmem:[%s6] ss:$4 sm:$0xff]
  %vm8 = vcmask 261120
  %s9 = scalar_lea.vmem %s1, 1
  %10 = vst.msk [vmem:[%s9] ss:$8 sm:$0xf] %vm8, %v7
  %s11 = scalar_lea.vmem %s1, 1
  %12 = vst.msk [vmem:[%s11] ss:$8 sm:$0xf0] %vm8, %v7
  %s13 = scalar_lea.vmem %s0, 64
  %v14 = vld [vmem:[%s13] ss:$4 sm:$0xff]
  %vm15 = vcmask 261120
  %s16 = scalar_lea.vmem %s1, 2
  %17 = vst.msk [vmem:[%s16] ss:$8 sm:$0xf] %vm15, %v14
  %s18 = scalar_lea.vmem %s1, 2
  %19 = vst.msk [vmem:[%s18] ss:$8 sm:$0xf0] %vm15, %v14
  %s20 = scalar_lea.vmem %s0, 96
  %v21 = vld [vmem:[%s20] ss:$4 sm:$0xff]
  %vm22 = vcmask 261120
  %s23 = scalar_lea.vmem %s1, 3
  %24 = vst.msk [vmem:[%s23] ss:$8 sm:$0xf] %vm22, %v21
  %s25 = scalar_lea.vmem %s1, 3
  %26 = vst.msk [vmem:[%s25] ss:$8 sm:$0xf0] %vm22, %v21
  %s27 = scalar_lea.vmem %s0, 128
  %v28 = vld [vmem:[%s27] ss:$4 sm:$0xff]
  %vm29 = vcmask 261120
  %s30 = scalar_lea.vmem %s1, 4
  %31 = vst.msk [vmem:[%s30] ss:$8 sm:$0xf] %vm29, %v28
  %s32 = scalar_lea.vmem %s1, 4
  %33 = vst.msk [vmem:[%s32] ss:$8 sm:$0xf0] %vm29, %v28
  %s34 = scalar_lea.vmem %s0, 160
  %v35 = vld [vmem:[%s34] ss:$4 sm:$0xff]
  %vm36 = vcmask 261120
  %s37 = scalar_lea.vmem %s1, 5
  %38 = vst.msk [vmem:[%s37] ss:$8 sm:$0xf] %vm36, %v35
  %s39 = scalar_lea.vmem %s1, 5
  %40 = vst.msk [vmem:[%s39] ss:$8 sm:$0xf0] %vm36, %v35
  %s41 = scalar_lea.vmem %s0, 192
  %v42 = vld [vmem:[%s41] ss:$4 sm:$0xff]
  %vm43 = vcmask 261120
  %s44 = scalar_lea.vmem %s1, 6
  %45 = vst.msk [vmem:[%s44] ss:$8 sm:$0xf] %vm43, %v42
  %s46 = scalar_lea.vmem %s1, 6
  %47 = vst.msk [vmem:[%s46] ss:$8 sm:$0xf0] %vm43, %v42
  %s48 = scalar_lea.vmem %s0, 224
  %v49 = vld [vmem:[%s48] ss:$4 sm:$0xff]
  %vm50 = vcmask 261120
  %s51 = scalar_lea.vmem %s1, 7
  %52 = vst.msk [vmem:[%s51] ss:$8 sm:$0xf] %vm50, %v49
  %s53 = scalar_lea.vmem %s1, 7
  %54 = vst.msk [vmem:[%s53] ss:$8 sm:$0xf0] %vm50, %v49
  %s55 = scalar_lea.vmem %s0, 256
  %v56 = vld [vmem:[%s55] ss:$4 sm:$0xff]
  %vm57 = vcmask 261120
  %s58 = scalar_lea.vmem %s1, 64
  %59 = vst.msk [vmem:[%s58] ss:$8 sm:$0xf] %vm57, %v56
  %s60 = scalar_lea.vmem %s1, 64
  %61 = vst.msk [vmem:[%s60] ss:$8 sm:$0xf0] %vm57, %v56
  %s62 = scalar_lea.vmem %s0, 288
  %v63 = vld [vmem:[%s62] ss:$4 sm:$0xff]
  %vm64 = vcmask 261120
  %s65 = scalar_lea.vmem %s1, 65
  %66 = vst.msk [vmem:[%s65] ss:$8 sm:$0xf] %vm64, %v63
  %s67 = scalar_lea.vmem %s1, 65
  %68 = vst.msk [vmem:[%s67] ss:$8 sm:$0xf0] %vm64, %v63
  %s69 = scalar_lea.vmem %s0, 320
  %v70 = vld [vmem:[%s69] ss:$4 sm:$0xff]
  %vm71 = vcmask 261120
  %s72 = scalar_lea.vmem %s1, 66
  %73 = vst.msk [vmem:[%s72] ss:$8 sm:$0xf] %vm71, %v70
  %s74 = scalar_lea.vmem %s1, 66
  %75 = vst.msk [vmem:[%s74] ss:$8 sm:$0xf0] %vm71, %v70
  %s76 = scalar_lea.vmem %s0, 352
  %v77 = vld [vmem:[%s76] ss:$4 sm:$0xff]
  %vm78 = vcmask 261120
  %s79 = scalar_lea.vmem %s1, 67
  %80 = vst.msk [vmem:[%s79] ss:$8 sm:$0xf] %vm78, %v77
  %s81 = scalar_lea.vmem %s1, 67
  %82 = vst.msk [vmem:[%s81] ss:$8 sm:$0xf0] %vm78, %v77
  %s83 = scalar_lea.vmem %s0, 384
  %v84 = vld [vmem:[%s83] ss:$4 sm:$0xff]
  %vm85 = vcmask 261120
  %s86 = scalar_lea.vmem %s1, 68
  %87 = vst.msk [vmem:[%s86] ss:$8 sm:$0xf] %vm85, %v84
  %s88 = scalar_lea.vmem %s1, 68
  %89 = vst.msk [vmem:[%s88] ss:$8 sm:$0xf0] %vm85, %v84
  %s90 = scalar_lea.vmem %s0, 416
  %v91 = vld [vmem:[%s90] ss:$4 sm:$0xff]
  %vm92 = vcmask 261120
  %s93 = scalar_lea.vmem %s1, 69
  %94 = vst.msk [vmem:[%s93] ss:$8 sm:$0xf] %vm92, %v91
  %s95 = scalar_lea.vmem %s1, 69
  %96 = vst.msk [vmem:[%s95] ss:$8 sm:$0xf0] %vm92, %v91
  %s97 = scalar_lea.vmem %s0, 448
  %v98 = vld [vmem:[%s97] ss:$4 sm:$0xff]
  %vm99 = vcmask 261120
  %s100 = scalar_lea.vmem %s1, 70
  %101 = vst.msk [vmem:[%s100] ss:$8 sm:$0xf] %vm99, %v98
  %s102 = scalar_lea.vmem %s1, 70
  %103 = vst.msk [vmem:[%s102] ss:$8 sm:$0xf0] %vm99, %v98
  %s104 = scalar_lea.vmem %s0, 480
  %v105 = vld [vmem:[%s104] ss:$4 sm:$0xff]
  %vm106 = vcmask 261120
  %s107 = scalar_lea.vmem %s1, 71
  %108 = vst.msk [vmem:[%s107] ss:$8 sm:$0xf] %vm106, %v105
  %s109 = scalar_lea.vmem %s1, 71
  %110 = vst.msk [vmem:[%s109] ss:$8 sm:$0xf0] %vm106, %v105
  %s111 = scalar_lea.vmem %s0, 512
  %v112 = vld [vmem:[%s111] ss:$4 sm:$0xff]
  %vm113 = vcmask 261120
  %s114 = scalar_lea.vmem %s1, 128
  %115 = vst.msk [vmem:[%s114] ss:$8 sm:$0xf] %vm113, %v112
  %s116 = scalar_lea.vmem %s1, 128
  %117 = vst.msk [vmem:[%s116] ss:$8 sm:$0xf0] %vm113, %v112
  %s118 = scalar_lea.vmem %s0, 544
  %v119 = vld [vmem:[%s118] ss:$4 sm:$0xff]
  %vm120 = vcmask 261120
  %s121 = scalar_lea.vmem %s1, 129
  %122 = vst.msk [vmem:[%s121] ss:$8 sm:$0xf] %vm120, %v119
  %s123 = scalar_lea.vmem %s1, 129
  %124 = vst.msk [vmem:[%s123] ss:$8 sm:$0xf0] %vm120, %v119
  %s125 = scalar_lea.vmem %s0, 576
  %v126 = vld [vmem:[%s125] ss:$4 sm:$0xff]
  %vm127 = vcmask 261120
  %s128 = scalar_lea.vmem %s1, 130
  %129 = vst.msk [vmem:[%s128] ss:$8 sm:$0xf] %vm127, %v126
  %s130 = scalar_lea.vmem %s1, 130
  %131 = vst.msk [vmem:[%s130] ss:$8 sm:$0xf0] %vm127, %v126
  %s132 = scalar_lea.vmem %s0, 608
  %v133 = vld [vmem:[%s132] ss:$4 sm:$0xff]
  %vm134 = vcmask 261120
  %s135 = scalar_lea.vmem %s1, 131
  %136 = vst.msk [vmem:[%s135] ss:$8 sm:$0xf] %vm134, %v133
  %s137 = scalar_lea.vmem %s1, 131
  %138 = vst.msk [vmem:[%s137] ss:$8 sm:$0xf0] %vm134, %v133
  %s139 = scalar_lea.vmem %s0, 640
  %v140 = vld [vmem:[%s139] ss:$4 sm:$0xff]
  %vm141 = vcmask 261120
  %s142 = scalar_lea.vmem %s1, 132
  %143 = vst.msk [vmem:[%s142] ss:$8 sm:$0xf] %vm141, %v140
  %s144 = scalar_lea.vmem %s1, 132
  %145 = vst.msk [vmem:[%s144] ss:$8 sm:$0xf0] %vm141, %v140
  %s146 = scalar_lea.vmem %s0, 672
  %v147 = vld [vmem:[%s146] ss:$4 sm:$0xff]
  %vm148 = vcmask 261120
  %s149 = scalar_lea.vmem %s1, 133
  %150 = vst.msk [vmem:[%s149] ss:$8 sm:$0xf] %vm148, %v147
  %s151 = scalar_lea.vmem %s1, 133
  %152 = vst.msk [vmem:[%s151] ss:$8 sm:$0xf0] %vm148, %v147
  %s153 = scalar_lea.vmem %s0, 704
  %v154 = vld [vmem:[%s153] ss:$4 sm:$0xff]
  %vm155 = vcmask 261120
  %s156 = scalar_lea.vmem %s1, 134
  %157 = vst.msk [vmem:[%s156] ss:$8 sm:$0xf] %vm155, %v154
  %s158 = scalar_lea.vmem %s1, 134
  %159 = vst.msk [vmem:[%s158] ss:$8 sm:$0xf0] %vm155, %v154
  %s160 = scalar_lea.vmem %s0, 736
  %v161 = vld [vmem:[%s160] ss:$4 sm:$0xff]
  %vm162 = vcmask 261120
  %s163 = scalar_lea.vmem %s1, 135
  %164 = vst.msk [vmem:[%s163] ss:$8 sm:$0xf] %vm162, %v161
  %s165 = scalar_lea.vmem %s1, 135
  %166 = vst.msk [vmem:[%s165] ss:$8 sm:$0xf0] %vm162, %v161
  %s167 = scalar_lea.vmem %s0, 768
  %v168 = vld [vmem:[%s167] ss:$4 sm:$0xff]
  %vm169 = vcmask 261120
  %s170 = scalar_lea.vmem %s1, 192
  %171 = vst.msk [vmem:[%s170] ss:$8 sm:$0xf] %vm169, %v168
  %s172 = scalar_lea.vmem %s1, 192
  %173 = vst.msk [vmem:[%s172] ss:$8 sm:$0xf0] %vm169, %v168
  %s174 = scalar_lea.vmem %s0, 800
  %v175 = vld [vmem:[%s174] ss:$4 sm:$0xff]
  %vm176 = vcmask 261120
  %s177 = scalar_lea.vmem %s1, 193
  %178 = vst.msk [vmem:[%s177] ss:$8 sm:$0xf] %vm176, %v175
  %s179 = scalar_lea.vmem %s1, 193
  %180 = vst.msk [vmem:[%s179] ss:$8 sm:$0xf0] %vm176, %v175
  %s181 = scalar_lea.vmem %s0, 832
  %v182 = vld [vmem:[%s181] ss:$4 sm:$0xff]
  %vm183 = vcmask 261120
  %s184 = scalar_lea.vmem %s1, 194
  %185 = vst.msk [vmem:[%s184] ss:$8 sm:$0xf] %vm183, %v182
  %s186 = scalar_lea.vmem %s1, 194
  %187 = vst.msk [vmem:[%s186] ss:$8 sm:$0xf0] %vm183, %v182
  %s188 = scalar_lea.vmem %s0, 864
  %v189 = vld [vmem:[%s188] ss:$4 sm:$0xff]
  %vm190 = vcmask 261120
  %s191 = scalar_lea.vmem %s1, 195
  %192 = vst.msk [vmem:[%s191] ss:$8 sm:$0xf] %vm190, %v189
  %s193 = scalar_lea.vmem %s1, 195
  %194 = vst.msk [vmem:[%s193] ss:$8 sm:$0xf0] %vm190, %v189
  %s195 = scalar_lea.vmem %s0, 896
  %v196 = vld [vmem:[%s195] ss:$4 sm:$0xff]
  %vm197 = vcmask 261120
  %s198 = scalar_lea.vmem %s1, 196
  %199 = vst.msk [vmem:[%s198] ss:$8 sm:$0xf] %vm197, %v196
  %s200 = scalar_lea.vmem %s1, 196
  %201 = vst.msk [vmem:[%s200] ss:$8 sm:$0xf0] %vm197, %v196
  %s202 = scalar_lea.vmem %s0, 928
  %v203 = vld [vmem:[%s202] ss:$4 sm:$0xff]
  %vm204 = vcmask 261120
  %s205 = scalar_lea.vmem %s1, 197
  %206 = vst.msk [vmem:[%s205] ss:$8 sm:$0xf] %vm204, %v203
  %s207 = scalar_lea.vmem %s1, 197
  %208 = vst.msk [vmem:[%s207] ss:$8 sm:$0xf0] %vm204, %v203
  %s209 = scalar_lea.vmem %s0, 960
  %v210 = vld [vmem:[%s209] ss:$4 sm:$0xff]
  %vm211 = vcmask 261120
  %s212 = scalar_lea.vmem %s1, 198
  %213 = vst.msk [vmem:[%s212] ss:$8 sm:$0xf] %vm211, %v210
  %s214 = scalar_lea.vmem %s1, 198
  %215 = vst.msk [vmem:[%s214] ss:$8 sm:$0xf0] %vm211, %v210
  %s216 = scalar_lea.vmem %s0, 992
  %v217 = vld [vmem:[%s216] ss:$4 sm:$0xff]
  %vm218 = vcmask 261120
  %s219 = scalar_lea.vmem %s1, 199
  %220 = vst.msk [vmem:[%s219] ss:$8 sm:$0xf] %vm218, %v217
  %s221 = scalar_lea.vmem %s1, 199
  %222 = vst.msk [vmem:[%s221] ss:$8 sm:$0xf0] %vm218, %v217
  %s223 = scalar_lea.vmem %s0, 3
  %v224 = vld [vmem:[%s223] sm:$0x1]
  %s225 = scalar_lea.vmem %s0, 34
  %v226 = vld [vmem:[%s225] sm:$0x2]
  %vm227 = vcmask 1041409
  %v228 = vsel %vm227, %v226, %v224
  %s229 = scalar_lea.vmem %s0, 65
  %v230 = vld [vmem:[%s229] sm:$0x4]
  %vm231 = vcmask 1042434
  %v232 = vsel %vm231, %v230, %v228
  %s233 = scalar_lea.vmem %s0, 96
  %v234 = vld [vmem:[%s233] sm:$0x8]
  %vm235 = vcmask 1043459
  %v236 = vsel %vm235, %v234, %v232
  %s237 = scalar_lea.vmem %s0, 127
  %v238 = vld [vmem:[%s237] sm:$0x10]
  %vm239 = vcmask 1044484
  %v240 = vsel %vm239, %v238, %v236
  %s241 = scalar_lea.vmem %s0, 158
  %v242 = vld [vmem:[%s241] sm:$0x20]
  %vm243 = vcmask 1045509
  %v244 = vsel %vm243, %v242, %v240
  %s245 = scalar_lea.vmem %s0, 189
  %v246 = vld [vmem:[%s245] sm:$0x40]
  %vm247 = vcmask 1046534
  %v248 = vsel %vm247, %v246, %v244
  %s249 = scalar_lea.vmem %s0, 220
  %v250 = vld [vmem:[%s249] sm:$0x80]
  %vm251 = vcmask 1047559
  %v252 = vsel %vm251, %v250, %v248
  %253 = vrot.lane.b32.xlu0 %v252, 96
  %v254 = vpop.permute.xlu0 %253
  %vm255 = vcmask 1048320
  %256 = vst.msk [vmem:[%s1] sm:$0xff] %vm255, %v254
  %s257 = scalar_lea.vmem %s0, 19
  %v258 = vld [vmem:[%s257] sm:$0x1]
  %s259 = scalar_lea.vmem %s0, 50
  %v260 = vld [vmem:[%s259] sm:$0x2]
  %vm261 = vcmask 1041409
  %v262 = vsel %vm261, %v260, %v258
  %s263 = scalar_lea.vmem %s0, 81
  %v264 = vld [vmem:[%s263] sm:$0x4]
  %vm265 = vcmask 1042434
  %v266 = vsel %vm265, %v264, %v262
  %s267 = scalar_lea.vmem %s0, 112
  %v268 = vld [vmem:[%s267] sm:$0x8]
  %vm269 = vcmask 1043459
  %v270 = vsel %vm269, %v268, %v266
  %s271 = scalar_lea.vmem %s0, 143
  %v272 = vld [vmem:[%s271] sm:$0x10]
  %vm273 = vcmask 1044484
  %v274 = vsel %vm273, %v272, %v270
  %s275 = scalar_lea.vmem %s0, 174
  %v276 = vld [vmem:[%s275] sm:$0x20]
  %vm277 = vcmask 1045509
  %v278 = vsel %vm277, %v276, %v274
  %s279 = scalar_lea.vmem %s0, 205
  %v280 = vld [vmem:[%s279] sm:$0x40]
  %vm281 = vcmask 1046534
  %v282 = vsel %vm281, %v280, %v278
  %s283 = scalar_lea.vmem %s0, 236
  %v284 = vld [vmem:[%s283] sm:$0x80]
  %vm285 = vcmask 1047559
  %v286 = vsel %vm285, %v284, %v282
  %287 = vrot.lane.b32.xlu0 %v286, 96
  %v288 = vpop.permute.xlu0 %287
  %vm289 = vcmask 1048320
  %s290 = scalar_lea.vmem %s1, 32
  %291 = vst.msk [vmem:[%s290] sm:$0xff] %vm289, %v288
  %s292 = scalar_lea.vmem %s0, 259
  %v293 = vld [vmem:[%s292] sm:$0x1]
  %s294 = scalar_lea.vmem %s0, 290
  %v295 = vld [vmem:[%s294] sm:$0x2]
  %vm296 = vcmask 1041409
  %v297 = vsel %vm296, %v295, %v293
  %s298 = scalar_lea.vmem %s0, 321
  %v299 = vld [vmem:[%s298] sm:$0x4]
  %vm300 = vcmask 1042434
  %v301 = vsel %vm300, %v299, %v297
  %s302 = scalar_lea.vmem %s0, 352
  %v303 = vld [vmem:[%s302] sm:$0x8]
  %vm304 = vcmask 1043459
  %v305 = vsel %vm304, %v303, %v301
  %s306 = scalar_lea.vmem %s0, 383
  %v307 = vld [vmem:[%s306] sm:$0x10]
  %vm308 = vcmask 1044484
  %v309 = vsel %vm308, %v307, %v305
  %s310 = scalar_lea.vmem %s0, 414
  %v311 = vld [vmem:[%s310] sm:$0x20]
  %vm312 = vcmask 1045509
  %v313 = vsel %vm312, %v311, %v309
  %s314 = scalar_lea.vmem %s0, 445
  %v315 = vld [vmem:[%s314] sm:$0x40]
  %vm316 = vcmask 1046534
  %v317 = vsel %vm316, %v315, %v313
  %s318 = scalar_lea.vmem %s0, 476
  %v319 = vld [vmem:[%s318] sm:$0x80]
  %vm320 = vcmask 1047559
  %v321 = vsel %vm320, %v319, %v317
  %322 = vrot.lane.b32.xlu0 %v321, 96
  %v323 = vpop.permute.xlu0 %322
  %vm324 = vcmask 1048320
  %s325 = scalar_lea.vmem %s1, 64
  %326 = vst.msk [vmem:[%s325] sm:$0xff] %vm324, %v323
  %s327 = scalar_lea.vmem %s0, 275
  %v328 = vld [vmem:[%s327] sm:$0x1]
  %s329 = scalar_lea.vmem %s0, 306
  %v330 = vld [vmem:[%s329] sm:$0x2]
  %vm331 = vcmask 1041409
  %v332 = vsel %vm331, %v330, %v328
  %s333 = scalar_lea.vmem %s0, 337
  %v334 = vld [vmem:[%s333] sm:$0x4]
  %vm335 = vcmask 1042434
  %v336 = vsel %vm335, %v334, %v332
  %s337 = scalar_lea.vmem %s0, 368
  %v338 = vld [vmem:[%s337] sm:$0x8]
  %vm339 = vcmask 1043459
  %v340 = vsel %vm339, %v338, %v336
  %s341 = scalar_lea.vmem %s0, 399
  %v342 = vld [vmem:[%s341] sm:$0x10]
  %vm343 = vcmask 1044484
  %v344 = vsel %vm343, %v342, %v340
  %s345 = scalar_lea.vmem %s0, 430
  %v346 = vld [vmem:[%s345] sm:$0x20]
  %vm347 = vcmask 1045509
  %v348 = vsel %vm347, %v346, %v344
  %s349 = scalar_lea.vmem %s0, 461
  %v350 = vld [vmem:[%s349] sm:$0x40]
  %vm351 = vcmask 1046534
  %v352 = vsel %vm351, %v350, %v348
  %s353 = scalar_lea.vmem %s0, 492
  %v354 = vld [vmem:[%s353] sm:$0x80]
  %vm355 = vcmask 1047559
  %v356 = vsel %vm355, %v354, %v352
  %357 = vrot.lane.b32.xlu0 %v356, 96
  %v358 = vpop.permute.xlu0 %357
  %vm359 = vcmask 1048320
  %s360 = scalar_lea.vmem %s1, 96
  %361 = vst.msk [vmem:[%s360] sm:$0xff] %vm359, %v358
  %s362 = scalar_lea.vmem %s0, 515
  %v363 = vld [vmem:[%s362] sm:$0x1]
  %s364 = scalar_lea.vmem %s0, 546
  %v365 = vld [vmem:[%s364] sm:$0x2]
  %vm366 = vcmask 1041409
  %v367 = vsel %vm366, %v365, %v363
  %s368 = scalar_lea.vmem %s0, 577
  %v369 = vld [vmem:[%s368] sm:$0x4]
  %vm370 = vcmask 1042434
  %v371 = vsel %vm370, %v369, %v367
  %s372 = scalar_lea.vmem %s0, 608
  %v373 = vld [vmem:[%s372] sm:$0x8]
  %vm374 = vcmask 1043459
  %v375 = vsel %vm374, %v373, %v371
  %s376 = scalar_lea.vmem %s0, 639
  %v377 = vld [vmem:[%s376] sm:$0x10]
  %vm378 = vcmask 1044484
  %v379 = vsel %vm378, %v377, %v375
  %s380 = scalar_lea.vmem %s0, 670
  %v381 = vld [vmem:[%s380] sm:$0x20]
  %vm382 = vcmask 1045509
  %v383 = vsel %vm382, %v381, %v379
  %s384 = scalar_lea.vmem %s0, 701
  %v385 = vld [vmem:[%s384] sm:$0x40]
  %vm386 = vcmask 1046534
  %v387 = vsel %vm386, %v385, %v383
  %s388 = scalar_lea.vmem %s0, 732
  %v389 = vld [vmem:[%s388] sm:$0x80]
  %vm390 = vcmask 1047559
  %v391 = vsel %vm390, %v389, %v387
  %392 = vrot.lane.b32.xlu0 %v391, 96
  %v393 = vpop.permute.xlu0 %392
  %vm394 = vcmask 1048320
  %s395 = scalar_lea.vmem %s1, 128
  %396 = vst.msk [vmem:[%s395] sm:$0xff] %vm394, %v393
  %s397 = scalar_lea.vmem %s0, 531
  %v398 = vld [vmem:[%s397] sm:$0x1]
  %s399 = scalar_lea.vmem %s0, 562
  %v400 = vld [vmem:[%s399] sm:$0x2]
  %vm401 = vcmask 1041409
  %v402 = vsel %vm401, %v400, %v398
  %s403 = scalar_lea.vmem %s0, 593
  %v404 = vld [vmem:[%s403] sm:$0x4]
  %vm405 = vcmask 1042434
  %v406 = vsel %vm405, %v404, %v402
  %s407 = scalar_lea.vmem %s0, 624
  %v408 = vld [vmem:[%s407] sm:$0x8]
  %vm409 = vcmask 1043459
  %v410 = vsel %vm409, %v408, %v406
  %s411 = scalar_lea.vmem %s0, 655
  %v412 = vld [vmem:[%s411] sm:$0x10]
  %vm413 = vcmask 1044484
  %v414 = vsel %vm413, %v412, %v410
  %s415 = scalar_lea.vmem %s0, 686
  %v416 = vld [vmem:[%s415] sm:$0x20]
  %vm417 = vcmask 1045509
  %v418 = vsel %vm417, %v416, %v414
  %s419 = scalar_lea.vmem %s0, 717
  %v420 = vld [vmem:[%s419] sm:$0x40]
  %vm421 = vcmask 1046534
  %v422 = vsel %vm421, %v420, %v418
  %s423 = scalar_lea.vmem %s0, 748
  %v424 = vld [vmem:[%s423] sm:$0x80]
  %vm425 = vcmask 1047559
  %v426 = vsel %vm425, %v424, %v422
  %427 = vrot.lane.b32.xlu0 %v426, 96
  %v428 = vpop.permute.xlu0 %427
  %vm429 = vcmask 1048320
  %s430 = scalar_lea.vmem %s1, 160
  %431 = vst.msk [vmem:[%s430] sm:$0xff] %vm429, %v428
  %s432 = scalar_lea.vmem %s0, 771
  %v433 = vld [vmem:[%s432] sm:$0x1]
  %s434 = scalar_lea.vmem %s0, 802
  %v435 = vld [vmem:[%s434] sm:$0x2]
  %vm436 = vcmask 1041409
  %v437 = vsel %vm436, %v435, %v433
  %s438 = scalar_lea.vmem %s0, 833
  %v439 = vld [vmem:[%s438] sm:$0x4]
  %vm440 = vcmask 1042434
  %v441 = vsel %vm440, %v439, %v437
  %s442 = scalar_lea.vmem %s0, 864
  %v443 = vld [vmem:[%s442] sm:$0x8]
  %vm444 = vcmask 1043459
  %v445 = vsel %vm444, %v443, %v441
  %s446 = scalar_lea.vmem %s0, 895
  %v447 = vld [vmem:[%s446] sm:$0x10]
  %vm448 = vcmask 1044484
  %v449 = vsel %vm448, %v447, %v445
  %s450 = scalar_lea.vmem %s0, 926
  %v451 = vld [vmem:[%s450] sm:$0x20]
  %vm452 = vcmask 1045509
  %v453 = vsel %vm452, %v451, %v449
  %s454 = scalar_lea.vmem %s0, 957
  %v455 = vld [vmem:[%s454] sm:$0x40]
  %vm456 = vcmask 1046534
  %v457 = vsel %vm456, %v455, %v453
  %s458 = scalar_lea.vmem %s0, 988
  %v459 = vld [vmem:[%s458] sm:$0x80]
  %vm460 = vcmask 1047559
  %v461 = vsel %vm460, %v459, %v457
  %462 = vrot.lane.b32.xlu0 %v461, 96
  %v463 = vpop.permute.xlu0 %462
  %vm464 = vcmask 1048320
  %s465 = scalar_lea.vmem %s1, 192
  %466 = vst.msk [vmem:[%s465] sm:$0xff] %vm464, %v463
  %s467 = scalar_lea.vmem %s0, 787
  %v468 = vld [vmem:[%s467] sm:$0x1]
  %s469 = scalar_lea.vmem %s0, 818
  %v470 = vld [vmem:[%s469] sm:$0x2]
  %vm471 = vcmask 1041409
  %v472 = vsel %vm471, %v470, %v468
  %s473 = scalar_lea.vmem %s0, 849
  %v474 = vld [vmem:[%s473] sm:$0x4]
  %vm475 = vcmask 1042434
  %v476 = vsel %vm475, %v474, %v472
  %s477 = scalar_lea.vmem %s0, 880
  %v478 = vld [vmem:[%s477] sm:$0x8]
  %vm479 = vcmask 1043459
  %v480 = vsel %vm479, %v478, %v476
  %s481 = scalar_lea.vmem %s0, 911
  %v482 = vld [vmem:[%s481] sm:$0x10]
  %vm483 = vcmask 1044484
  %v484 = vsel %vm483, %v482, %v480
  %s485 = scalar_lea.vmem %s0, 942
  %v486 = vld [vmem:[%s485] sm:$0x20]
  %vm487 = vcmask 1045509
  %v488 = vsel %vm487, %v486, %v484
  %s489 = scalar_lea.vmem %s0, 973
  %v490 = vld [vmem:[%s489] sm:$0x40]
  %vm491 = vcmask 1046534
  %v492 = vsel %vm491, %v490, %v488
  %s493 = scalar_lea.vmem %s0, 1004
  %v494 = vld [vmem:[%s493] sm:$0x80]
  %vm495 = vcmask 1047559
  %v496 = vsel %vm495, %v494, %v492
  %497 = vrot.lane.b32.xlu0 %v496, 96
  %v498 = vpop.permute.xlu0 %497
  %vm499 = vcmask 1048320
  %s500 = scalar_lea.vmem %s1, 224
  %501 = vst.msk [vmem:[%s500] sm:$0xff] %vm499, %v498
  %s502 = scalar_lea.vmem %s0, 7
  %v503 = vld [vmem:[%s502] sm:$0x1]
  %s504 = scalar_lea.vmem %s0, 38
  %v505 = vld [vmem:[%s504] sm:$0x2]
  %vm506 = vcmask 1041409
  %v507 = vsel %vm506, %v505, %v503
  %s508 = scalar_lea.vmem %s0, 69
  %v509 = vld [vmem:[%s508] sm:$0x4]
  %vm510 = vcmask 1042434
  %v511 = vsel %vm510, %v509, %v507
  %s512 = scalar_lea.vmem %s0, 100
  %v513 = vld [vmem:[%s512] sm:$0x8]
  %vm514 = vcmask 1043459
  %v515 = vsel %vm514, %v513, %v511
  %s516 = scalar_lea.vmem %s0, 131
  %v517 = vld [vmem:[%s516] sm:$0x10]
  %vm518 = vcmask 1044484
  %v519 = vsel %vm518, %v517, %v515
  %s520 = scalar_lea.vmem %s0, 162
  %v521 = vld [vmem:[%s520] sm:$0x20]
  %vm522 = vcmask 1045509
  %v523 = vsel %vm522, %v521, %v519
  %s524 = scalar_lea.vmem %s0, 193
  %v525 = vld [vmem:[%s524] sm:$0x40]
  %vm526 = vcmask 1046534
  %v527 = vsel %vm526, %v525, %v523
  %s528 = scalar_lea.vmem %s0, 224
  %v529 = vld [vmem:[%s528] sm:$0x80]
  %vm530 = vcmask 1047559
  %v531 = vsel %vm530, %v529, %v527
  %532 = vrot.lane.b32.xlu0 %v531, 96
  %v533 = vpop.permute.xlu0 %532
  %vm534 = vcmask 1048320
  %s535 = scalar_lea.vmem %s1, 8
  %536 = vst.msk [vmem:[%s535] sm:$0xff] %vm534, %v533
  %s537 = scalar_lea.vmem %s0, 23
  %v538 = vld [vmem:[%s537] sm:$0x1]
  %s539 = scalar_lea.vmem %s0, 54
  %v540 = vld [vmem:[%s539] sm:$0x2]
  %vm541 = vcmask 1041409
  %v542 = vsel %vm541, %v540, %v538
  %s543 = scalar_lea.vmem %s0, 85
  %v544 = vld [vmem:[%s543] sm:$0x4]
  %vm545 = vcmask 1042434
  %v546 = vsel %vm545, %v544, %v542
  %s547 = scalar_lea.vmem %s0, 116
  %v548 = vld [vmem:[%s547] sm:$0x8]
  %vm549 = vcmask 1043459
  %v550 = vsel %vm549, %v548, %v546
  %s551 = scalar_lea.vmem %s0, 147
  %v552 = vld [vmem:[%s551] sm:$0x10]
  %vm553 = vcmask 1044484
  %v554 = vsel %vm553, %v552, %v550
  %s555 = scalar_lea.vmem %s0, 178
  %v556 = vld [vmem:[%s555] sm:$0x20]
  %vm557 = vcmask 1045509
  %v558 = vsel %vm557, %v556, %v554
  %s559 = scalar_lea.vmem %s0, 209
  %v560 = vld [vmem:[%s559] sm:$0x40]
  %vm561 = vcmask 1046534
  %v562 = vsel %vm561, %v560, %v558
  %s563 = scalar_lea.vmem %s0, 240
  %v564 = vld [vmem:[%s563] sm:$0x80]
  %vm565 = vcmask 1047559
  %v566 = vsel %vm565, %v564, %v562
  %567 = vrot.lane.b32.xlu0 %v566, 96
  %v568 = vpop.permute.xlu0 %567
  %vm569 = vcmask 1048320
  %s570 = scalar_lea.vmem %s1, 40
  %571 = vst.msk [vmem:[%s570] sm:$0xff] %vm569, %v568
  %s572 = scalar_lea.vmem %s0, 263
  %v573 = vld [vmem:[%s572] sm:$0x1]
  %s574 = scalar_lea.vmem %s0, 294
  %v575 = vld [vmem:[%s574] sm:$0x2]
  %vm576 = vcmask 1041409
  %v577 = vsel %vm576, %v575, %v573
  %s578 = scalar_lea.vmem %s0, 325
  %v579 = vld [vmem:[%s578] sm:$0x4]
  %vm580 = vcmask 1042434
  %v581 = vsel %vm580, %v579, %v577
  %s582 = scalar_lea.vmem %s0, 356
  %v583 = vld [vmem:[%s582] sm:$0x8]
  %vm584 = vcmask 1043459
  %v585 = vsel %vm584, %v583, %v581
  %s586 = scalar_lea.vmem %s0, 387
  %v587 = vld [vmem:[%s586] sm:$0x10]
  %vm588 = vcmask 1044484
  %v589 = vsel %vm588, %v587, %v585
  %s590 = scalar_lea.vmem %s0, 418
  %v591 = vld [vmem:[%s590] sm:$0x20]
  %vm592 = vcmask 1045509
  %v593 = vsel %vm592, %v591, %v589
  %s594 = scalar_lea.vmem %s0, 449
  %v595 = vld [vmem:[%s594] sm:$0x40]
  %vm596 = vcmask 1046534
  %v597 = vsel %vm596, %v595, %v593
  %s598 = scalar_lea.vmem %s0, 480
  %v599 = vld [vmem:[%s598] sm:$0x80]
  %vm600 = vcmask 1047559
  %v601 = vsel %vm600, %v599, %v597
  %602 = vrot.lane.b32.xlu0 %v601, 96
  %v603 = vpop.permute.xlu0 %602
  %vm604 = vcmask 1048320
  %s605 = scalar_lea.vmem %s1, 72
  %606 = vst.msk [vmem:[%s605] sm:$0xff] %vm604, %v603
  %s607 = scalar_lea.vmem %s0, 279
  %v608 = vld [vmem:[%s607] sm:$0x1]
  %s609 = scalar_lea.vmem %s0, 310
  %v610 = vld [vmem:[%s609] sm:$0x2]
  %vm611 = vcmask 1041409
  %v612 = vsel %vm611, %v610, %v608
  %s613 = scalar_lea.vmem %s0, 341
  %v614 = vld [vmem:[%s613] sm:$0x4]
  %vm615 = vcmask 1042434
  %v616 = vsel %vm615, %v614, %v612
  %s617 = scalar_lea.vmem %s0, 372
  %v618 = vld [vmem:[%s617] sm:$0x8]
  %vm619 = vcmask 1043459
  %v620 = vsel %vm619, %v618, %v616
  %s621 = scalar_lea.vmem %s0, 403
  %v622 = vld [vmem:[%s621] sm:$0x10]
  %vm623 = vcmask 1044484
  %v624 = vsel %vm623, %v622, %v620
  %s625 = scalar_lea.vmem %s0, 434
  %v626 = vld [vmem:[%s625] sm:$0x20]
  %vm627 = vcmask 1045509
  %v628 = vsel %vm627, %v626, %v624
  %s629 = scalar_lea.vmem %s0, 465
  %v630 = vld [vmem:[%s629] sm:$0x40]
  %vm631 = vcmask 1046534
  %v632 = vsel %vm631, %v630, %v628
  %s633 = scalar_lea.vmem %s0, 496
  %v634 = vld [vmem:[%s633] sm:$0x80]
  %vm635 = vcmask 1047559
  %v636 = vsel %vm635, %v634, %v632
  %637 = vrot.lane.b32.xlu0 %v636, 96
  %v638 = vpop.permute.xlu0 %637
  %vm639 = vcmask 1048320
  %s640 = scalar_lea.vmem %s1, 104
  %641 = vst.msk [vmem:[%s640] sm:$0xff] %vm639, %v638
  %s642 = scalar_lea.vmem %s0, 519
  %v643 = vld [vmem:[%s642] sm:$0x1]
  %s644 = scalar_lea.vmem %s0, 550
  %v645 = vld [vmem:[%s644] sm:$0x2]
  %vm646 = vcmask 1041409
  %v647 = vsel %vm646, %v645, %v643
  %s648 = scalar_lea.vmem %s0, 581
  %v649 = vld [vmem:[%s648] sm:$0x4]
  %vm650 = vcmask 1042434
  %v651 = vsel %vm650, %v649, %v647
  %s652 = scalar_lea.vmem %s0, 612
  %v653 = vld [vmem:[%s652] sm:$0x8]
  %vm654 = vcmask 1043459
  %v655 = vsel %vm654, %v653, %v651
  %s656 = scalar_lea.vmem %s0, 643
  %v657 = vld [vmem:[%s656] sm:$0x10]
  %vm658 = vcmask 1044484
  %v659 = vsel %vm658, %v657, %v655
  %s660 = scalar_lea.vmem %s0, 674
  %v661 = vld [vmem:[%s660] sm:$0x20]
  %vm662 = vcmask 1045509
  %v663 = vsel %vm662, %v661, %v659
  %s664 = scalar_lea.vmem %s0, 705
  %v665 = vld [vmem:[%s664] sm:$0x40]
  %vm666 = vcmask 1046534
  %v667 = vsel %vm666, %v665, %v663
  %s668 = scalar_lea.vmem %s0, 736
  %v669 = vld [vmem:[%s668] sm:$0x80]
  %vm670 = vcmask 1047559
  %v671 = vsel %vm670, %v669, %v667
  %672 = vrot.lane.b32.xlu0 %v671, 96
  %v673 = vpop.permute.xlu0 %672
  %vm674 = vcmask 1048320
  %s675 = scalar_lea.vmem %s1, 136
  %676 = vst.msk [vmem:[%s675] sm:$0xff] %vm674, %v673
  %s677 = scalar_lea.vmem %s0, 535
  %v678 = vld [vmem:[%s677] sm:$0x1]
  %s679 = scalar_lea.vmem %s0, 566
  %v680 = vld [vmem:[%s679] sm:$0x2]
  %vm681 = vcmask 1041409
  %v682 = vsel %vm681, %v680, %v678
  %s683 = scalar_lea.vmem %s0, 597
  %v684 = vld [vmem:[%s683] sm:$0x4]
  %vm685 = vcmask 1042434
  %v686 = vsel %vm685, %v684, %v682
  %s687 = scalar_lea.vmem %s0, 628
  %v688 = vld [vmem:[%s687] sm:$0x8]
  %vm689 = vcmask 1043459
  %v690 = vsel %vm689, %v688, %v686
  %s691 = scalar_lea.vmem %s0, 659
  %v692 = vld [vmem:[%s691] sm:$0x10]
  %vm693 = vcmask 1044484
  %v694 = vsel %vm693, %v692, %v690
  %s695 = scalar_lea.vmem %s0, 690
  %v696 = vld [vmem:[%s695] sm:$0x20]
  %vm697 = vcmask 1045509
  %v698 = vsel %vm697, %v696, %v694
  %s699 = scalar_lea.vmem %s0, 721
  %v700 = vld [vmem:[%s699] sm:$0x40]
  %vm701 = vcmask 1046534
  %v702 = vsel %vm701, %v700, %v698
  %s703 = scalar_lea.vmem %s0, 752
  %v704 = vld [vmem:[%s703] sm:$0x80]
  %vm705 = vcmask 1047559
  %v706 = vsel %vm705, %v704, %v702
  %707 = vrot.lane.b32.xlu0 %v706, 96
  %v708 = vpop.permute.xlu0 %707
  %vm709 = vcmask 1048320
  %s710 = scalar_lea.vmem %s1, 168
  %711 = vst.msk [vmem:[%s710] sm:$0xff] %vm709, %v708
  %s712 = scalar_lea.vmem %s0, 775
  %v713 = vld [vmem:[%s712] sm:$0x1]
  %s714 = scalar_lea.vmem %s0, 806
  %v715 = vld [vmem:[%s714] sm:$0x2]
  %vm716 = vcmask 1041409
  %v717 = vsel %vm716, %v715, %v713
  %s718 = scalar_lea.vmem %s0, 837
  %v719 = vld [vmem:[%s718] sm:$0x4]
  %vm720 = vcmask 1042434
  %v721 = vsel %vm720, %v719, %v717
  %s722 = scalar_lea.vmem %s0, 868
  %v723 = vld [vmem:[%s722] sm:$0x8]
  %vm724 = vcmask 1043459
  %v725 = vsel %vm724, %v723, %v721
  %s726 = scalar_lea.vmem %s0, 899
  %v727 = vld [vmem:[%s726] sm:$0x10]
  %vm728 = vcmask 1044484
  %v729 = vsel %vm728, %v727, %v725
  %s730 = scalar_lea.vmem %s0, 930
  %v731 = vld [vmem:[%s730] sm:$0x20]
  %vm732 = vcmask 1045509
  %v733 = vsel %vm732, %v731, %v729
  %s734 = scalar_lea.vmem %s0, 961
  %v735 = vld [vmem:[%s734] sm:$0x40]
  %vm736 = vcmask 1046534
  %v737 = vsel %vm736, %v735, %v733
  %s738 = scalar_lea.vmem %s0, 992
  %v739 = vld [vmem:[%s738] sm:$0x80]
  %vm740 = vcmask 1047559
  %v741 = vsel %vm740, %v739, %v737
  %742 = vrot.lane.b32.xlu0 %v741, 96
  %v743 = vpop.permute.xlu0 %742
  %vm744 = vcmask 1048320
  %s745 = scalar_lea.vmem %s1, 200
  %746 = vst.msk [vmem:[%s745] sm:$0xff] %vm744, %v743
  %s747 = scalar_lea.vmem %s0, 791
  %v748 = vld [vmem:[%s747] sm:$0x1]
  %s749 = scalar_lea.vmem %s0, 822
  %v750 = vld [vmem:[%s749] sm:$0x2]
  %vm751 = vcmask 1041409
  %v752 = vsel %vm751, %v750, %v748
  %s753 = scalar_lea.vmem %s0, 853
  %v754 = vld [vmem:[%s753] sm:$0x4]
  %vm755 = vcmask 1042434
  %v756 = vsel %vm755, %v754, %v752
  %s757 = scalar_lea.vmem %s0, 884
  %v758 = vld [vmem:[%s757] sm:$0x8]
  %vm759 = vcmask 1043459
  %v760 = vsel %vm759, %v758, %v756
  %s761 = scalar_lea.vmem %s0, 915
  %v762 = vld [vmem:[%s761] sm:$0x10]
  %vm763 = vcmask 1044484
  %v764 = vsel %vm763, %v762, %v760
  %s765 = scalar_lea.vmem %s0, 946
  %v766 = vld [vmem:[%s765] sm:$0x20]
  %vm767 = vcmask 1045509
  %v768 = vsel %vm767, %v766, %v764
  %s769 = scalar_lea.vmem %s0, 977
  %v770 = vld [vmem:[%s769] sm:$0x40]
  %vm771 = vcmask 1046534
  %v772 = vsel %vm771, %v770, %v768
  %s773 = scalar_lea.vmem %s0, 1008
  %v774 = vld [vmem:[%s773] sm:$0x80]
  %vm775 = vcmask 1047559
  %v776 = vsel %vm775, %v774, %v772
  %777 = vrot.lane.b32.xlu0 %v776, 96
  %v778 = vpop.permute.xlu0 %777
  %vm779 = vcmask 1048320
  %s780 = scalar_lea.vmem %s1, 232
  %781 = vst.msk [vmem:[%s780] sm:$0xff] %vm779, %v778
  %s782 = scalar_lea.vmem %s0, 11
  %v783 = vld [vmem:[%s782] sm:$0x1]
  %s784 = scalar_lea.vmem %s0, 42
  %v785 = vld [vmem:[%s784] sm:$0x2]
  %vm786 = vcmask 1041409
  %v787 = vsel %vm786, %v785, %v783
  %s788 = scalar_lea.vmem %s0, 73
  %v789 = vld [vmem:[%s788] sm:$0x4]
  %vm790 = vcmask 1042434
  %v791 = vsel %vm790, %v789, %v787
  %s792 = scalar_lea.vmem %s0, 104
  %v793 = vld [vmem:[%s792] sm:$0x8]
  %vm794 = vcmask 1043459
  %v795 = vsel %vm794, %v793, %v791
  %s796 = scalar_lea.vmem %s0, 135
  %v797 = vld [vmem:[%s796] sm:$0x10]
  %vm798 = vcmask 1044484
  %v799 = vsel %vm798, %v797, %v795
  %s800 = scalar_lea.vmem %s0, 166
  %v801 = vld [vmem:[%s800] sm:$0x20]
  %vm802 = vcmask 1045509
  %v803 = vsel %vm802, %v801, %v799
  %s804 = scalar_lea.vmem %s0, 197
  %v805 = vld [vmem:[%s804] sm:$0x40]
  %vm806 = vcmask 1046534
  %v807 = vsel %vm806, %v805, %v803
  %s808 = scalar_lea.vmem %s0, 228
  %v809 = vld [vmem:[%s808] sm:$0x80]
  %vm810 = vcmask 1047559
  %v811 = vsel %vm810, %v809, %v807
  %812 = vrot.lane.b32.xlu0 %v811, 96
  %v813 = vpop.permute.xlu0 %812
  %vm814 = vcmask 1048320
  %s815 = scalar_lea.vmem %s1, 16
  %816 = vst.msk [vmem:[%s815] sm:$0xff] %vm814, %v813
  %s817 = scalar_lea.vmem %s0, 27
  %v818 = vld [vmem:[%s817] sm:$0x1]
  %s819 = scalar_lea.vmem %s0, 58
  %v820 = vld [vmem:[%s819] sm:$0x2]
  %vm821 = vcmask 1041409
  %v822 = vsel %vm821, %v820, %v818
  %s823 = scalar_lea.vmem %s0, 89
  %v824 = vld [vmem:[%s823] sm:$0x4]
  %vm825 = vcmask 1042434
  %v826 = vsel %vm825, %v824, %v822
  %s827 = scalar_lea.vmem %s0, 120
  %v828 = vld [vmem:[%s827] sm:$0x8]
  %vm829 = vcmask 1043459
  %v830 = vsel %vm829, %v828, %v826
  %s831 = scalar_lea.vmem %s0, 151
  %v832 = vld [vmem:[%s831] sm:$0x10]
  %vm833 = vcmask 1044484
  %v834 = vsel %vm833, %v832, %v830
  %s835 = scalar_lea.vmem %s0, 182
  %v836 = vld [vmem:[%s835] sm:$0x20]
  %vm837 = vcmask 1045509
  %v838 = vsel %vm837, %v836, %v834
  %s839 = scalar_lea.vmem %s0, 213
  %v840 = vld [vmem:[%s839] sm:$0x40]
  %vm841 = vcmask 1046534
  %v842 = vsel %vm841, %v840, %v838
  %s843 = scalar_lea.vmem %s0, 244
  %v844 = vld [vmem:[%s843] sm:$0x80]
  %vm845 = vcmask 1047559
  %v846 = vsel %vm845, %v844, %v842
  %847 = vrot.lane.b32.xlu0 %v846, 96
  %v848 = vpop.permute.xlu0 %847
  %vm849 = vcmask 1048320
  %s850 = scalar_lea.vmem %s1, 48
  %851 = vst.msk [vmem:[%s850] sm:$0xff] %vm849, %v848
  %s852 = scalar_lea.vmem %s0, 267
  %v853 = vld [vmem:[%s852] sm:$0x1]
  %s854 = scalar_lea.vmem %s0, 298
  %v855 = vld [vmem:[%s854] sm:$0x2]
  %vm856 = vcmask 1041409
  %v857 = vsel %vm856, %v855, %v853
  %s858 = scalar_lea.vmem %s0, 329
  %v859 = vld [vmem:[%s858] sm:$0x4]
  %vm860 = vcmask 1042434
  %v861 = vsel %vm860, %v859, %v857
  %s862 = scalar_lea.vmem %s0, 360
  %v863 = vld [vmem:[%s862] sm:$0x8]
  %vm864 = vcmask 1043459
  %v865 = vsel %vm864, %v863, %v861
  %s866 = scalar_lea.vmem %s0, 391
  %v867 = vld [vmem:[%s866] sm:$0x10]
  %vm868 = vcmask 1044484
  %v869 = vsel %vm868, %v867, %v865
  %s870 = scalar_lea.vmem %s0, 422
  %v871 = vld [vmem:[%s870] sm:$0x20]
  %vm872 = vcmask 1045509
  %v873 = vsel %vm872, %v871, %v869
  %s874 = scalar_lea.vmem %s0, 453
  %v875 = vld [vmem:[%s874] sm:$0x40]
  %vm876 = vcmask 1046534
  %v877 = vsel %vm876, %v875, %v873
  %s878 = scalar_lea.vmem %s0, 484
  %v879 = vld [vmem:[%s878] sm:$0x80]
  %vm880 = vcmask 1047559
  %v881 = vsel %vm880, %v879, %v877
  %882 = vrot.lane.b32.xlu0 %v881, 96
  %v883 = vpop.permute.xlu0 %882
  %vm884 = vcmask 1048320
  %s885 = scalar_lea.vmem %s1, 80
  %886 = vst.msk [vmem:[%s885] sm:$0xff] %vm884, %v883
  %s887 = scalar_lea.vmem %s0, 283
  %v888 = vld [vmem:[%s887] sm:$0x1]
  %s889 = scalar_lea.vmem %s0, 314
  %v890 = vld [vmem:[%s889] sm:$0x2]
  %vm891 = vcmask 1041409
  %v892 = vsel %vm891, %v890, %v888
  %s893 = scalar_lea.vmem %s0, 345
  %v894 = vld [vmem:[%s893] sm:$0x4]
  %vm895 = vcmask 1042434
  %v896 = vsel %vm895, %v894, %v892
  %s897 = scalar_lea.vmem %s0, 376
  %v898 = vld [vmem:[%s897] sm:$0x8]
  %vm899 = vcmask 1043459
  %v900 = vsel %vm899, %v898, %v896
  %s901 = scalar_lea.vmem %s0, 407
  %v902 = vld [vmem:[%s901] sm:$0x10]
  %vm903 = vcmask 1044484
  %v904 = vsel %vm903, %v902, %v900
  %s905 = scalar_lea.vmem %s0, 438
  %v906 = vld [vmem:[%s905] sm:$0x20]
  %vm907 = vcmask 1045509
  %v908 = vsel %vm907, %v906, %v904
  %s909 = scalar_lea.vmem %s0, 469
  %v910 = vld [vmem:[%s909] sm:$0x40]
  %vm911 = vcmask 1046534
  %v912 = vsel %vm911, %v910, %v908
  %s913 = scalar_lea.vmem %s0, 500
  %v914 = vld [vmem:[%s913] sm:$0x80]
  %vm915 = vcmask 1047559
  %v916 = vsel %vm915, %v914, %v912
  %917 = vrot.lane.b32.xlu0 %v916, 96
  %v918 = vpop.permute.xlu0 %917
  %vm919 = vcmask 1048320
  %s920 = scalar_lea.vmem %s1, 112
  %921 = vst.msk [vmem:[%s920] sm:$0xff] %vm919, %v918
  %s922 = scalar_lea.vmem %s0, 523
  %v923 = vld [vmem:[%s922] sm:$0x1]
  %s924 = scalar_lea.vmem %s0, 554
  %v925 = vld [vmem:[%s924] sm:$0x2]
  %vm926 = vcmask 1041409
  %v927 = vsel %vm926, %v925, %v923
  %s928 = scalar_lea.vmem %s0, 585
  %v929 = vld [vmem:[%s928] sm:$0x4]
  %vm930 = vcmask 1042434
  %v931 = vsel %vm930, %v929, %v927
  %s932 = scalar_lea.vmem %s0, 616
  %v933 = vld [vmem:[%s932] sm:$0x8]
  %vm934 = vcmask 1043459
  %v935 = vsel %vm934, %v933, %v931
  %s936 = scalar_lea.vmem %s0, 647
  %v937 = vld [vmem:[%s936] sm:$0x10]
  %vm938 = vcmask 1044484
  %v939 = vsel %vm938, %v937, %v935
  %s940 = scalar_lea.vmem %s0, 678
  %v941 = vld [vmem:[%s940] sm:$0x20]
  %vm942 = vcmask 1045509
  %v943 = vsel %vm942, %v941, %v939
  %s944 = scalar_lea.vmem %s0, 709
  %v945 = vld [vmem:[%s944] sm:$0x40]
  %vm946 = vcmask 1046534
  %v947 = vsel %vm946, %v945, %v943
  %s948 = scalar_lea.vmem %s0, 740
  %v949 = vld [vmem:[%s948] sm:$0x80]
  %vm950 = vcmask 1047559
  %v951 = vsel %vm950, %v949, %v947
  %952 = vrot.lane.b32.xlu0 %v951, 96
  %v953 = vpop.permute.xlu0 %952
  %vm954 = vcmask 1048320
  %s955 = scalar_lea.vmem %s1, 144
  %956 = vst.msk [vmem:[%s955] sm:$0xff] %vm954, %v953
  %s957 = scalar_lea.vmem %s0, 539
  %v958 = vld [vmem:[%s957] sm:$0x1]
  %s959 = scalar_lea.vmem %s0, 570
  %v960 = vld [vmem:[%s959] sm:$0x2]
  %vm961 = vcmask 1041409
  %v962 = vsel %vm961, %v960, %v958
  %s963 = scalar_lea.vmem %s0, 601
  %v964 = vld [vmem:[%s963] sm:$0x4]
  %vm965 = vcmask 1042434
  %v966 = vsel %vm965, %v964, %v962
  %s967 = scalar_lea.vmem %s0, 632
  %v968 = vld [vmem:[%s967] sm:$0x8]
  %vm969 = vcmask 1043459
  %v970 = vsel %vm969, %v968, %v966
  %s971 = scalar_lea.vmem %s0, 663
  %v972 = vld [vmem:[%s971] sm:$0x10]
  %vm973 = vcmask 1044484
  %v974 = vsel %vm973, %v972, %v970
  %s975 = scalar_lea.vmem %s0, 694
  %v976 = vld [vmem:[%s975] sm:$0x20]
  %vm977 = vcmask 1045509
  %v978 = vsel %vm977, %v976, %v974
  %s979 = scalar_lea.vmem %s0, 725
  %v980 = vld [vmem:[%s979] sm:$0x40]
  %vm981 = vcmask 1046534
  %v982 = vsel %vm981, %v980, %v978
  %s983 = scalar_lea.vmem %s0, 756
  %v984 = vld [vmem:[%s983] sm:$0x80]
  %vm985 = vcmask 1047559
  %v986 = vsel %vm985, %v984, %v982
  %987 = vrot.lane.b32.xlu0 %v986, 96
  %v988 = vpop.permute.xlu0 %987
  %vm989 = vcmask 1048320
  %s990 = scalar_lea.vmem %s1, 176
  %991 = vst.msk [vmem:[%s990] sm:$0xff] %vm989, %v988
  %s992 = scalar_lea.vmem %s0, 779
  %v993 = vld [vmem:[%s992] sm:$0x1]
  %s994 = scalar_lea.vmem %s0, 810
  %v995 = vld [vmem:[%s994] sm:$0x2]
  %vm996 = vcmask 1041409
  %v997 = vsel %vm996, %v995, %v993
  %s998 = scalar_lea.vmem %s0, 841
  %v999 = vld [vmem:[%s998] sm:$0x4]
  %vm1000 = vcmask 1042434
  %v1001 = vsel %vm1000, %v999, %v997
  %s1002 = scalar_lea.vmem %s0, 872
  %v1003 = vld [vmem:[%s1002] sm:$0x8]
  %vm1004 = vcmask 1043459
  %v1005 = vsel %vm1004, %v1003, %v1001
  %s1006 = scalar_lea.vmem %s0, 903
  %v1007 = vld [vmem:[%s1006] sm:$0x10]
  %vm1008 = vcmask 1044484
  %v1009 = vsel %vm1008, %v1007, %v1005
  %s1010 = scalar_lea.vmem %s0, 934
  %v1011 = vld [vmem:[%s1010] sm:$0x20]
  %vm1012 = vcmask 1045509
  %v1013 = vsel %vm1012, %v1011, %v1009
  %s1014 = scalar_lea.vmem %s0, 965
  %v1015 = vld [vmem:[%s1014] sm:$0x40]
  %vm1016 = vcmask 1046534
  %v1017 = vsel %vm1016, %v1015, %v1013
  %s1018 = scalar_lea.vmem %s0, 996
  %v1019 = vld [vmem:[%s1018] sm:$0x80]
  %vm1020 = vcmask 1047559
  %v1021 = vsel %vm1020, %v1019, %v1017
  %1022 = vrot.lane.b32.xlu0 %v1021, 96
  %v1023 = vpop.permute.xlu0 %1022
  %vm1024 = vcmask 1048320
  %s1025 = scalar_lea.vmem %s1, 208
  %1026 = vst.msk [vmem:[%s1025] sm:$0xff] %vm1024, %v1023
  %s1027 = scalar_lea.vmem %s0, 795
  %v1028 = vld [vmem:[%s1027] sm:$0x1]
  %s1029 = scalar_lea.vmem %s0, 826
  %v1030 = vld [vmem:[%s1029] sm:$0x2]
  %vm1031 = vcmask 1041409
  %v1032 = vsel %vm1031, %v1030, %v1028
  %s1033 = scalar_lea.vmem %s0, 857
  %v1034 = vld [vmem:[%s1033] sm:$0x4]
  %vm1035 = vcmask 1042434
  %v1036 = vsel %vm1035, %v1034, %v1032
  %s1037 = scalar_lea.vmem %s0, 888
  %v1038 = vld [vmem:[%s1037] sm:$0x8]
  %vm1039 = vcmask 1043459
  %v1040 = vsel %vm1039, %v1038, %v1036
  %s1041 = scalar_lea.vmem %s0, 919
  %v1042 = vld [vmem:[%s1041] sm:$0x10]
  %vm1043 = vcmask 1044484
  %v1044 = vsel %vm1043, %v1042, %v1040
  %s1045 = scalar_lea.vmem %s0, 950
  %v1046 = vld [vmem:[%s1045] sm:$0x20]
  %vm1047 = vcmask 1045509
  %v1048 = vsel %vm1047, %v1046, %v1044
  %s1049 = scalar_lea.vmem %s0, 981
  %v1050 = vld [vmem:[%s1049] sm:$0x40]
  %vm1051 = vcmask 1046534
  %v1052 = vsel %vm1051, %v1050, %v1048
  %s1053 = scalar_lea.vmem %s0, 1012
  %v1054 = vld [vmem:[%s1053] sm:$0x80]
  %vm1055 = vcmask 1047559
  %v1056 = vsel %vm1055, %v1054, %v1052
  %1057 = vrot.lane.b32.xlu0 %v1056, 96
  %v1058 = vpop.permute.xlu0 %1057
  %vm1059 = vcmask 1048320
  %s1060 = scalar_lea.vmem %s1, 240
  %1061 = vst.msk [vmem:[%s1060] sm:$0xff] %vm1059, %v1058
  %s1062 = scalar_lea.vmem %s0, 15
  %v1063 = vld [vmem:[%s1062] sm:$0x1]
  %s1064 = scalar_lea.vmem %s0, 46
  %v1065 = vld [vmem:[%s1064] sm:$0x2]
  %vm1066 = vcmask 1041409
  %v1067 = vsel %vm1066, %v1065, %v1063
  %s1068 = scalar_lea.vmem %s0, 77
  %v1069 = vld [vmem:[%s1068] sm:$0x4]
  %vm1070 = vcmask 1042434
  %v1071 = vsel %vm1070, %v1069, %v1067
  %s1072 = scalar_lea.vmem %s0, 108
  %v1073 = vld [vmem:[%s1072] sm:$0x8]
  %vm1074 = vcmask 1043459
  %v1075 = vsel %vm1074, %v1073, %v1071
  %s1076 = scalar_lea.vmem %s0, 139
  %v1077 = vld [vmem:[%s1076] sm:$0x10]
  %vm1078 = vcmask 1044484
  %v1079 = vsel %vm1078, %v1077, %v1075
  %s1080 = scalar_lea.vmem %s0, 170
  %v1081 = vld [vmem:[%s1080] sm:$0x20]
  %vm1082 = vcmask 1045509
  %v1083 = vsel %vm1082, %v1081, %v1079
  %s1084 = scalar_lea.vmem %s0, 201
  %v1085 = vld [vmem:[%s1084] sm:$0x40]
  %vm1086 = vcmask 1046534
  %v1087 = vsel %vm1086, %v1085, %v1083
  %s1088 = scalar_lea.vmem %s0, 232
  %v1089 = vld [vmem:[%s1088] sm:$0x80]
  %vm1090 = vcmask 1047559
  %v1091 = vsel %vm1090, %v1089, %v1087
  %1092 = vrot.lane.b32.xlu0 %v1091, 96
  %v1093 = vpop.permute.xlu0 %1092
  %vm1094 = vcmask 1048320
  %s1095 = scalar_lea.vmem %s1, 24
  %1096 = vst.msk [vmem:[%s1095] sm:$0xff] %vm1094, %v1093
  %s1097 = scalar_lea.vmem %s0, 31
  %v1098 = vld [vmem:[%s1097] sm:$0x1]
  %s1099 = scalar_lea.vmem %s0, 62
  %v1100 = vld [vmem:[%s1099] sm:$0x2]
  %vm1101 = vcmask 1041409
  %v1102 = vsel %vm1101, %v1100, %v1098
  %s1103 = scalar_lea.vmem %s0, 93
  %v1104 = vld [vmem:[%s1103] sm:$0x4]
  %vm1105 = vcmask 1042434
  %v1106 = vsel %vm1105, %v1104, %v1102
  %s1107 = scalar_lea.vmem %s0, 124
  %v1108 = vld [vmem:[%s1107] sm:$0x8]
  %vm1109 = vcmask 1043459
  %v1110 = vsel %vm1109, %v1108, %v1106
  %s1111 = scalar_lea.vmem %s0, 155
  %v1112 = vld [vmem:[%s1111] sm:$0x10]
  %vm1113 = vcmask 1044484
  %v1114 = vsel %vm1113, %v1112, %v1110
  %s1115 = scalar_lea.vmem %s0, 186
  %v1116 = vld [vmem:[%s1115] sm:$0x20]
  %vm1117 = vcmask 1045509
  %v1118 = vsel %vm1117, %v1116, %v1114
  %s1119 = scalar_lea.vmem %s0, 217
  %v1120 = vld [vmem:[%s1119] sm:$0x40]
  %vm1121 = vcmask 1046534
  %v1122 = vsel %vm1121, %v1120, %v1118
  %s1123 = scalar_lea.vmem %s0, 248
  %v1124 = vld [vmem:[%s1123] sm:$0x80]
  %vm1125 = vcmask 1047559
  %v1126 = vsel %vm1125, %v1124, %v1122
  %1127 = vrot.lane.b32.xlu0 %v1126, 96
  %v1128 = vpop.permute.xlu0 %1127
  %vm1129 = vcmask 1048320
  %s1130 = scalar_lea.vmem %s1, 56
  %1131 = vst.msk [vmem:[%s1130] sm:$0xff] %vm1129, %v1128
  %s1132 = scalar_lea.vmem %s0, 271
  %v1133 = vld [vmem:[%s1132] sm:$0x1]
  %s1134 = scalar_lea.vmem %s0, 302
  %v1135 = vld [vmem:[%s1134] sm:$0x2]
  %vm1136 = vcmask 1041409
  %v1137 = vsel %vm1136, %v1135, %v1133
  %s1138 = scalar_lea.vmem %s0, 333
  %v1139 = vld [vmem:[%s1138] sm:$0x4]
  %vm1140 = vcmask 1042434
  %v1141 = vsel %vm1140, %v1139, %v1137
  %s1142 = scalar_lea.vmem %s0, 364
  %v1143 = vld [vmem:[%s1142] sm:$0x8]
  %vm1144 = vcmask 1043459
  %v1145 = vsel %vm1144, %v1143, %v1141
  %s1146 = scalar_lea.vmem %s0, 395
  %v1147 = vld [vmem:[%s1146] sm:$0x10]
  %vm1148 = vcmask 1044484
  %v1149 = vsel %vm1148, %v1147, %v1145
  %s1150 = scalar_lea.vmem %s0, 426
  %v1151 = vld [vmem:[%s1150] sm:$0x20]
  %vm1152 = vcmask 1045509
  %v1153 = vsel %vm1152, %v1151, %v1149
  %s1154 = scalar_lea.vmem %s0, 457
  %v1155 = vld [vmem:[%s1154] sm:$0x40]
  %vm1156 = vcmask 1046534
  %v1157 = vsel %vm1156, %v1155, %v1153
  %s1158 = scalar_lea.vmem %s0, 488
  %v1159 = vld [vmem:[%s1158] sm:$0x80]
  %vm1160 = vcmask 1047559
  %v1161 = vsel %vm1160, %v1159, %v1157
  %1162 = vrot.lane.b32.xlu0 %v1161, 96
  %v1163 = vpop.permute.xlu0 %1162
  %vm1164 = vcmask 1048320
  %s1165 = scalar_lea.vmem %s1, 88
  %1166 = vst.msk [vmem:[%s1165] sm:$0xff] %vm1164, %v1163
  %s1167 = scalar_lea.vmem %s0, 287
  %v1168 = vld [vmem:[%s1167] sm:$0x1]
  %s1169 = scalar_lea.vmem %s0, 318
  %v1170 = vld [vmem:[%s1169] sm:$0x2]
  %vm1171 = vcmask 1041409
  %v1172 = vsel %vm1171, %v1170, %v1168
  %s1173 = scalar_lea.vmem %s0, 349
  %v1174 = vld [vmem:[%s1173] sm:$0x4]
  %vm1175 = vcmask 1042434
  %v1176 = vsel %vm1175, %v1174, %v1172
  %s1177 = scalar_lea.vmem %s0, 380
  %v1178 = vld [vmem:[%s1177] sm:$0x8]
  %vm1179 = vcmask 1043459
  %v1180 = vsel %vm1179, %v1178, %v1176
  %s1181 = scalar_lea.vmem %s0, 411
  %v1182 = vld [vmem:[%s1181] sm:$0x10]
  %vm1183 = vcmask 1044484
  %v1184 = vsel %vm1183, %v1182, %v1180
  %s1185 = scalar_lea.vmem %s0, 442
  %v1186 = vld [vmem:[%s1185] sm:$0x20]
  %vm1187 = vcmask 1045509
  %v1188 = vsel %vm1187, %v1186, %v1184
  %s1189 = scalar_lea.vmem %s0, 473
  %v1190 = vld [vmem:[%s1189] sm:$0x40]
  %vm1191 = vcmask 1046534
  %v1192 = vsel %vm1191, %v1190, %v1188
  %s1193 = scalar_lea.vmem %s0, 504
  %v1194 = vld [vmem:[%s1193] sm:$0x80]
  %vm1195 = vcmask 1047559
  %v1196 = vsel %vm1195, %v1194, %v1192
  %1197 = vrot.lane.b32.xlu0 %v1196, 96
  %v1198 = vpop.permute.xlu0 %1197
  %vm1199 = vcmask 1048320
  %s1200 = scalar_lea.vmem %s1, 120
  %1201 = vst.msk [vmem:[%s1200] sm:$0xff] %vm1199, %v1198
  %s1202 = scalar_lea.vmem %s0, 527
  %v1203 = vld [vmem:[%s1202] sm:$0x1]
  %s1204 = scalar_lea.vmem %s0, 558
  %v1205 = vld [vmem:[%s1204] sm:$0x2]
  %vm1206 = vcmask 1041409
  %v1207 = vsel %vm1206, %v1205, %v1203
  %s1208 = scalar_lea.vmem %s0, 589
  %v1209 = vld [vmem:[%s1208] sm:$0x4]
  %vm1210 = vcmask 1042434
  %v1211 = vsel %vm1210, %v1209, %v1207
  %s1212 = scalar_lea.vmem %s0, 620
  %v1213 = vld [vmem:[%s1212] sm:$0x8]
  %vm1214 = vcmask 1043459
  %v1215 = vsel %vm1214, %v1213, %v1211
  %s1216 = scalar_lea.vmem %s0, 651
  %v1217 = vld [vmem:[%s1216] sm:$0x10]
  %vm1218 = vcmask 1044484
  %v1219 = vsel %vm1218, %v1217, %v1215
  %s1220 = scalar_lea.vmem %s0, 682
  %v1221 = vld [vmem:[%s1220] sm:$0x20]
  %vm1222 = vcmask 1045509
  %v1223 = vsel %vm1222, %v1221, %v1219
  %s1224 = scalar_lea.vmem %s0, 713
  %v1225 = vld [vmem:[%s1224] sm:$0x40]
  %vm1226 = vcmask 1046534
  %v1227 = vsel %vm1226, %v1225, %v1223
  %s1228 = scalar_lea.vmem %s0, 744
  %v1229 = vld [vmem:[%s1228] sm:$0x80]
  %vm1230 = vcmask 1047559
  %v1231 = vsel %vm1230, %v1229, %v1227
  %1232 = vrot.lane.b32.xlu0 %v1231, 96
  %v1233 = vpop.permute.xlu0 %1232
  %vm1234 = vcmask 1048320
  %s1235 = scalar_lea.vmem %s1, 152
  %1236 = vst.msk [vmem:[%s1235] sm:$0xff] %vm1234, %v1233
  %s1237 = scalar_lea.vmem %s0, 543
  %v1238 = vld [vmem:[%s1237] sm:$0x1]
  %s1239 = scalar_lea.vmem %s0, 574
  %v1240 = vld [vmem:[%s1239] sm:$0x2]
  %vm1241 = vcmask 1041409
  %v1242 = vsel %vm1241, %v1240, %v1238
  %s1243 = scalar_lea.vmem %s0, 605
  %v1244 = vld [vmem:[%s1243] sm:$0x4]
  %vm1245 = vcmask 1042434
  %v1246 = vsel %vm1245, %v1244, %v1242
  %s1247 = scalar_lea.vmem %s0, 636
  %v1248 = vld [vmem:[%s1247] sm:$0x8]
  %vm1249 = vcmask 1043459
  %v1250 = vsel %vm1249, %v1248, %v1246
  %s1251 = scalar_lea.vmem %s0, 667
  %v1252 = vld [vmem:[%s1251] sm:$0x10]
  %vm1253 = vcmask 1044484
  %v1254 = vsel %vm1253, %v1252, %v1250
  %s1255 = scalar_lea.vmem %s0, 698
  %v1256 = vld [vmem:[%s1255] sm:$0x20]
  %vm1257 = vcmask 1045509
  %v1258 = vsel %vm1257, %v1256, %v1254
  %s1259 = scalar_lea.vmem %s0, 729
  %v1260 = vld [vmem:[%s1259] sm:$0x40]
  %vm1261 = vcmask 1046534
  %v1262 = vsel %vm1261, %v1260, %v1258
  %s1263 = scalar_lea.vmem %s0, 760
  %v1264 = vld [vmem:[%s1263] sm:$0x80]
  %vm1265 = vcmask 1047559
  %v1266 = vsel %vm1265, %v1264, %v1262
  %1267 = vrot.lane.b32.xlu0 %v1266, 96
  %v1268 = vpop.permute.xlu0 %1267
  %vm1269 = vcmask 1048320
  %s1270 = scalar_lea.vmem %s1, 184
  %1271 = vst.msk [vmem:[%s1270] sm:$0xff] %vm1269, %v1268
  %s1272 = scalar_lea.vmem %s0, 783
  %v1273 = vld [vmem:[%s1272] sm:$0x1]
  %s1274 = scalar_lea.vmem %s0, 814
  %v1275 = vld [vmem:[%s1274] sm:$0x2]
  %vm1276 = vcmask 1041409
  %v1277 = vsel %vm1276, %v1275, %v1273
  %s1278 = scalar_lea.vmem %s0, 845
  %v1279 = vld [vmem:[%s1278] sm:$0x4]
  %vm1280 = vcmask 1042434
  %v1281 = vsel %vm1280, %v1279, %v1277
  %s1282 = scalar_lea.vmem %s0, 876
  %v1283 = vld [vmem:[%s1282] sm:$0x8]
  %vm1284 = vcmask 1043459
  %v1285 = vsel %vm1284, %v1283, %v1281
  %s1286 = scalar_lea.vmem %s0, 907
  %v1287 = vld [vmem:[%s1286] sm:$0x10]
  %vm1288 = vcmask 1044484
  %v1289 = vsel %vm1288, %v1287, %v1285
  %s1290 = scalar_lea.vmem %s0, 938
  %v1291 = vld [vmem:[%s1290] sm:$0x20]
  %vm1292 = vcmask 1045509
  %v1293 = vsel %vm1292, %v1291, %v1289
  %s1294 = scalar_lea.vmem %s0, 969
  %v1295 = vld [vmem:[%s1294] sm:$0x40]
  %vm1296 = vcmask 1046534
  %v1297 = vsel %vm1296, %v1295, %v1293
  %s1298 = scalar_lea.vmem %s0, 1000
  %v1299 = vld [vmem:[%s1298] sm:$0x80]
  %vm1300 = vcmask 1047559
  %v1301 = vsel %vm1300, %v1299, %v1297
  %1302 = vrot.lane.b32.xlu0 %v1301, 96
  %v1303 = vpop.permute.xlu0 %1302
  %vm1304 = vcmask 1048320
  %s1305 = scalar_lea.vmem %s1, 216
  %1306 = vst.msk [vmem:[%s1305] sm:$0xff] %vm1304, %v1303
  %s1307 = scalar_lea.vmem %s0, 799
  %v1308 = vld [vmem:[%s1307] sm:$0x1]
  %s1309 = scalar_lea.vmem %s0, 830
  %v1310 = vld [vmem:[%s1309] sm:$0x2]
  %vm1311 = vcmask 1041409
  %v1312 = vsel %vm1311, %v1310, %v1308
  %s1313 = scalar_lea.vmem %s0, 861
  %v1314 = vld [vmem:[%s1313] sm:$0x4]
  %vm1315 = vcmask 1042434
  %v1316 = vsel %vm1315, %v1314, %v1312
  %s1317 = scalar_lea.vmem %s0, 892
  %v1318 = vld [vmem:[%s1317] sm:$0x8]
  %vm1319 = vcmask 1043459
  %v1320 = vsel %vm1319, %v1318, %v1316
  %s1321 = scalar_lea.vmem %s0, 923
  %v1322 = vld [vmem:[%s1321] sm:$0x10]
  %vm1323 = vcmask 1044484
  %v1324 = vsel %vm1323, %v1322, %v1320
  %s1325 = scalar_lea.vmem %s0, 954
  %v1326 = vld [vmem:[%s1325] sm:$0x20]
  %vm1327 = vcmask 1045509
  %v1328 = vsel %vm1327, %v1326, %v1324
  %s1329 = scalar_lea.vmem %s0, 985
  %v1330 = vld [vmem:[%s1329] sm:$0x40]
  %vm1331 = vcmask 1046534
  %v1332 = vsel %vm1331, %v1330, %v1328
  %s1333 = scalar_lea.vmem %s0, 1016
  %v1334 = vld [vmem:[%s1333] sm:$0x80]
  %vm1335 = vcmask 1047559
  %v1336 = vsel %vm1335, %v1334, %v1332
  %1337 = vrot.lane.b32.xlu0 %v1336, 96
  %v1338 = vpop.permute.xlu0 %1337
  %vm1339 = vcmask 1048320
  %s1340 = scalar_lea.vmem %s1, 248
  %1341 = vst.msk [vmem:[%s1340] sm:$0xff] %vm1339, %v1338
  %s1342 = scalar_lea.vmem %s0, 2
  %v1343 = vld [vmem:[%s1342] sm:$0x1]
  %s1344 = scalar_lea.vmem %s0, 33
  %v1345 = vld [vmem:[%s1344] sm:$0x2]
  %vm1346 = vcmask 1041409
  %v1347 = vsel %vm1346, %v1345, %v1343
  %s1348 = scalar_lea.vmem %s0, 64
  %v1349 = vld [vmem:[%s1348] sm:$0x4]
  %vm1350 = vcmask 1042434
  %v1351 = vsel %vm1350, %v1349, %v1347
  %s1352 = scalar_lea.vmem %s0, 95
  %v1353 = vld [vmem:[%s1352] sm:$0x8]
  %vm1354 = vcmask 1043459
  %v1355 = vsel %vm1354, %v1353, %v1351
  %s1356 = scalar_lea.vmem %s0, 126
  %v1357 = vld [vmem:[%s1356] sm:$0x10]
  %vm1358 = vcmask 1044484
  %v1359 = vsel %vm1358, %v1357, %v1355
  %s1360 = scalar_lea.vmem %s0, 157
  %v1361 = vld [vmem:[%s1360] sm:$0x20]
  %vm1362 = vcmask 1045509
  %v1363 = vsel %vm1362, %v1361, %v1359
  %s1364 = scalar_lea.vmem %s0, 188
  %v1365 = vld [vmem:[%s1364] sm:$0x40]
  %vm1366 = vcmask 1046534
  %v1367 = vsel %vm1366, %v1365, %v1363
  %s1368 = scalar_lea.vmem %s0, 219
  %v1369 = vld [vmem:[%s1368] sm:$0x80]
  %vm1370 = vcmask 1047559
  %v1371 = vsel %vm1370, %v1369, %v1367
  %1372 = vrot.lane.b32.xlu0 %v1371, 64
  %v1373 = vpop.permute.xlu0 %1372
  %vm1374 = vcmask 785920
  %1375 = vst.msk [vmem:[%s1] sm:$0xff] %vm1374, %v1373
  %s1376 = scalar_lea.vmem %s0, 18
  %v1377 = vld [vmem:[%s1376] sm:$0x1]
  %s1378 = scalar_lea.vmem %s0, 49
  %v1379 = vld [vmem:[%s1378] sm:$0x2]
  %vm1380 = vcmask 1041409
  %v1381 = vsel %vm1380, %v1379, %v1377
  %s1382 = scalar_lea.vmem %s0, 80
  %v1383 = vld [vmem:[%s1382] sm:$0x4]
  %vm1384 = vcmask 1042434
  %v1385 = vsel %vm1384, %v1383, %v1381
  %s1386 = scalar_lea.vmem %s0, 111
  %v1387 = vld [vmem:[%s1386] sm:$0x8]
  %vm1388 = vcmask 1043459
  %v1389 = vsel %vm1388, %v1387, %v1385
  %s1390 = scalar_lea.vmem %s0, 142
  %v1391 = vld [vmem:[%s1390] sm:$0x10]
  %vm1392 = vcmask 1044484
  %v1393 = vsel %vm1392, %v1391, %v1389
  %s1394 = scalar_lea.vmem %s0, 173
  %v1395 = vld [vmem:[%s1394] sm:$0x20]
  %vm1396 = vcmask 1045509
  %v1397 = vsel %vm1396, %v1395, %v1393
  %s1398 = scalar_lea.vmem %s0, 204
  %v1399 = vld [vmem:[%s1398] sm:$0x40]
  %vm1400 = vcmask 1046534
  %v1401 = vsel %vm1400, %v1399, %v1397
  %s1402 = scalar_lea.vmem %s0, 235
  %v1403 = vld [vmem:[%s1402] sm:$0x80]
  %vm1404 = vcmask 1047559
  %v1405 = vsel %vm1404, %v1403, %v1401
  %1406 = vrot.lane.b32.xlu0 %v1405, 64
  %v1407 = vpop.permute.xlu0 %1406
  %vm1408 = vcmask 785920
  %s1409 = scalar_lea.vmem %s1, 32
  %1410 = vst.msk [vmem:[%s1409] sm:$0xff] %vm1408, %v1407
  %s1411 = scalar_lea.vmem %s0, 258
  %v1412 = vld [vmem:[%s1411] sm:$0x1]
  %s1413 = scalar_lea.vmem %s0, 289
  %v1414 = vld [vmem:[%s1413] sm:$0x2]
  %vm1415 = vcmask 1041409
  %v1416 = vsel %vm1415, %v1414, %v1412
  %s1417 = scalar_lea.vmem %s0, 320
  %v1418 = vld [vmem:[%s1417] sm:$0x4]
  %vm1419 = vcmask 1042434
  %v1420 = vsel %vm1419, %v1418, %v1416
  %s1421 = scalar_lea.vmem %s0, 351
  %v1422 = vld [vmem:[%s1421] sm:$0x8]
  %vm1423 = vcmask 1043459
  %v1424 = vsel %vm1423, %v1422, %v1420
  %s1425 = scalar_lea.vmem %s0, 382
  %v1426 = vld [vmem:[%s1425] sm:$0x10]
  %vm1427 = vcmask 1044484
  %v1428 = vsel %vm1427, %v1426, %v1424
  %s1429 = scalar_lea.vmem %s0, 413
  %v1430 = vld [vmem:[%s1429] sm:$0x20]
  %vm1431 = vcmask 1045509
  %v1432 = vsel %vm1431, %v1430, %v1428
  %s1433 = scalar_lea.vmem %s0, 444
  %v1434 = vld [vmem:[%s1433] sm:$0x40]
  %vm1435 = vcmask 1046534
  %v1436 = vsel %vm1435, %v1434, %v1432
  %s1437 = scalar_lea.vmem %s0, 475
  %v1438 = vld [vmem:[%s1437] sm:$0x80]
  %vm1439 = vcmask 1047559
  %v1440 = vsel %vm1439, %v1438, %v1436
  %1441 = vrot.lane.b32.xlu0 %v1440, 64
  %v1442 = vpop.permute.xlu0 %1441
  %vm1443 = vcmask 785920
  %s1444 = scalar_lea.vmem %s1, 64
  %1445 = vst.msk [vmem:[%s1444] sm:$0xff] %vm1443, %v1442
  %s1446 = scalar_lea.vmem %s0, 274
  %v1447 = vld [vmem:[%s1446] sm:$0x1]
  %s1448 = scalar_lea.vmem %s0, 305
  %v1449 = vld [vmem:[%s1448] sm:$0x2]
  %vm1450 = vcmask 1041409
  %v1451 = vsel %vm1450, %v1449, %v1447
  %s1452 = scalar_lea.vmem %s0, 336
  %v1453 = vld [vmem:[%s1452] sm:$0x4]
  %vm1454 = vcmask 1042434
  %v1455 = vsel %vm1454, %v1453, %v1451
  %s1456 = scalar_lea.vmem %s0, 367
  %v1457 = vld [vmem:[%s1456] sm:$0x8]
  %vm1458 = vcmask 1043459
  %v1459 = vsel %vm1458, %v1457, %v1455
  %s1460 = scalar_lea.vmem %s0, 398
  %v1461 = vld [vmem:[%s1460] sm:$0x10]
  %vm1462 = vcmask 1044484
  %v1463 = vsel %vm1462, %v1461, %v1459
  %s1464 = scalar_lea.vmem %s0, 429
  %v1465 = vld [vmem:[%s1464] sm:$0x20]
  %vm1466 = vcmask 1045509
  %v1467 = vsel %vm1466, %v1465, %v1463
  %s1468 = scalar_lea.vmem %s0, 460
  %v1469 = vld [vmem:[%s1468] sm:$0x40]
  %vm1470 = vcmask 1046534
  %v1471 = vsel %vm1470, %v1469, %v1467
  %s1472 = scalar_lea.vmem %s0, 491
  %v1473 = vld [vmem:[%s1472] sm:$0x80]
  %vm1474 = vcmask 1047559
  %v1475 = vsel %vm1474, %v1473, %v1471
  %1476 = vrot.lane.b32.xlu0 %v1475, 64
  %v1477 = vpop.permute.xlu0 %1476
  %vm1478 = vcmask 785920
  %s1479 = scalar_lea.vmem %s1, 96
  %1480 = vst.msk [vmem:[%s1479] sm:$0xff] %vm1478, %v1477
  %s1481 = scalar_lea.vmem %s0, 514
  %v1482 = vld [vmem:[%s1481] sm:$0x1]
  %s1483 = scalar_lea.vmem %s0, 545
  %v1484 = vld [vmem:[%s1483] sm:$0x2]
  %vm1485 = vcmask 1041409
  %v1486 = vsel %vm1485, %v1484, %v1482
  %s1487 = scalar_lea.vmem %s0, 576
  %v1488 = vld [vmem:[%s1487] sm:$0x4]
  %vm1489 = vcmask 1042434
  %v1490 = vsel %vm1489, %v1488, %v1486
  %s1491 = scalar_lea.vmem %s0, 607
  %v1492 = vld [vmem:[%s1491] sm:$0x8]
  %vm1493 = vcmask 1043459
  %v1494 = vsel %vm1493, %v1492, %v1490
  %s1495 = scalar_lea.vmem %s0, 638
  %v1496 = vld [vmem:[%s1495] sm:$0x10]
  %vm1497 = vcmask 1044484
  %v1498 = vsel %vm1497, %v1496, %v1494
  %s1499 = scalar_lea.vmem %s0, 669
  %v1500 = vld [vmem:[%s1499] sm:$0x20]
  %vm1501 = vcmask 1045509
  %v1502 = vsel %vm1501, %v1500, %v1498
  %s1503 = scalar_lea.vmem %s0, 700
  %v1504 = vld [vmem:[%s1503] sm:$0x40]
  %vm1505 = vcmask 1046534
  %v1506 = vsel %vm1505, %v1504, %v1502
  %s1507 = scalar_lea.vmem %s0, 731
  %v1508 = vld [vmem:[%s1507] sm:$0x80]
  %vm1509 = vcmask 1047559
  %v1510 = vsel %vm1509, %v1508, %v1506
  %1511 = vrot.lane.b32.xlu0 %v1510, 64
  %v1512 = vpop.permute.xlu0 %1511
  %vm1513 = vcmask 785920
  %s1514 = scalar_lea.vmem %s1, 128
  %1515 = vst.msk [vmem:[%s1514] sm:$0xff] %vm1513, %v1512
  %s1516 = scalar_lea.vmem %s0, 530
  %v1517 = vld [vmem:[%s1516] sm:$0x1]
  %s1518 = scalar_lea.vmem %s0, 561
  %v1519 = vld [vmem:[%s1518] sm:$0x2]
  %vm1520 = vcmask 1041409
  %v1521 = vsel %vm1520, %v1519, %v1517
  %s1522 = scalar_lea.vmem %s0, 592
  %v1523 = vld [vmem:[%s1522] sm:$0x4]
  %vm1524 = vcmask 1042434
  %v1525 = vsel %vm1524, %v1523, %v1521
  %s1526 = scalar_lea.vmem %s0, 623
  %v1527 = vld [vmem:[%s1526] sm:$0x8]
  %vm1528 = vcmask 1043459
  %v1529 = vsel %vm1528, %v1527, %v1525
  %s1530 = scalar_lea.vmem %s0, 654
  %v1531 = vld [vmem:[%s1530] sm:$0x10]
  %vm1532 = vcmask 1044484
  %v1533 = vsel %vm1532, %v1531, %v1529
  %s1534 = scalar_lea.vmem %s0, 685
  %v1535 = vld [vmem:[%s1534] sm:$0x20]
  %vm1536 = vcmask 1045509
  %v1537 = vsel %vm1536, %v1535, %v1533
  %s1538 = scalar_lea.vmem %s0, 716
  %v1539 = vld [vmem:[%s1538] sm:$0x40]
  %vm1540 = vcmask 1046534
  %v1541 = vsel %vm1540, %v1539, %v1537
  %s1542 = scalar_lea.vmem %s0, 747
  %v1543 = vld [vmem:[%s1542] sm:$0x80]
  %vm1544 = vcmask 1047559
  %v1545 = vsel %vm1544, %v1543, %v1541
  %1546 = vrot.lane.b32.xlu0 %v1545, 64
  %v1547 = vpop.permute.xlu0 %1546
  %vm1548 = vcmask 785920
  %s1549 = scalar_lea.vmem %s1, 160
  %1550 = vst.msk [vmem:[%s1549] sm:$0xff] %vm1548, %v1547
  %s1551 = scalar_lea.vmem %s0, 770
  %v1552 = vld [vmem:[%s1551] sm:$0x1]
  %s1553 = scalar_lea.vmem %s0, 801
  %v1554 = vld [vmem:[%s1553] sm:$0x2]
  %vm1555 = vcmask 1041409
  %v1556 = vsel %vm1555, %v1554, %v1552
  %s1557 = scalar_lea.vmem %s0, 832
  %v1558 = vld [vmem:[%s1557] sm:$0x4]
  %vm1559 = vcmask 1042434
  %v1560 = vsel %vm1559, %v1558, %v1556
  %s1561 = scalar_lea.vmem %s0, 863
  %v1562 = vld [vmem:[%s1561] sm:$0x8]
  %vm1563 = vcmask 1043459
  %v1564 = vsel %vm1563, %v1562, %v1560
  %s1565 = scalar_lea.vmem %s0, 894
  %v1566 = vld [vmem:[%s1565] sm:$0x10]
  %vm1567 = vcmask 1044484
  %v1568 = vsel %vm1567, %v1566, %v1564
  %s1569 = scalar_lea.vmem %s0, 925
  %v1570 = vld [vmem:[%s1569] sm:$0x20]
  %vm1571 = vcmask 1045509
  %v1572 = vsel %vm1571, %v1570, %v1568
  %s1573 = scalar_lea.vmem %s0, 956
  %v1574 = vld [vmem:[%s1573] sm:$0x40]
  %vm1575 = vcmask 1046534
  %v1576 = vsel %vm1575, %v1574, %v1572
  %s1577 = scalar_lea.vmem %s0, 987
  %v1578 = vld [vmem:[%s1577] sm:$0x80]
  %vm1579 = vcmask 1047559
  %v1580 = vsel %vm1579, %v1578, %v1576
  %1581 = vrot.lane.b32.xlu0 %v1580, 64
  %v1582 = vpop.permute.xlu0 %1581
  %vm1583 = vcmask 785920
  %s1584 = scalar_lea.vmem %s1, 192
  %1585 = vst.msk [vmem:[%s1584] sm:$0xff] %vm1583, %v1582
  %s1586 = scalar_lea.vmem %s0, 786
  %v1587 = vld [vmem:[%s1586] sm:$0x1]
  %s1588 = scalar_lea.vmem %s0, 817
  %v1589 = vld [vmem:[%s1588] sm:$0x2]
  %vm1590 = vcmask 1041409
  %v1591 = vsel %vm1590, %v1589, %v1587
  %s1592 = scalar_lea.vmem %s0, 848
  %v1593 = vld [vmem:[%s1592] sm:$0x4]
  %vm1594 = vcmask 1042434
  %v1595 = vsel %vm1594, %v1593, %v1591
  %s1596 = scalar_lea.vmem %s0, 879
  %v1597 = vld [vmem:[%s1596] sm:$0x8]
  %vm1598 = vcmask 1043459
  %v1599 = vsel %vm1598, %v1597, %v1595
  %s1600 = scalar_lea.vmem %s0, 910
  %v1601 = vld [vmem:[%s1600] sm:$0x10]
  %vm1602 = vcmask 1044484
  %v1603 = vsel %vm1602, %v1601, %v1599
  %s1604 = scalar_lea.vmem %s0, 941
  %v1605 = vld [vmem:[%s1604] sm:$0x20]
  %vm1606 = vcmask 1045509
  %v1607 = vsel %vm1606, %v1605, %v1603
  %s1608 = scalar_lea.vmem %s0, 972
  %v1609 = vld [vmem:[%s1608] sm:$0x40]
  %vm1610 = vcmask 1046534
  %v1611 = vsel %vm1610, %v1609, %v1607
  %s1612 = scalar_lea.vmem %s0, 1003
  %v1613 = vld [vmem:[%s1612] sm:$0x80]
  %vm1614 = vcmask 1047559
  %v1615 = vsel %vm1614, %v1613, %v1611
  %1616 = vrot.lane.b32.xlu0 %v1615, 64
  %v1617 = vpop.permute.xlu0 %1616
  %vm1618 = vcmask 785920
  %s1619 = scalar_lea.vmem %s1, 224
  %1620 = vst.msk [vmem:[%s1619] sm:$0xff] %vm1618, %v1617
  %s1621 = scalar_lea.vmem %s0, 6
  %v1622 = vld [vmem:[%s1621] sm:$0x1]
  %s1623 = scalar_lea.vmem %s0, 37
  %v1624 = vld [vmem:[%s1623] sm:$0x2]
  %vm1625 = vcmask 1041409
  %v1626 = vsel %vm1625, %v1624, %v1622
  %s1627 = scalar_lea.vmem %s0, 68
  %v1628 = vld [vmem:[%s1627] sm:$0x4]
  %vm1629 = vcmask 1042434
  %v1630 = vsel %vm1629, %v1628, %v1626
  %s1631 = scalar_lea.vmem %s0, 99
  %v1632 = vld [vmem:[%s1631] sm:$0x8]
  %vm1633 = vcmask 1043459
  %v1634 = vsel %vm1633, %v1632, %v1630
  %s1635 = scalar_lea.vmem %s0, 130
  %v1636 = vld [vmem:[%s1635] sm:$0x10]
  %vm1637 = vcmask 1044484
  %v1638 = vsel %vm1637, %v1636, %v1634
  %s1639 = scalar_lea.vmem %s0, 161
  %v1640 = vld [vmem:[%s1639] sm:$0x20]
  %vm1641 = vcmask 1045509
  %v1642 = vsel %vm1641, %v1640, %v1638
  %s1643 = scalar_lea.vmem %s0, 192
  %v1644 = vld [vmem:[%s1643] sm:$0x40]
  %vm1645 = vcmask 1046534
  %v1646 = vsel %vm1645, %v1644, %v1642
  %s1647 = scalar_lea.vmem %s0, 223
  %v1648 = vld [vmem:[%s1647] sm:$0x80]
  %vm1649 = vcmask 1047559
  %v1650 = vsel %vm1649, %v1648, %v1646
  %1651 = vrot.lane.b32.xlu0 %v1650, 64
  %v1652 = vpop.permute.xlu0 %1651
  %vm1653 = vcmask 785920
  %s1654 = scalar_lea.vmem %s1, 8
  %1655 = vst.msk [vmem:[%s1654] sm:$0xff] %vm1653, %v1652
  %s1656 = scalar_lea.vmem %s0, 22
  %v1657 = vld [vmem:[%s1656] sm:$0x1]
  %s1658 = scalar_lea.vmem %s0, 53
  %v1659 = vld [vmem:[%s1658] sm:$0x2]
  %vm1660 = vcmask 1041409
  %v1661 = vsel %vm1660, %v1659, %v1657
  %s1662 = scalar_lea.vmem %s0, 84
  %v1663 = vld [vmem:[%s1662] sm:$0x4]
  %vm1664 = vcmask 1042434
  %v1665 = vsel %vm1664, %v1663, %v1661
  %s1666 = scalar_lea.vmem %s0, 115
  %v1667 = vld [vmem:[%s1666] sm:$0x8]
  %vm1668 = vcmask 1043459
  %v1669 = vsel %vm1668, %v1667, %v1665
  %s1670 = scalar_lea.vmem %s0, 146
  %v1671 = vld [vmem:[%s1670] sm:$0x10]
  %vm1672 = vcmask 1044484
  %v1673 = vsel %vm1672, %v1671, %v1669
  %s1674 = scalar_lea.vmem %s0, 177
  %v1675 = vld [vmem:[%s1674] sm:$0x20]
  %vm1676 = vcmask 1045509
  %v1677 = vsel %vm1676, %v1675, %v1673
  %s1678 = scalar_lea.vmem %s0, 208
  %v1679 = vld [vmem:[%s1678] sm:$0x40]
  %vm1680 = vcmask 1046534
  %v1681 = vsel %vm1680, %v1679, %v1677
  %s1682 = scalar_lea.vmem %s0, 239
  %v1683 = vld [vmem:[%s1682] sm:$0x80]
  %vm1684 = vcmask 1047559
  %v1685 = vsel %vm1684, %v1683, %v1681
  %1686 = vrot.lane.b32.xlu0 %v1685, 64
  %v1687 = vpop.permute.xlu0 %1686
  %vm1688 = vcmask 785920
  %s1689 = scalar_lea.vmem %s1, 40
  %1690 = vst.msk [vmem:[%s1689] sm:$0xff] %vm1688, %v1687
  %s1691 = scalar_lea.vmem %s0, 262
  %v1692 = vld [vmem:[%s1691] sm:$0x1]
  %s1693 = scalar_lea.vmem %s0, 293
  %v1694 = vld [vmem:[%s1693] sm:$0x2]
  %vm1695 = vcmask 1041409
  %v1696 = vsel %vm1695, %v1694, %v1692
  %s1697 = scalar_lea.vmem %s0, 324
  %v1698 = vld [vmem:[%s1697] sm:$0x4]
  %vm1699 = vcmask 1042434
  %v1700 = vsel %vm1699, %v1698, %v1696
  %s1701 = scalar_lea.vmem %s0, 355
  %v1702 = vld [vmem:[%s1701] sm:$0x8]
  %vm1703 = vcmask 1043459
  %v1704 = vsel %vm1703, %v1702, %v1700
  %s1705 = scalar_lea.vmem %s0, 386
  %v1706 = vld [vmem:[%s1705] sm:$0x10]
  %vm1707 = vcmask 1044484
  %v1708 = vsel %vm1707, %v1706, %v1704
  %s1709 = scalar_lea.vmem %s0, 417
  %v1710 = vld [vmem:[%s1709] sm:$0x20]
  %vm1711 = vcmask 1045509
  %v1712 = vsel %vm1711, %v1710, %v1708
  %s1713 = scalar_lea.vmem %s0, 448
  %v1714 = vld [vmem:[%s1713] sm:$0x40]
  %vm1715 = vcmask 1046534
  %v1716 = vsel %vm1715, %v1714, %v1712
  %s1717 = scalar_lea.vmem %s0, 479
  %v1718 = vld [vmem:[%s1717] sm:$0x80]
  %vm1719 = vcmask 1047559
  %v1720 = vsel %vm1719, %v1718, %v1716
  %1721 = vrot.lane.b32.xlu0 %v1720, 64
  %v1722 = vpop.permute.xlu0 %1721
  %vm1723 = vcmask 785920
  %s1724 = scalar_lea.vmem %s1, 72
  %1725 = vst.msk [vmem:[%s1724] sm:$0xff] %vm1723, %v1722
  %s1726 = scalar_lea.vmem %s0, 278
  %v1727 = vld [vmem:[%s1726] sm:$0x1]
  %s1728 = scalar_lea.vmem %s0, 309
  %v1729 = vld [vmem:[%s1728] sm:$0x2]
  %vm1730 = vcmask 1041409
  %v1731 = vsel %vm1730, %v1729, %v1727
  %s1732 = scalar_lea.vmem %s0, 340
  %v1733 = vld [vmem:[%s1732] sm:$0x4]
  %vm1734 = vcmask 1042434
  %v1735 = vsel %vm1734, %v1733, %v1731
  %s1736 = scalar_lea.vmem %s0, 371
  %v1737 = vld [vmem:[%s1736] sm:$0x8]
  %vm1738 = vcmask 1043459
  %v1739 = vsel %vm1738, %v1737, %v1735
  %s1740 = scalar_lea.vmem %s0, 402
  %v1741 = vld [vmem:[%s1740] sm:$0x10]
  %vm1742 = vcmask 1044484
  %v1743 = vsel %vm1742, %v1741, %v1739
  %s1744 = scalar_lea.vmem %s0, 433
  %v1745 = vld [vmem:[%s1744] sm:$0x20]
  %vm1746 = vcmask 1045509
  %v1747 = vsel %vm1746, %v1745, %v1743
  %s1748 = scalar_lea.vmem %s0, 464
  %v1749 = vld [vmem:[%s1748] sm:$0x40]
  %vm1750 = vcmask 1046534
  %v1751 = vsel %vm1750, %v1749, %v1747
  %s1752 = scalar_lea.vmem %s0, 495
  %v1753 = vld [vmem:[%s1752] sm:$0x80]
  %vm1754 = vcmask 1047559
  %v1755 = vsel %vm1754, %v1753, %v1751
  %1756 = vrot.lane.b32.xlu0 %v1755, 64
  %v1757 = vpop.permute.xlu0 %1756
  %vm1758 = vcmask 785920
  %s1759 = scalar_lea.vmem %s1, 104
  %1760 = vst.msk [vmem:[%s1759] sm:$0xff] %vm1758, %v1757
  %s1761 = scalar_lea.vmem %s0, 518
  %v1762 = vld [vmem:[%s1761] sm:$0x1]
  %s1763 = scalar_lea.vmem %s0, 549
  %v1764 = vld [vmem:[%s1763] sm:$0x2]
  %vm1765 = vcmask 1041409
  %v1766 = vsel %vm1765, %v1764, %v1762
  %s1767 = scalar_lea.vmem %s0, 580
  %v1768 = vld [vmem:[%s1767] sm:$0x4]
  %vm1769 = vcmask 1042434
  %v1770 = vsel %vm1769, %v1768, %v1766
  %s1771 = scalar_lea.vmem %s0, 611
  %v1772 = vld [vmem:[%s1771] sm:$0x8]
  %vm1773 = vcmask 1043459
  %v1774 = vsel %vm1773, %v1772, %v1770
  %s1775 = scalar_lea.vmem %s0, 642
  %v1776 = vld [vmem:[%s1775] sm:$0x10]
  %vm1777 = vcmask 1044484
  %v1778 = vsel %vm1777, %v1776, %v1774
  %s1779 = scalar_lea.vmem %s0, 673
  %v1780 = vld [vmem:[%s1779] sm:$0x20]
  %vm1781 = vcmask 1045509
  %v1782 = vsel %vm1781, %v1780, %v1778
  %s1783 = scalar_lea.vmem %s0, 704
  %v1784 = vld [vmem:[%s1783] sm:$0x40]
  %vm1785 = vcmask 1046534
  %v1786 = vsel %vm1785, %v1784, %v1782
  %s1787 = scalar_lea.vmem %s0, 735
  %v1788 = vld [vmem:[%s1787] sm:$0x80]
  %vm1789 = vcmask 1047559
  %v1790 = vsel %vm1789, %v1788, %v1786
  %1791 = vrot.lane.b32.xlu0 %v1790, 64
  %v1792 = vpop.permute.xlu0 %1791
  %vm1793 = vcmask 785920
  %s1794 = scalar_lea.vmem %s1, 136
  %1795 = vst.msk [vmem:[%s1794] sm:$0xff] %vm1793, %v1792
  %s1796 = scalar_lea.vmem %s0, 534
  %v1797 = vld [vmem:[%s1796] sm:$0x1]
  %s1798 = scalar_lea.vmem %s0, 565
  %v1799 = vld [vmem:[%s1798] sm:$0x2]
  %vm1800 = vcmask 1041409
  %v1801 = vsel %vm1800, %v1799, %v1797
  %s1802 = scalar_lea.vmem %s0, 596
  %v1803 = vld [vmem:[%s1802] sm:$0x4]
  %vm1804 = vcmask 1042434
  %v1805 = vsel %vm1804, %v1803, %v1801
  %s1806 = scalar_lea.vmem %s0, 627
  %v1807 = vld [vmem:[%s1806] sm:$0x8]
  %vm1808 = vcmask 1043459
  %v1809 = vsel %vm1808, %v1807, %v1805
  %s1810 = scalar_lea.vmem %s0, 658
  %v1811 = vld [vmem:[%s1810] sm:$0x10]
  %vm1812 = vcmask 1044484
  %v1813 = vsel %vm1812, %v1811, %v1809
  %s1814 = scalar_lea.vmem %s0, 689
  %v1815 = vld [vmem:[%s1814] sm:$0x20]
  %vm1816 = vcmask 1045509
  %v1817 = vsel %vm1816, %v1815, %v1813
  %s1818 = scalar_lea.vmem %s0, 720
  %v1819 = vld [vmem:[%s1818] sm:$0x40]
  %vm1820 = vcmask 1046534
  %v1821 = vsel %vm1820, %v1819, %v1817
  %s1822 = scalar_lea.vmem %s0, 751
  %v1823 = vld [vmem:[%s1822] sm:$0x80]
  %vm1824 = vcmask 1047559
  %v1825 = vsel %vm1824, %v1823, %v1821
  %1826 = vrot.lane.b32.xlu0 %v1825, 64
  %v1827 = vpop.permute.xlu0 %1826
  %vm1828 = vcmask 785920
  %s1829 = scalar_lea.vmem %s1, 168
  %1830 = vst.msk [vmem:[%s1829] sm:$0xff] %vm1828, %v1827
  %s1831 = scalar_lea.vmem %s0, 774
  %v1832 = vld [vmem:[%s1831] sm:$0x1]
  %s1833 = scalar_lea.vmem %s0, 805
  %v1834 = vld [vmem:[%s1833] sm:$0x2]
  %vm1835 = vcmask 1041409
  %v1836 = vsel %vm1835, %v1834, %v1832
  %s1837 = scalar_lea.vmem %s0, 836
  %v1838 = vld [vmem:[%s1837] sm:$0x4]
  %vm1839 = vcmask 1042434
  %v1840 = vsel %vm1839, %v1838, %v1836
  %s1841 = scalar_lea.vmem %s0, 867
  %v1842 = vld [vmem:[%s1841] sm:$0x8]
  %vm1843 = vcmask 1043459
  %v1844 = vsel %vm1843, %v1842, %v1840
  %s1845 = scalar_lea.vmem %s0, 898
  %v1846 = vld [vmem:[%s1845] sm:$0x10]
  %vm1847 = vcmask 1044484
  %v1848 = vsel %vm1847, %v1846, %v1844
  %s1849 = scalar_lea.vmem %s0, 929
  %v1850 = vld [vmem:[%s1849] sm:$0x20]
  %vm1851 = vcmask 1045509
  %v1852 = vsel %vm1851, %v1850, %v1848
  %s1853 = scalar_lea.vmem %s0, 960
  %v1854 = vld [vmem:[%s1853] sm:$0x40]
  %vm1855 = vcmask 1046534
  %v1856 = vsel %vm1855, %v1854, %v1852
  %s1857 = scalar_lea.vmem %s0, 991
  %v1858 = vld [vmem:[%s1857] sm:$0x80]
  %vm1859 = vcmask 1047559
  %v1860 = vsel %vm1859, %v1858, %v1856
  %1861 = vrot.lane.b32.xlu0 %v1860, 64
  %v1862 = vpop.permute.xlu0 %1861
  %vm1863 = vcmask 785920
  %s1864 = scalar_lea.vmem %s1, 200
  %1865 = vst.msk [vmem:[%s1864] sm:$0xff] %vm1863, %v1862
  %s1866 = scalar_lea.vmem %s0, 790
  %v1867 = vld [vmem:[%s1866] sm:$0x1]
  %s1868 = scalar_lea.vmem %s0, 821
  %v1869 = vld [vmem:[%s1868] sm:$0x2]
  %vm1870 = vcmask 1041409
  %v1871 = vsel %vm1870, %v1869, %v1867
  %s1872 = scalar_lea.vmem %s0, 852
  %v1873 = vld [vmem:[%s1872] sm:$0x4]
  %vm1874 = vcmask 1042434
  %v1875 = vsel %vm1874, %v1873, %v1871
  %s1876 = scalar_lea.vmem %s0, 883
  %v1877 = vld [vmem:[%s1876] sm:$0x8]
  %vm1878 = vcmask 1043459
  %v1879 = vsel %vm1878, %v1877, %v1875
  %s1880 = scalar_lea.vmem %s0, 914
  %v1881 = vld [vmem:[%s1880] sm:$0x10]
  %vm1882 = vcmask 1044484
  %v1883 = vsel %vm1882, %v1881, %v1879
  %s1884 = scalar_lea.vmem %s0, 945
  %v1885 = vld [vmem:[%s1884] sm:$0x20]
  %vm1886 = vcmask 1045509
  %v1887 = vsel %vm1886, %v1885, %v1883
  %s1888 = scalar_lea.vmem %s0, 976
  %v1889 = vld [vmem:[%s1888] sm:$0x40]
  %vm1890 = vcmask 1046534
  %v1891 = vsel %vm1890, %v1889, %v1887
  %s1892 = scalar_lea.vmem %s0, 1007
  %v1893 = vld [vmem:[%s1892] sm:$0x80]
  %vm1894 = vcmask 1047559
  %v1895 = vsel %vm1894, %v1893, %v1891
  %1896 = vrot.lane.b32.xlu0 %v1895, 64
  %v1897 = vpop.permute.xlu0 %1896
  %vm1898 = vcmask 785920
  %s1899 = scalar_lea.vmem %s1, 232
  %1900 = vst.msk [vmem:[%s1899] sm:$0xff] %vm1898, %v1897
  %s1901 = scalar_lea.vmem %s0, 10
  %v1902 = vld [vmem:[%s1901] sm:$0x1]
  %s1903 = scalar_lea.vmem %s0, 41
  %v1904 = vld [vmem:[%s1903] sm:$0x2]
  %vm1905 = vcmask 1041409
  %v1906 = vsel %vm1905, %v1904, %v1902
  %s1907 = scalar_lea.vmem %s0, 72
  %v1908 = vld [vmem:[%s1907] sm:$0x4]
  %vm1909 = vcmask 1042434
  %v1910 = vsel %vm1909, %v1908, %v1906
  %s1911 = scalar_lea.vmem %s0, 103
  %v1912 = vld [vmem:[%s1911] sm:$0x8]
  %vm1913 = vcmask 1043459
  %v1914 = vsel %vm1913, %v1912, %v1910
  %s1915 = scalar_lea.vmem %s0, 134
  %v1916 = vld [vmem:[%s1915] sm:$0x10]
  %vm1917 = vcmask 1044484
  %v1918 = vsel %vm1917, %v1916, %v1914
  %s1919 = scalar_lea.vmem %s0, 165
  %v1920 = vld [vmem:[%s1919] sm:$0x20]
  %vm1921 = vcmask 1045509
  %v1922 = vsel %vm1921, %v1920, %v1918
  %s1923 = scalar_lea.vmem %s0, 196
  %v1924 = vld [vmem:[%s1923] sm:$0x40]
  %vm1925 = vcmask 1046534
  %v1926 = vsel %vm1925, %v1924, %v1922
  %s1927 = scalar_lea.vmem %s0, 227
  %v1928 = vld [vmem:[%s1927] sm:$0x80]
  %vm1929 = vcmask 1047559
  %v1930 = vsel %vm1929, %v1928, %v1926
  %1931 = vrot.lane.b32.xlu0 %v1930, 64
  %v1932 = vpop.permute.xlu0 %1931
  %vm1933 = vcmask 785920
  %s1934 = scalar_lea.vmem %s1, 16
  %1935 = vst.msk [vmem:[%s1934] sm:$0xff] %vm1933, %v1932
  %s1936 = scalar_lea.vmem %s0, 26
  %v1937 = vld [vmem:[%s1936] sm:$0x1]
  %s1938 = scalar_lea.vmem %s0, 57
  %v1939 = vld [vmem:[%s1938] sm:$0x2]
  %vm1940 = vcmask 1041409
  %v1941 = vsel %vm1940, %v1939, %v1937
  %s1942 = scalar_lea.vmem %s0, 88
  %v1943 = vld [vmem:[%s1942] sm:$0x4]
  %vm1944 = vcmask 1042434
  %v1945 = vsel %vm1944, %v1943, %v1941
  %s1946 = scalar_lea.vmem %s0, 119
  %v1947 = vld [vmem:[%s1946] sm:$0x8]
  %vm1948 = vcmask 1043459
  %v1949 = vsel %vm1948, %v1947, %v1945
  %s1950 = scalar_lea.vmem %s0, 150
  %v1951 = vld [vmem:[%s1950] sm:$0x10]
  %vm1952 = vcmask 1044484
  %v1953 = vsel %vm1952, %v1951, %v1949
  %s1954 = scalar_lea.vmem %s0, 181
  %v1955 = vld [vmem:[%s1954] sm:$0x20]
  %vm1956 = vcmask 1045509
  %v1957 = vsel %vm1956, %v1955, %v1953
  %s1958 = scalar_lea.vmem %s0, 212
  %v1959 = vld [vmem:[%s1958] sm:$0x40]
  %vm1960 = vcmask 1046534
  %v1961 = vsel %vm1960, %v1959, %v1957
  %s1962 = scalar_lea.vmem %s0, 243
  %v1963 = vld [vmem:[%s1962] sm:$0x80]
  %vm1964 = vcmask 1047559
  %v1965 = vsel %vm1964, %v1963, %v1961
  %1966 = vrot.lane.b32.xlu0 %v1965, 64
  %v1967 = vpop.permute.xlu0 %1966
  %vm1968 = vcmask 785920
  %s1969 = scalar_lea.vmem %s1, 48
  %1970 = vst.msk [vmem:[%s1969] sm:$0xff] %vm1968, %v1967
  %s1971 = scalar_lea.vmem %s0, 266
  %v1972 = vld [vmem:[%s1971] sm:$0x1]
  %s1973 = scalar_lea.vmem %s0, 297
  %v1974 = vld [vmem:[%s1973] sm:$0x2]
  %vm1975 = vcmask 1041409
  %v1976 = vsel %vm1975, %v1974, %v1972
  %s1977 = scalar_lea.vmem %s0, 328
  %v1978 = vld [vmem:[%s1977] sm:$0x4]
  %vm1979 = vcmask 1042434
  %v1980 = vsel %vm1979, %v1978, %v1976
  %s1981 = scalar_lea.vmem %s0, 359
  %v1982 = vld [vmem:[%s1981] sm:$0x8]
  %vm1983 = vcmask 1043459
  %v1984 = vsel %vm1983, %v1982, %v1980
  %s1985 = scalar_lea.vmem %s0, 390
  %v1986 = vld [vmem:[%s1985] sm:$0x10]
  %vm1987 = vcmask 1044484
  %v1988 = vsel %vm1987, %v1986, %v1984
  %s1989 = scalar_lea.vmem %s0, 421
  %v1990 = vld [vmem:[%s1989] sm:$0x20]
  %vm1991 = vcmask 1045509
  %v1992 = vsel %vm1991, %v1990, %v1988
  %s1993 = scalar_lea.vmem %s0, 452
  %v1994 = vld [vmem:[%s1993] sm:$0x40]
  %vm1995 = vcmask 1046534
  %v1996 = vsel %vm1995, %v1994, %v1992
  %s1997 = scalar_lea.vmem %s0, 483
  %v1998 = vld [vmem:[%s1997] sm:$0x80]
  %vm1999 = vcmask 1047559
  %v2000 = vsel %vm1999, %v1998, %v1996
  %2001 = vrot.lane.b32.xlu0 %v2000, 64
  %v2002 = vpop.permute.xlu0 %2001
  %vm2003 = vcmask 785920
  %s2004 = scalar_lea.vmem %s1, 80
  %2005 = vst.msk [vmem:[%s2004] sm:$0xff] %vm2003, %v2002
  %s2006 = scalar_lea.vmem %s0, 282
  %v2007 = vld [vmem:[%s2006] sm:$0x1]
  %s2008 = scalar_lea.vmem %s0, 313
  %v2009 = vld [vmem:[%s2008] sm:$0x2]
  %vm2010 = vcmask 1041409
  %v2011 = vsel %vm2010, %v2009, %v2007
  %s2012 = scalar_lea.vmem %s0, 344
  %v2013 = vld [vmem:[%s2012] sm:$0x4]
  %vm2014 = vcmask 1042434
  %v2015 = vsel %vm2014, %v2013, %v2011
  %s2016 = scalar_lea.vmem %s0, 375
  %v2017 = vld [vmem:[%s2016] sm:$0x8]
  %vm2018 = vcmask 1043459
  %v2019 = vsel %vm2018, %v2017, %v2015
  %s2020 = scalar_lea.vmem %s0, 406
  %v2021 = vld [vmem:[%s2020] sm:$0x10]
  %vm2022 = vcmask 1044484
  %v2023 = vsel %vm2022, %v2021, %v2019
  %s2024 = scalar_lea.vmem %s0, 437
  %v2025 = vld [vmem:[%s2024] sm:$0x20]
  %vm2026 = vcmask 1045509
  %v2027 = vsel %vm2026, %v2025, %v2023
  %s2028 = scalar_lea.vmem %s0, 468
  %v2029 = vld [vmem:[%s2028] sm:$0x40]
  %vm2030 = vcmask 1046534
  %v2031 = vsel %vm2030, %v2029, %v2027
  %s2032 = scalar_lea.vmem %s0, 499
  %v2033 = vld [vmem:[%s2032] sm:$0x80]
  %vm2034 = vcmask 1047559
  %v2035 = vsel %vm2034, %v2033, %v2031
  %2036 = vrot.lane.b32.xlu0 %v2035, 64
  %v2037 = vpop.permute.xlu0 %2036
  %vm2038 = vcmask 785920
  %s2039 = scalar_lea.vmem %s1, 112
  %2040 = vst.msk [vmem:[%s2039] sm:$0xff] %vm2038, %v2037
  %s2041 = scalar_lea.vmem %s0, 522
  %v2042 = vld [vmem:[%s2041] sm:$0x1]
  %s2043 = scalar_lea.vmem %s0, 553
  %v2044 = vld [vmem:[%s2043] sm:$0x2]
  %vm2045 = vcmask 1041409
  %v2046 = vsel %vm2045, %v2044, %v2042
  %s2047 = scalar_lea.vmem %s0, 584
  %v2048 = vld [vmem:[%s2047] sm:$0x4]
  %vm2049 = vcmask 1042434
  %v2050 = vsel %vm2049, %v2048, %v2046
  %s2051 = scalar_lea.vmem %s0, 615
  %v2052 = vld [vmem:[%s2051] sm:$0x8]
  %vm2053 = vcmask 1043459
  %v2054 = vsel %vm2053, %v2052, %v2050
  %s2055 = scalar_lea.vmem %s0, 646
  %v2056 = vld [vmem:[%s2055] sm:$0x10]
  %vm2057 = vcmask 1044484
  %v2058 = vsel %vm2057, %v2056, %v2054
  %s2059 = scalar_lea.vmem %s0, 677
  %v2060 = vld [vmem:[%s2059] sm:$0x20]
  %vm2061 = vcmask 1045509
  %v2062 = vsel %vm2061, %v2060, %v2058
  %s2063 = scalar_lea.vmem %s0, 708
  %v2064 = vld [vmem:[%s2063] sm:$0x40]
  %vm2065 = vcmask 1046534
  %v2066 = vsel %vm2065, %v2064, %v2062
  %s2067 = scalar_lea.vmem %s0, 739
  %v2068 = vld [vmem:[%s2067] sm:$0x80]
  %vm2069 = vcmask 1047559
  %v2070 = vsel %vm2069, %v2068, %v2066
  %2071 = vrot.lane.b32.xlu0 %v2070, 64
  %v2072 = vpop.permute.xlu0 %2071
  %vm2073 = vcmask 785920
  %s2074 = scalar_lea.vmem %s1, 144
  %2075 = vst.msk [vmem:[%s2074] sm:$0xff] %vm2073, %v2072
  %s2076 = scalar_lea.vmem %s0, 538
  %v2077 = vld [vmem:[%s2076] sm:$0x1]
  %s2078 = scalar_lea.vmem %s0, 569
  %v2079 = vld [vmem:[%s2078] sm:$0x2]
  %vm2080 = vcmask 1041409
  %v2081 = vsel %vm2080, %v2079, %v2077
  %s2082 = scalar_lea.vmem %s0, 600
  %v2083 = vld [vmem:[%s2082] sm:$0x4]
  %vm2084 = vcmask 1042434
  %v2085 = vsel %vm2084, %v2083, %v2081
  %s2086 = scalar_lea.vmem %s0, 631
  %v2087 = vld [vmem:[%s2086] sm:$0x8]
  %vm2088 = vcmask 1043459
  %v2089 = vsel %vm2088, %v2087, %v2085
  %s2090 = scalar_lea.vmem %s0, 662
  %v2091 = vld [vmem:[%s2090] sm:$0x10]
  %vm2092 = vcmask 1044484
  %v2093 = vsel %vm2092, %v2091, %v2089
  %s2094 = scalar_lea.vmem %s0, 693
  %v2095 = vld [vmem:[%s2094] sm:$0x20]
  %vm2096 = vcmask 1045509
  %v2097 = vsel %vm2096, %v2095, %v2093
  %s2098 = scalar_lea.vmem %s0, 724
  %v2099 = vld [vmem:[%s2098] sm:$0x40]
  %vm2100 = vcmask 1046534
  %v2101 = vsel %vm2100, %v2099, %v2097
  %s2102 = scalar_lea.vmem %s0, 755
  %v2103 = vld [vmem:[%s2102] sm:$0x80]
  %vm2104 = vcmask 1047559
  %v2105 = vsel %vm2104, %v2103, %v2101
  %2106 = vrot.lane.b32.xlu0 %v2105, 64
  %v2107 = vpop.permute.xlu0 %2106
  %vm2108 = vcmask 785920
  %s2109 = scalar_lea.vmem %s1, 176
  %2110 = vst.msk [vmem:[%s2109] sm:$0xff] %vm2108, %v2107
  %s2111 = scalar_lea.vmem %s0, 778
  %v2112 = vld [vmem:[%s2111] sm:$0x1]
  %s2113 = scalar_lea.vmem %s0, 809
  %v2114 = vld [vmem:[%s2113] sm:$0x2]
  %vm2115 = vcmask 1041409
  %v2116 = vsel %vm2115, %v2114, %v2112
  %s2117 = scalar_lea.vmem %s0, 840
  %v2118 = vld [vmem:[%s2117] sm:$0x4]
  %vm2119 = vcmask 1042434
  %v2120 = vsel %vm2119, %v2118, %v2116
  %s2121 = scalar_lea.vmem %s0, 871
  %v2122 = vld [vmem:[%s2121] sm:$0x8]
  %vm2123 = vcmask 1043459
  %v2124 = vsel %vm2123, %v2122, %v2120
  %s2125 = scalar_lea.vmem %s0, 902
  %v2126 = vld [vmem:[%s2125] sm:$0x10]
  %vm2127 = vcmask 1044484
  %v2128 = vsel %vm2127, %v2126, %v2124
  %s2129 = scalar_lea.vmem %s0, 933
  %v2130 = vld [vmem:[%s2129] sm:$0x20]
  %vm2131 = vcmask 1045509
  %v2132 = vsel %vm2131, %v2130, %v2128
  %s2133 = scalar_lea.vmem %s0, 964
  %v2134 = vld [vmem:[%s2133] sm:$0x40]
  %vm2135 = vcmask 1046534
  %v2136 = vsel %vm2135, %v2134, %v2132
  %s2137 = scalar_lea.vmem %s0, 995
  %v2138 = vld [vmem:[%s2137] sm:$0x80]
  %vm2139 = vcmask 1047559
  %v2140 = vsel %vm2139, %v2138, %v2136
  %2141 = vrot.lane.b32.xlu0 %v2140, 64
  %v2142 = vpop.permute.xlu0 %2141
  %vm2143 = vcmask 785920
  %s2144 = scalar_lea.vmem %s1, 208
  %2145 = vst.msk [vmem:[%s2144] sm:$0xff] %vm2143, %v2142
  %s2146 = scalar_lea.vmem %s0, 794
  %v2147 = vld [vmem:[%s2146] sm:$0x1]
  %s2148 = scalar_lea.vmem %s0, 825
  %v2149 = vld [vmem:[%s2148] sm:$0x2]
  %vm2150 = vcmask 1041409
  %v2151 = vsel %vm2150, %v2149, %v2147
  %s2152 = scalar_lea.vmem %s0, 856
  %v2153 = vld [vmem:[%s2152] sm:$0x4]
  %vm2154 = vcmask 1042434
  %v2155 = vsel %vm2154, %v2153, %v2151
  %s2156 = scalar_lea.vmem %s0, 887
  %v2157 = vld [vmem:[%s2156] sm:$0x8]
  %vm2158 = vcmask 1043459
  %v2159 = vsel %vm2158, %v2157, %v2155
  %s2160 = scalar_lea.vmem %s0, 918
  %v2161 = vld [vmem:[%s2160] sm:$0x10]
  %vm2162 = vcmask 1044484
  %v2163 = vsel %vm2162, %v2161, %v2159
  %s2164 = scalar_lea.vmem %s0, 949
  %v2165 = vld [vmem:[%s2164] sm:$0x20]
  %vm2166 = vcmask 1045509
  %v2167 = vsel %vm2166, %v2165, %v2163
  %s2168 = scalar_lea.vmem %s0, 980
  %v2169 = vld [vmem:[%s2168] sm:$0x40]
  %vm2170 = vcmask 1046534
  %v2171 = vsel %vm2170, %v2169, %v2167
  %s2172 = scalar_lea.vmem %s0, 1011
  %v2173 = vld [vmem:[%s2172] sm:$0x80]
  %vm2174 = vcmask 1047559
  %v2175 = vsel %vm2174, %v2173, %v2171
  %2176 = vrot.lane.b32.xlu0 %v2175, 64
  %v2177 = vpop.permute.xlu0 %2176
  %vm2178 = vcmask 785920
  %s2179 = scalar_lea.vmem %s1, 240
  %2180 = vst.msk [vmem:[%s2179] sm:$0xff] %vm2178, %v2177
  %s2181 = scalar_lea.vmem %s0, 14
  %v2182 = vld [vmem:[%s2181] sm:$0x1]
  %s2183 = scalar_lea.vmem %s0, 45
  %v2184 = vld [vmem:[%s2183] sm:$0x2]
  %vm2185 = vcmask 1041409
  %v2186 = vsel %vm2185, %v2184, %v2182
  %s2187 = scalar_lea.vmem %s0, 76
  %v2188 = vld [vmem:[%s2187] sm:$0x4]
  %vm2189 = vcmask 1042434
  %v2190 = vsel %vm2189, %v2188, %v2186
  %s2191 = scalar_lea.vmem %s0, 107
  %v2192 = vld [vmem:[%s2191] sm:$0x8]
  %vm2193 = vcmask 1043459
  %v2194 = vsel %vm2193, %v2192, %v2190
  %s2195 = scalar_lea.vmem %s0, 138
  %v2196 = vld [vmem:[%s2195] sm:$0x10]
  %vm2197 = vcmask 1044484
  %v2198 = vsel %vm2197, %v2196, %v2194
  %s2199 = scalar_lea.vmem %s0, 169
  %v2200 = vld [vmem:[%s2199] sm:$0x20]
  %vm2201 = vcmask 1045509
  %v2202 = vsel %vm2201, %v2200, %v2198
  %s2203 = scalar_lea.vmem %s0, 200
  %v2204 = vld [vmem:[%s2203] sm:$0x40]
  %vm2205 = vcmask 1046534
  %v2206 = vsel %vm2205, %v2204, %v2202
  %s2207 = scalar_lea.vmem %s0, 231
  %v2208 = vld [vmem:[%s2207] sm:$0x80]
  %vm2209 = vcmask 1047559
  %v2210 = vsel %vm2209, %v2208, %v2206
  %2211 = vrot.lane.b32.xlu0 %v2210, 64
  %v2212 = vpop.permute.xlu0 %2211
  %vm2213 = vcmask 785920
  %s2214 = scalar_lea.vmem %s1, 24
  %2215 = vst.msk [vmem:[%s2214] sm:$0xff] %vm2213, %v2212
  %s2216 = scalar_lea.vmem %s0, 30
  %v2217 = vld [vmem:[%s2216] sm:$0x1]
  %s2218 = scalar_lea.vmem %s0, 61
  %v2219 = vld [vmem:[%s2218] sm:$0x2]
  %vm2220 = vcmask 1041409
  %v2221 = vsel %vm2220, %v2219, %v2217
  %s2222 = scalar_lea.vmem %s0, 92
  %v2223 = vld [vmem:[%s2222] sm:$0x4]
  %vm2224 = vcmask 1042434
  %v2225 = vsel %vm2224, %v2223, %v2221
  %s2226 = scalar_lea.vmem %s0, 123
  %v2227 = vld [vmem:[%s2226] sm:$0x8]
  %vm2228 = vcmask 1043459
  %v2229 = vsel %vm2228, %v2227, %v2225
  %s2230 = scalar_lea.vmem %s0, 154
  %v2231 = vld [vmem:[%s2230] sm:$0x10]
  %vm2232 = vcmask 1044484
  %v2233 = vsel %vm2232, %v2231, %v2229
  %s2234 = scalar_lea.vmem %s0, 185
  %v2235 = vld [vmem:[%s2234] sm:$0x20]
  %vm2236 = vcmask 1045509
  %v2237 = vsel %vm2236, %v2235, %v2233
  %s2238 = scalar_lea.vmem %s0, 216
  %v2239 = vld [vmem:[%s2238] sm:$0x40]
  %vm2240 = vcmask 1046534
  %v2241 = vsel %vm2240, %v2239, %v2237
  %s2242 = scalar_lea.vmem %s0, 247
  %v2243 = vld [vmem:[%s2242] sm:$0x80]
  %vm2244 = vcmask 1047559
  %v2245 = vsel %vm2244, %v2243, %v2241
  %2246 = vrot.lane.b32.xlu0 %v2245, 64
  %v2247 = vpop.permute.xlu0 %2246
  %vm2248 = vcmask 785920
  %s2249 = scalar_lea.vmem %s1, 56
  %2250 = vst.msk [vmem:[%s2249] sm:$0xff] %vm2248, %v2247
  %s2251 = scalar_lea.vmem %s0, 270
  %v2252 = vld [vmem:[%s2251] sm:$0x1]
  %s2253 = scalar_lea.vmem %s0, 301
  %v2254 = vld [vmem:[%s2253] sm:$0x2]
  %vm2255 = vcmask 1041409
  %v2256 = vsel %vm2255, %v2254, %v2252
  %s2257 = scalar_lea.vmem %s0, 332
  %v2258 = vld [vmem:[%s2257] sm:$0x4]
  %vm2259 = vcmask 1042434
  %v2260 = vsel %vm2259, %v2258, %v2256
  %s2261 = scalar_lea.vmem %s0, 363
  %v2262 = vld [vmem:[%s2261] sm:$0x8]
  %vm2263 = vcmask 1043459
  %v2264 = vsel %vm2263, %v2262, %v2260
  %s2265 = scalar_lea.vmem %s0, 394
  %v2266 = vld [vmem:[%s2265] sm:$0x10]
  %vm2267 = vcmask 1044484
  %v2268 = vsel %vm2267, %v2266, %v2264
  %s2269 = scalar_lea.vmem %s0, 425
  %v2270 = vld [vmem:[%s2269] sm:$0x20]
  %vm2271 = vcmask 1045509
  %v2272 = vsel %vm2271, %v2270, %v2268
  %s2273 = scalar_lea.vmem %s0, 456
  %v2274 = vld [vmem:[%s2273] sm:$0x40]
  %vm2275 = vcmask 1046534
  %v2276 = vsel %vm2275, %v2274, %v2272
  %s2277 = scalar_lea.vmem %s0, 487
  %v2278 = vld [vmem:[%s2277] sm:$0x80]
  %vm2279 = vcmask 1047559
  %v2280 = vsel %vm2279, %v2278, %v2276
  %2281 = vrot.lane.b32.xlu0 %v2280, 64
  %v2282 = vpop.permute.xlu0 %2281
  %vm2283 = vcmask 785920
  %s2284 = scalar_lea.vmem %s1, 88
  %2285 = vst.msk [vmem:[%s2284] sm:$0xff] %vm2283, %v2282
  %s2286 = scalar_lea.vmem %s0, 286
  %v2287 = vld [vmem:[%s2286] sm:$0x1]
  %s2288 = scalar_lea.vmem %s0, 317
  %v2289 = vld [vmem:[%s2288] sm:$0x2]
  %vm2290 = vcmask 1041409
  %v2291 = vsel %vm2290, %v2289, %v2287
  %s2292 = scalar_lea.vmem %s0, 348
  %v2293 = vld [vmem:[%s2292] sm:$0x4]
  %vm2294 = vcmask 1042434
  %v2295 = vsel %vm2294, %v2293, %v2291
  %s2296 = scalar_lea.vmem %s0, 379
  %v2297 = vld [vmem:[%s2296] sm:$0x8]
  %vm2298 = vcmask 1043459
  %v2299 = vsel %vm2298, %v2297, %v2295
  %s2300 = scalar_lea.vmem %s0, 410
  %v2301 = vld [vmem:[%s2300] sm:$0x10]
  %vm2302 = vcmask 1044484
  %v2303 = vsel %vm2302, %v2301, %v2299
  %s2304 = scalar_lea.vmem %s0, 441
  %v2305 = vld [vmem:[%s2304] sm:$0x20]
  %vm2306 = vcmask 1045509
  %v2307 = vsel %vm2306, %v2305, %v2303
  %s2308 = scalar_lea.vmem %s0, 472
  %v2309 = vld [vmem:[%s2308] sm:$0x40]
  %vm2310 = vcmask 1046534
  %v2311 = vsel %vm2310, %v2309, %v2307
  %s2312 = scalar_lea.vmem %s0, 503
  %v2313 = vld [vmem:[%s2312] sm:$0x80]
  %vm2314 = vcmask 1047559
  %v2315 = vsel %vm2314, %v2313, %v2311
  %2316 = vrot.lane.b32.xlu0 %v2315, 64
  %v2317 = vpop.permute.xlu0 %2316
  %vm2318 = vcmask 785920
  %s2319 = scalar_lea.vmem %s1, 120
  %2320 = vst.msk [vmem:[%s2319] sm:$0xff] %vm2318, %v2317
  %s2321 = scalar_lea.vmem %s0, 526
  %v2322 = vld [vmem:[%s2321] sm:$0x1]
  %s2323 = scalar_lea.vmem %s0, 557
  %v2324 = vld [vmem:[%s2323] sm:$0x2]
  %vm2325 = vcmask 1041409
  %v2326 = vsel %vm2325, %v2324, %v2322
  %s2327 = scalar_lea.vmem %s0, 588
  %v2328 = vld [vmem:[%s2327] sm:$0x4]
  %vm2329 = vcmask 1042434
  %v2330 = vsel %vm2329, %v2328, %v2326
  %s2331 = scalar_lea.vmem %s0, 619
  %v2332 = vld [vmem:[%s2331] sm:$0x8]
  %vm2333 = vcmask 1043459
  %v2334 = vsel %vm2333, %v2332, %v2330
  %s2335 = scalar_lea.vmem %s0, 650
  %v2336 = vld [vmem:[%s2335] sm:$0x10]
  %vm2337 = vcmask 1044484
  %v2338 = vsel %vm2337, %v2336, %v2334
  %s2339 = scalar_lea.vmem %s0, 681
  %v2340 = vld [vmem:[%s2339] sm:$0x20]
  %vm2341 = vcmask 1045509
  %v2342 = vsel %vm2341, %v2340, %v2338
  %s2343 = scalar_lea.vmem %s0, 712
  %v2344 = vld [vmem:[%s2343] sm:$0x40]
  %vm2345 = vcmask 1046534
  %v2346 = vsel %vm2345, %v2344, %v2342
  %s2347 = scalar_lea.vmem %s0, 743
  %v2348 = vld [vmem:[%s2347] sm:$0x80]
  %vm2349 = vcmask 1047559
  %v2350 = vsel %vm2349, %v2348, %v2346
  %2351 = vrot.lane.b32.xlu0 %v2350, 64
  %v2352 = vpop.permute.xlu0 %2351
  %vm2353 = vcmask 785920
  %s2354 = scalar_lea.vmem %s1, 152
  %2355 = vst.msk [vmem:[%s2354] sm:$0xff] %vm2353, %v2352
  %s2356 = scalar_lea.vmem %s0, 542
  %v2357 = vld [vmem:[%s2356] sm:$0x1]
  %s2358 = scalar_lea.vmem %s0, 573
  %v2359 = vld [vmem:[%s2358] sm:$0x2]
  %vm2360 = vcmask 1041409
  %v2361 = vsel %vm2360, %v2359, %v2357
  %s2362 = scalar_lea.vmem %s0, 604
  %v2363 = vld [vmem:[%s2362] sm:$0x4]
  %vm2364 = vcmask 1042434
  %v2365 = vsel %vm2364, %v2363, %v2361
  %s2366 = scalar_lea.vmem %s0, 635
  %v2367 = vld [vmem:[%s2366] sm:$0x8]
  %vm2368 = vcmask 1043459
  %v2369 = vsel %vm2368, %v2367, %v2365
  %s2370 = scalar_lea.vmem %s0, 666
  %v2371 = vld [vmem:[%s2370] sm:$0x10]
  %vm2372 = vcmask 1044484
  %v2373 = vsel %vm2372, %v2371, %v2369
  %s2374 = scalar_lea.vmem %s0, 697
  %v2375 = vld [vmem:[%s2374] sm:$0x20]
  %vm2376 = vcmask 1045509
  %v2377 = vsel %vm2376, %v2375, %v2373
  %s2378 = scalar_lea.vmem %s0, 728
  %v2379 = vld [vmem:[%s2378] sm:$0x40]
  %vm2380 = vcmask 1046534
  %v2381 = vsel %vm2380, %v2379, %v2377
  %s2382 = scalar_lea.vmem %s0, 759
  %v2383 = vld [vmem:[%s2382] sm:$0x80]
  %vm2384 = vcmask 1047559
  %v2385 = vsel %vm2384, %v2383, %v2381
  %2386 = vrot.lane.b32.xlu0 %v2385, 64
  %v2387 = vpop.permute.xlu0 %2386
  %vm2388 = vcmask 785920
  %s2389 = scalar_lea.vmem %s1, 184
  %2390 = vst.msk [vmem:[%s2389] sm:$0xff] %vm2388, %v2387
  %s2391 = scalar_lea.vmem %s0, 782
  %v2392 = vld [vmem:[%s2391] sm:$0x1]
  %s2393 = scalar_lea.vmem %s0, 813
  %v2394 = vld [vmem:[%s2393] sm:$0x2]
  %vm2395 = vcmask 1041409
  %v2396 = vsel %vm2395, %v2394, %v2392
  %s2397 = scalar_lea.vmem %s0, 844
  %v2398 = vld [vmem:[%s2397] sm:$0x4]
  %vm2399 = vcmask 1042434
  %v2400 = vsel %vm2399, %v2398, %v2396
  %s2401 = scalar_lea.vmem %s0, 875
  %v2402 = vld [vmem:[%s2401] sm:$0x8]
  %vm2403 = vcmask 1043459
  %v2404 = vsel %vm2403, %v2402, %v2400
  %s2405 = scalar_lea.vmem %s0, 906
  %v2406 = vld [vmem:[%s2405] sm:$0x10]
  %vm2407 = vcmask 1044484
  %v2408 = vsel %vm2407, %v2406, %v2404
  %s2409 = scalar_lea.vmem %s0, 937
  %v2410 = vld [vmem:[%s2409] sm:$0x20]
  %vm2411 = vcmask 1045509
  %v2412 = vsel %vm2411, %v2410, %v2408
  %s2413 = scalar_lea.vmem %s0, 968
  %v2414 = vld [vmem:[%s2413] sm:$0x40]
  %vm2415 = vcmask 1046534
  %v2416 = vsel %vm2415, %v2414, %v2412
  %s2417 = scalar_lea.vmem %s0, 999
  %v2418 = vld [vmem:[%s2417] sm:$0x80]
  %vm2419 = vcmask 1047559
  %v2420 = vsel %vm2419, %v2418, %v2416
  %2421 = vrot.lane.b32.xlu0 %v2420, 64
  %v2422 = vpop.permute.xlu0 %2421
  %vm2423 = vcmask 785920
  %s2424 = scalar_lea.vmem %s1, 216
  %2425 = vst.msk [vmem:[%s2424] sm:$0xff] %vm2423, %v2422
  %s2426 = scalar_lea.vmem %s0, 798
  %v2427 = vld [vmem:[%s2426] sm:$0x1]
  %s2428 = scalar_lea.vmem %s0, 829
  %v2429 = vld [vmem:[%s2428] sm:$0x2]
  %vm2430 = vcmask 1041409
  %v2431 = vsel %vm2430, %v2429, %v2427
  %s2432 = scalar_lea.vmem %s0, 860
  %v2433 = vld [vmem:[%s2432] sm:$0x4]
  %vm2434 = vcmask 1042434
  %v2435 = vsel %vm2434, %v2433, %v2431
  %s2436 = scalar_lea.vmem %s0, 891
  %v2437 = vld [vmem:[%s2436] sm:$0x8]
  %vm2438 = vcmask 1043459
  %v2439 = vsel %vm2438, %v2437, %v2435
  %s2440 = scalar_lea.vmem %s0, 922
  %v2441 = vld [vmem:[%s2440] sm:$0x10]
  %vm2442 = vcmask 1044484
  %v2443 = vsel %vm2442, %v2441, %v2439
  %s2444 = scalar_lea.vmem %s0, 953
  %v2445 = vld [vmem:[%s2444] sm:$0x20]
  %vm2446 = vcmask 1045509
  %v2447 = vsel %vm2446, %v2445, %v2443
  %s2448 = scalar_lea.vmem %s0, 984
  %v2449 = vld [vmem:[%s2448] sm:$0x40]
  %vm2450 = vcmask 1046534
  %v2451 = vsel %vm2450, %v2449, %v2447
  %s2452 = scalar_lea.vmem %s0, 1015
  %v2453 = vld [vmem:[%s2452] sm:$0x80]
  %vm2454 = vcmask 1047559
  %v2455 = vsel %vm2454, %v2453, %v2451
  %2456 = vrot.lane.b32.xlu0 %v2455, 64
  %v2457 = vpop.permute.xlu0 %2456
  %vm2458 = vcmask 785920
  %s2459 = scalar_lea.vmem %s1, 248
  %2460 = vst.msk [vmem:[%s2459] sm:$0xff] %vm2458, %v2457
  %s2461 = scalar_lea.vmem %s0, 1
  %v2462 = vld [vmem:[%s2461] sm:$0x1]
  %s2463 = scalar_lea.vmem %s0, 32
  %v2464 = vld [vmem:[%s2463] sm:$0x2]
  %vm2465 = vcmask 1041409
  %v2466 = vsel %vm2465, %v2464, %v2462
  %s2467 = scalar_lea.vmem %s0, 63
  %v2468 = vld [vmem:[%s2467] sm:$0x4]
  %vm2469 = vcmask 1042434
  %v2470 = vsel %vm2469, %v2468, %v2466
  %s2471 = scalar_lea.vmem %s0, 94
  %v2472 = vld [vmem:[%s2471] sm:$0x8]
  %vm2473 = vcmask 1043459
  %v2474 = vsel %vm2473, %v2472, %v2470
  %s2475 = scalar_lea.vmem %s0, 125
  %v2476 = vld [vmem:[%s2475] sm:$0x10]
  %vm2477 = vcmask 1044484
  %v2478 = vsel %vm2477, %v2476, %v2474
  %s2479 = scalar_lea.vmem %s0, 156
  %v2480 = vld [vmem:[%s2479] sm:$0x20]
  %vm2481 = vcmask 1045509
  %v2482 = vsel %vm2481, %v2480, %v2478
  %s2483 = scalar_lea.vmem %s0, 187
  %v2484 = vld [vmem:[%s2483] sm:$0x40]
  %vm2485 = vcmask 1046534
  %v2486 = vsel %vm2485, %v2484, %v2482
  %s2487 = scalar_lea.vmem %s0, 218
  %v2488 = vld [vmem:[%s2487] sm:$0x80]
  %vm2489 = vcmask 1047559
  %v2490 = vsel %vm2489, %v2488, %v2486
  %2491 = vrot.lane.b32.xlu0 %v2490, 32
  %v2492 = vpop.permute.xlu0 %2491
  %vm2493 = vcmask 523520
  %2494 = vst.msk [vmem:[%s1] sm:$0xff] %vm2493, %v2492
  %s2495 = scalar_lea.vmem %s0, 17
  %v2496 = vld [vmem:[%s2495] sm:$0x1]
  %s2497 = scalar_lea.vmem %s0, 48
  %v2498 = vld [vmem:[%s2497] sm:$0x2]
  %vm2499 = vcmask 1041409
  %v2500 = vsel %vm2499, %v2498, %v2496
  %s2501 = scalar_lea.vmem %s0, 79
  %v2502 = vld [vmem:[%s2501] sm:$0x4]
  %vm2503 = vcmask 1042434
  %v2504 = vsel %vm2503, %v2502, %v2500
  %s2505 = scalar_lea.vmem %s0, 110
  %v2506 = vld [vmem:[%s2505] sm:$0x8]
  %vm2507 = vcmask 1043459
  %v2508 = vsel %vm2507, %v2506, %v2504
  %s2509 = scalar_lea.vmem %s0, 141
  %v2510 = vld [vmem:[%s2509] sm:$0x10]
  %vm2511 = vcmask 1044484
  %v2512 = vsel %vm2511, %v2510, %v2508
  %s2513 = scalar_lea.vmem %s0, 172
  %v2514 = vld [vmem:[%s2513] sm:$0x20]
  %vm2515 = vcmask 1045509
  %v2516 = vsel %vm2515, %v2514, %v2512
  %s2517 = scalar_lea.vmem %s0, 203
  %v2518 = vld [vmem:[%s2517] sm:$0x40]
  %vm2519 = vcmask 1046534
  %v2520 = vsel %vm2519, %v2518, %v2516
  %s2521 = scalar_lea.vmem %s0, 234
  %v2522 = vld [vmem:[%s2521] sm:$0x80]
  %vm2523 = vcmask 1047559
  %v2524 = vsel %vm2523, %v2522, %v2520
  %2525 = vrot.lane.b32.xlu0 %v2524, 32
  %v2526 = vpop.permute.xlu0 %2525
  %vm2527 = vcmask 523520
  %s2528 = scalar_lea.vmem %s1, 32
  %2529 = vst.msk [vmem:[%s2528] sm:$0xff] %vm2527, %v2526
  %s2530 = scalar_lea.vmem %s0, 257
  %v2531 = vld [vmem:[%s2530] sm:$0x1]
  %s2532 = scalar_lea.vmem %s0, 288
  %v2533 = vld [vmem:[%s2532] sm:$0x2]
  %vm2534 = vcmask 1041409
  %v2535 = vsel %vm2534, %v2533, %v2531
  %s2536 = scalar_lea.vmem %s0, 319
  %v2537 = vld [vmem:[%s2536] sm:$0x4]
  %vm2538 = vcmask 1042434
  %v2539 = vsel %vm2538, %v2537, %v2535
  %s2540 = scalar_lea.vmem %s0, 350
  %v2541 = vld [vmem:[%s2540] sm:$0x8]
  %vm2542 = vcmask 1043459
  %v2543 = vsel %vm2542, %v2541, %v2539
  %s2544 = scalar_lea.vmem %s0, 381
  %v2545 = vld [vmem:[%s2544] sm:$0x10]
  %vm2546 = vcmask 1044484
  %v2547 = vsel %vm2546, %v2545, %v2543
  %s2548 = scalar_lea.vmem %s0, 412
  %v2549 = vld [vmem:[%s2548] sm:$0x20]
  %vm2550 = vcmask 1045509
  %v2551 = vsel %vm2550, %v2549, %v2547
  %s2552 = scalar_lea.vmem %s0, 443
  %v2553 = vld [vmem:[%s2552] sm:$0x40]
  %vm2554 = vcmask 1046534
  %v2555 = vsel %vm2554, %v2553, %v2551
  %s2556 = scalar_lea.vmem %s0, 474
  %v2557 = vld [vmem:[%s2556] sm:$0x80]
  %vm2558 = vcmask 1047559
  %v2559 = vsel %vm2558, %v2557, %v2555
  %2560 = vrot.lane.b32.xlu0 %v2559, 32
  %v2561 = vpop.permute.xlu0 %2560
  %vm2562 = vcmask 523520
  %s2563 = scalar_lea.vmem %s1, 64
  %2564 = vst.msk [vmem:[%s2563] sm:$0xff] %vm2562, %v2561
  %s2565 = scalar_lea.vmem %s0, 273
  %v2566 = vld [vmem:[%s2565] sm:$0x1]
  %s2567 = scalar_lea.vmem %s0, 304
  %v2568 = vld [vmem:[%s2567] sm:$0x2]
  %vm2569 = vcmask 1041409
  %v2570 = vsel %vm2569, %v2568, %v2566
  %s2571 = scalar_lea.vmem %s0, 335
  %v2572 = vld [vmem:[%s2571] sm:$0x4]
  %vm2573 = vcmask 1042434
  %v2574 = vsel %vm2573, %v2572, %v2570
  %s2575 = scalar_lea.vmem %s0, 366
  %v2576 = vld [vmem:[%s2575] sm:$0x8]
  %vm2577 = vcmask 1043459
  %v2578 = vsel %vm2577, %v2576, %v2574
  %s2579 = scalar_lea.vmem %s0, 397
  %v2580 = vld [vmem:[%s2579] sm:$0x10]
  %vm2581 = vcmask 1044484
  %v2582 = vsel %vm2581, %v2580, %v2578
  %s2583 = scalar_lea.vmem %s0, 428
  %v2584 = vld [vmem:[%s2583] sm:$0x20]
  %vm2585 = vcmask 1045509
  %v2586 = vsel %vm2585, %v2584, %v2582
  %s2587 = scalar_lea.vmem %s0, 459
  %v2588 = vld [vmem:[%s2587] sm:$0x40]
  %vm2589 = vcmask 1046534
  %v2590 = vsel %vm2589, %v2588, %v2586
  %s2591 = scalar_lea.vmem %s0, 490
  %v2592 = vld [vmem:[%s2591] sm:$0x80]
  %vm2593 = vcmask 1047559
  %v2594 = vsel %vm2593, %v2592, %v2590
  %2595 = vrot.lane.b32.xlu0 %v2594, 32
  %v2596 = vpop.permute.xlu0 %2595
  %vm2597 = vcmask 523520
  %s2598 = scalar_lea.vmem %s1, 96
  %2599 = vst.msk [vmem:[%s2598] sm:$0xff] %vm2597, %v2596
  %s2600 = scalar_lea.vmem %s0, 513
  %v2601 = vld [vmem:[%s2600] sm:$0x1]
  %s2602 = scalar_lea.vmem %s0, 544
  %v2603 = vld [vmem:[%s2602] sm:$0x2]
  %vm2604 = vcmask 1041409
  %v2605 = vsel %vm2604, %v2603, %v2601
  %s2606 = scalar_lea.vmem %s0, 575
  %v2607 = vld [vmem:[%s2606] sm:$0x4]
  %vm2608 = vcmask 1042434
  %v2609 = vsel %vm2608, %v2607, %v2605
  %s2610 = scalar_lea.vmem %s0, 606
  %v2611 = vld [vmem:[%s2610] sm:$0x8]
  %vm2612 = vcmask 1043459
  %v2613 = vsel %vm2612, %v2611, %v2609
  %s2614 = scalar_lea.vmem %s0, 637
  %v2615 = vld [vmem:[%s2614] sm:$0x10]
  %vm2616 = vcmask 1044484
  %v2617 = vsel %vm2616, %v2615, %v2613
  %s2618 = scalar_lea.vmem %s0, 668
  %v2619 = vld [vmem:[%s2618] sm:$0x20]
  %vm2620 = vcmask 1045509
  %v2621 = vsel %vm2620, %v2619, %v2617
  %s2622 = scalar_lea.vmem %s0, 699
  %v2623 = vld [vmem:[%s2622] sm:$0x40]
  %vm2624 = vcmask 1046534
  %v2625 = vsel %vm2624, %v2623, %v2621
  %s2626 = scalar_lea.vmem %s0, 730
  %v2627 = vld [vmem:[%s2626] sm:$0x80]
  %vm2628 = vcmask 1047559
  %v2629 = vsel %vm2628, %v2627, %v2625
  %2630 = vrot.lane.b32.xlu0 %v2629, 32
  %v2631 = vpop.permute.xlu0 %2630
  %vm2632 = vcmask 523520
  %s2633 = scalar_lea.vmem %s1, 128
  %2634 = vst.msk [vmem:[%s2633] sm:$0xff] %vm2632, %v2631
  %s2635 = scalar_lea.vmem %s0, 529
  %v2636 = vld [vmem:[%s2635] sm:$0x1]
  %s2637 = scalar_lea.vmem %s0, 560
  %v2638 = vld [vmem:[%s2637] sm:$0x2]
  %vm2639 = vcmask 1041409
  %v2640 = vsel %vm2639, %v2638, %v2636
  %s2641 = scalar_lea.vmem %s0, 591
  %v2642 = vld [vmem:[%s2641] sm:$0x4]
  %vm2643 = vcmask 1042434
  %v2644 = vsel %vm2643, %v2642, %v2640
  %s2645 = scalar_lea.vmem %s0, 622
  %v2646 = vld [vmem:[%s2645] sm:$0x8]
  %vm2647 = vcmask 1043459
  %v2648 = vsel %vm2647, %v2646, %v2644
  %s2649 = scalar_lea.vmem %s0, 653
  %v2650 = vld [vmem:[%s2649] sm:$0x10]
  %vm2651 = vcmask 1044484
  %v2652 = vsel %vm2651, %v2650, %v2648
  %s2653 = scalar_lea.vmem %s0, 684
  %v2654 = vld [vmem:[%s2653] sm:$0x20]
  %vm2655 = vcmask 1045509
  %v2656 = vsel %vm2655, %v2654, %v2652
  %s2657 = scalar_lea.vmem %s0, 715
  %v2658 = vld [vmem:[%s2657] sm:$0x40]
  %vm2659 = vcmask 1046534
  %v2660 = vsel %vm2659, %v2658, %v2656
  %s2661 = scalar_lea.vmem %s0, 746
  %v2662 = vld [vmem:[%s2661] sm:$0x80]
  %vm2663 = vcmask 1047559
  %v2664 = vsel %vm2663, %v2662, %v2660
  %2665 = vrot.lane.b32.xlu0 %v2664, 32
  %v2666 = vpop.permute.xlu0 %2665
  %vm2667 = vcmask 523520
  %s2668 = scalar_lea.vmem %s1, 160
  %2669 = vst.msk [vmem:[%s2668] sm:$0xff] %vm2667, %v2666
  %s2670 = scalar_lea.vmem %s0, 769
  %v2671 = vld [vmem:[%s2670] sm:$0x1]
  %s2672 = scalar_lea.vmem %s0, 800
  %v2673 = vld [vmem:[%s2672] sm:$0x2]
  %vm2674 = vcmask 1041409
  %v2675 = vsel %vm2674, %v2673, %v2671
  %s2676 = scalar_lea.vmem %s0, 831
  %v2677 = vld [vmem:[%s2676] sm:$0x4]
  %vm2678 = vcmask 1042434
  %v2679 = vsel %vm2678, %v2677, %v2675
  %s2680 = scalar_lea.vmem %s0, 862
  %v2681 = vld [vmem:[%s2680] sm:$0x8]
  %vm2682 = vcmask 1043459
  %v2683 = vsel %vm2682, %v2681, %v2679
  %s2684 = scalar_lea.vmem %s0, 893
  %v2685 = vld [vmem:[%s2684] sm:$0x10]
  %vm2686 = vcmask 1044484
  %v2687 = vsel %vm2686, %v2685, %v2683
  %s2688 = scalar_lea.vmem %s0, 924
  %v2689 = vld [vmem:[%s2688] sm:$0x20]
  %vm2690 = vcmask 1045509
  %v2691 = vsel %vm2690, %v2689, %v2687
  %s2692 = scalar_lea.vmem %s0, 955
  %v2693 = vld [vmem:[%s2692] sm:$0x40]
  %vm2694 = vcmask 1046534
  %v2695 = vsel %vm2694, %v2693, %v2691
  %s2696 = scalar_lea.vmem %s0, 986
  %v2697 = vld [vmem:[%s2696] sm:$0x80]
  %vm2698 = vcmask 1047559
  %v2699 = vsel %vm2698, %v2697, %v2695
  %2700 = vrot.lane.b32.xlu0 %v2699, 32
  %v2701 = vpop.permute.xlu0 %2700
  %vm2702 = vcmask 523520
  %s2703 = scalar_lea.vmem %s1, 192
  %2704 = vst.msk [vmem:[%s2703] sm:$0xff] %vm2702, %v2701
  %s2705 = scalar_lea.vmem %s0, 785
  %v2706 = vld [vmem:[%s2705] sm:$0x1]
  %s2707 = scalar_lea.vmem %s0, 816
  %v2708 = vld [vmem:[%s2707] sm:$0x2]
  %vm2709 = vcmask 1041409
  %v2710 = vsel %vm2709, %v2708, %v2706
  %s2711 = scalar_lea.vmem %s0, 847
  %v2712 = vld [vmem:[%s2711] sm:$0x4]
  %vm2713 = vcmask 1042434
  %v2714 = vsel %vm2713, %v2712, %v2710
  %s2715 = scalar_lea.vmem %s0, 878
  %v2716 = vld [vmem:[%s2715] sm:$0x8]
  %vm2717 = vcmask 1043459
  %v2718 = vsel %vm2717, %v2716, %v2714
  %s2719 = scalar_lea.vmem %s0, 909
  %v2720 = vld [vmem:[%s2719] sm:$0x10]
  %vm2721 = vcmask 1044484
  %v2722 = vsel %vm2721, %v2720, %v2718
  %s2723 = scalar_lea.vmem %s0, 940
  %v2724 = vld [vmem:[%s2723] sm:$0x20]
  %vm2725 = vcmask 1045509
  %v2726 = vsel %vm2725, %v2724, %v2722
  %s2727 = scalar_lea.vmem %s0, 971
  %v2728 = vld [vmem:[%s2727] sm:$0x40]
  %vm2729 = vcmask 1046534
  %v2730 = vsel %vm2729, %v2728, %v2726
  %s2731 = scalar_lea.vmem %s0, 1002
  %v2732 = vld [vmem:[%s2731] sm:$0x80]
  %vm2733 = vcmask 1047559
  %v2734 = vsel %vm2733, %v2732, %v2730
  %2735 = vrot.lane.b32.xlu0 %v2734, 32
  %v2736 = vpop.permute.xlu0 %2735
  %vm2737 = vcmask 523520
  %s2738 = scalar_lea.vmem %s1, 224
  %2739 = vst.msk [vmem:[%s2738] sm:$0xff] %vm2737, %v2736
  %s2740 = scalar_lea.vmem %s0, 5
  %v2741 = vld [vmem:[%s2740] sm:$0x1]
  %s2742 = scalar_lea.vmem %s0, 36
  %v2743 = vld [vmem:[%s2742] sm:$0x2]
  %vm2744 = vcmask 1041409
  %v2745 = vsel %vm2744, %v2743, %v2741
  %s2746 = scalar_lea.vmem %s0, 67
  %v2747 = vld [vmem:[%s2746] sm:$0x4]
  %vm2748 = vcmask 1042434
  %v2749 = vsel %vm2748, %v2747, %v2745
  %s2750 = scalar_lea.vmem %s0, 98
  %v2751 = vld [vmem:[%s2750] sm:$0x8]
  %vm2752 = vcmask 1043459
  %v2753 = vsel %vm2752, %v2751, %v2749
  %s2754 = scalar_lea.vmem %s0, 129
  %v2755 = vld [vmem:[%s2754] sm:$0x10]
  %vm2756 = vcmask 1044484
  %v2757 = vsel %vm2756, %v2755, %v2753
  %s2758 = scalar_lea.vmem %s0, 160
  %v2759 = vld [vmem:[%s2758] sm:$0x20]
  %vm2760 = vcmask 1045509
  %v2761 = vsel %vm2760, %v2759, %v2757
  %s2762 = scalar_lea.vmem %s0, 191
  %v2763 = vld [vmem:[%s2762] sm:$0x40]
  %vm2764 = vcmask 1046534
  %v2765 = vsel %vm2764, %v2763, %v2761
  %s2766 = scalar_lea.vmem %s0, 222
  %v2767 = vld [vmem:[%s2766] sm:$0x80]
  %vm2768 = vcmask 1047559
  %v2769 = vsel %vm2768, %v2767, %v2765
  %2770 = vrot.lane.b32.xlu0 %v2769, 32
  %v2771 = vpop.permute.xlu0 %2770
  %vm2772 = vcmask 523520
  %s2773 = scalar_lea.vmem %s1, 8
  %2774 = vst.msk [vmem:[%s2773] sm:$0xff] %vm2772, %v2771
  %s2775 = scalar_lea.vmem %s0, 21
  %v2776 = vld [vmem:[%s2775] sm:$0x1]
  %s2777 = scalar_lea.vmem %s0, 52
  %v2778 = vld [vmem:[%s2777] sm:$0x2]
  %vm2779 = vcmask 1041409
  %v2780 = vsel %vm2779, %v2778, %v2776
  %s2781 = scalar_lea.vmem %s0, 83
  %v2782 = vld [vmem:[%s2781] sm:$0x4]
  %vm2783 = vcmask 1042434
  %v2784 = vsel %vm2783, %v2782, %v2780
  %s2785 = scalar_lea.vmem %s0, 114
  %v2786 = vld [vmem:[%s2785] sm:$0x8]
  %vm2787 = vcmask 1043459
  %v2788 = vsel %vm2787, %v2786, %v2784
  %s2789 = scalar_lea.vmem %s0, 145
  %v2790 = vld [vmem:[%s2789] sm:$0x10]
  %vm2791 = vcmask 1044484
  %v2792 = vsel %vm2791, %v2790, %v2788
  %s2793 = scalar_lea.vmem %s0, 176
  %v2794 = vld [vmem:[%s2793] sm:$0x20]
  %vm2795 = vcmask 1045509
  %v2796 = vsel %vm2795, %v2794, %v2792
  %s2797 = scalar_lea.vmem %s0, 207
  %v2798 = vld [vmem:[%s2797] sm:$0x40]
  %vm2799 = vcmask 1046534
  %v2800 = vsel %vm2799, %v2798, %v2796
  %s2801 = scalar_lea.vmem %s0, 238
  %v2802 = vld [vmem:[%s2801] sm:$0x80]
  %vm2803 = vcmask 1047559
  %v2804 = vsel %vm2803, %v2802, %v2800
  %2805 = vrot.lane.b32.xlu0 %v2804, 32
  %v2806 = vpop.permute.xlu0 %2805
  %vm2807 = vcmask 523520
  %s2808 = scalar_lea.vmem %s1, 40
  %2809 = vst.msk [vmem:[%s2808] sm:$0xff] %vm2807, %v2806
  %s2810 = scalar_lea.vmem %s0, 261
  %v2811 = vld [vmem:[%s2810] sm:$0x1]
  %s2812 = scalar_lea.vmem %s0, 292
  %v2813 = vld [vmem:[%s2812] sm:$0x2]
  %vm2814 = vcmask 1041409
  %v2815 = vsel %vm2814, %v2813, %v2811
  %s2816 = scalar_lea.vmem %s0, 323
  %v2817 = vld [vmem:[%s2816] sm:$0x4]
  %vm2818 = vcmask 1042434
  %v2819 = vsel %vm2818, %v2817, %v2815
  %s2820 = scalar_lea.vmem %s0, 354
  %v2821 = vld [vmem:[%s2820] sm:$0x8]
  %vm2822 = vcmask 1043459
  %v2823 = vsel %vm2822, %v2821, %v2819
  %s2824 = scalar_lea.vmem %s0, 385
  %v2825 = vld [vmem:[%s2824] sm:$0x10]
  %vm2826 = vcmask 1044484
  %v2827 = vsel %vm2826, %v2825, %v2823
  %s2828 = scalar_lea.vmem %s0, 416
  %v2829 = vld [vmem:[%s2828] sm:$0x20]
  %vm2830 = vcmask 1045509
  %v2831 = vsel %vm2830, %v2829, %v2827
  %s2832 = scalar_lea.vmem %s0, 447
  %v2833 = vld [vmem:[%s2832] sm:$0x40]
  %vm2834 = vcmask 1046534
  %v2835 = vsel %vm2834, %v2833, %v2831
  %s2836 = scalar_lea.vmem %s0, 478
  %v2837 = vld [vmem:[%s2836] sm:$0x80]
  %vm2838 = vcmask 1047559
  %v2839 = vsel %vm2838, %v2837, %v2835
  %2840 = vrot.lane.b32.xlu0 %v2839, 32
  %v2841 = vpop.permute.xlu0 %2840
  %vm2842 = vcmask 523520
  %s2843 = scalar_lea.vmem %s1, 72
  %2844 = vst.msk [vmem:[%s2843] sm:$0xff] %vm2842, %v2841
  %s2845 = scalar_lea.vmem %s0, 277
  %v2846 = vld [vmem:[%s2845] sm:$0x1]
  %s2847 = scalar_lea.vmem %s0, 308
  %v2848 = vld [vmem:[%s2847] sm:$0x2]
  %vm2849 = vcmask 1041409
  %v2850 = vsel %vm2849, %v2848, %v2846
  %s2851 = scalar_lea.vmem %s0, 339
  %v2852 = vld [vmem:[%s2851] sm:$0x4]
  %vm2853 = vcmask 1042434
  %v2854 = vsel %vm2853, %v2852, %v2850
  %s2855 = scalar_lea.vmem %s0, 370
  %v2856 = vld [vmem:[%s2855] sm:$0x8]
  %vm2857 = vcmask 1043459
  %v2858 = vsel %vm2857, %v2856, %v2854
  %s2859 = scalar_lea.vmem %s0, 401
  %v2860 = vld [vmem:[%s2859] sm:$0x10]
  %vm2861 = vcmask 1044484
  %v2862 = vsel %vm2861, %v2860, %v2858
  %s2863 = scalar_lea.vmem %s0, 432
  %v2864 = vld [vmem:[%s2863] sm:$0x20]
  %vm2865 = vcmask 1045509
  %v2866 = vsel %vm2865, %v2864, %v2862
  %s2867 = scalar_lea.vmem %s0, 463
  %v2868 = vld [vmem:[%s2867] sm:$0x40]
  %vm2869 = vcmask 1046534
  %v2870 = vsel %vm2869, %v2868, %v2866
  %s2871 = scalar_lea.vmem %s0, 494
  %v2872 = vld [vmem:[%s2871] sm:$0x80]
  %vm2873 = vcmask 1047559
  %v2874 = vsel %vm2873, %v2872, %v2870
  %2875 = vrot.lane.b32.xlu0 %v2874, 32
  %v2876 = vpop.permute.xlu0 %2875
  %vm2877 = vcmask 523520
  %s2878 = scalar_lea.vmem %s1, 104
  %2879 = vst.msk [vmem:[%s2878] sm:$0xff] %vm2877, %v2876
  %s2880 = scalar_lea.vmem %s0, 517
  %v2881 = vld [vmem:[%s2880] sm:$0x1]
  %s2882 = scalar_lea.vmem %s0, 548
  %v2883 = vld [vmem:[%s2882] sm:$0x2]
  %vm2884 = vcmask 1041409
  %v2885 = vsel %vm2884, %v2883, %v2881
  %s2886 = scalar_lea.vmem %s0, 579
  %v2887 = vld [vmem:[%s2886] sm:$0x4]
  %vm2888 = vcmask 1042434
  %v2889 = vsel %vm2888, %v2887, %v2885
  %s2890 = scalar_lea.vmem %s0, 610
  %v2891 = vld [vmem:[%s2890] sm:$0x8]
  %vm2892 = vcmask 1043459
  %v2893 = vsel %vm2892, %v2891, %v2889
  %s2894 = scalar_lea.vmem %s0, 641
  %v2895 = vld [vmem:[%s2894] sm:$0x10]
  %vm2896 = vcmask 1044484
  %v2897 = vsel %vm2896, %v2895, %v2893
  %s2898 = scalar_lea.vmem %s0, 672
  %v2899 = vld [vmem:[%s2898] sm:$0x20]
  %vm2900 = vcmask 1045509
  %v2901 = vsel %vm2900, %v2899, %v2897
  %s2902 = scalar_lea.vmem %s0, 703
  %v2903 = vld [vmem:[%s2902] sm:$0x40]
  %vm2904 = vcmask 1046534
  %v2905 = vsel %vm2904, %v2903, %v2901
  %s2906 = scalar_lea.vmem %s0, 734
  %v2907 = vld [vmem:[%s2906] sm:$0x80]
  %vm2908 = vcmask 1047559
  %v2909 = vsel %vm2908, %v2907, %v2905
  %2910 = vrot.lane.b32.xlu0 %v2909, 32
  %v2911 = vpop.permute.xlu0 %2910
  %vm2912 = vcmask 523520
  %s2913 = scalar_lea.vmem %s1, 136
  %2914 = vst.msk [vmem:[%s2913] sm:$0xff] %vm2912, %v2911
  %s2915 = scalar_lea.vmem %s0, 533
  %v2916 = vld [vmem:[%s2915] sm:$0x1]
  %s2917 = scalar_lea.vmem %s0, 564
  %v2918 = vld [vmem:[%s2917] sm:$0x2]
  %vm2919 = vcmask 1041409
  %v2920 = vsel %vm2919, %v2918, %v2916
  %s2921 = scalar_lea.vmem %s0, 595
  %v2922 = vld [vmem:[%s2921] sm:$0x4]
  %vm2923 = vcmask 1042434
  %v2924 = vsel %vm2923, %v2922, %v2920
  %s2925 = scalar_lea.vmem %s0, 626
  %v2926 = vld [vmem:[%s2925] sm:$0x8]
  %vm2927 = vcmask 1043459
  %v2928 = vsel %vm2927, %v2926, %v2924
  %s2929 = scalar_lea.vmem %s0, 657
  %v2930 = vld [vmem:[%s2929] sm:$0x10]
  %vm2931 = vcmask 1044484
  %v2932 = vsel %vm2931, %v2930, %v2928
  %s2933 = scalar_lea.vmem %s0, 688
  %v2934 = vld [vmem:[%s2933] sm:$0x20]
  %vm2935 = vcmask 1045509
  %v2936 = vsel %vm2935, %v2934, %v2932
  %s2937 = scalar_lea.vmem %s0, 719
  %v2938 = vld [vmem:[%s2937] sm:$0x40]
  %vm2939 = vcmask 1046534
  %v2940 = vsel %vm2939, %v2938, %v2936
  %s2941 = scalar_lea.vmem %s0, 750
  %v2942 = vld [vmem:[%s2941] sm:$0x80]
  %vm2943 = vcmask 1047559
  %v2944 = vsel %vm2943, %v2942, %v2940
  %2945 = vrot.lane.b32.xlu0 %v2944, 32
  %v2946 = vpop.permute.xlu0 %2945
  %vm2947 = vcmask 523520
  %s2948 = scalar_lea.vmem %s1, 168
  %2949 = vst.msk [vmem:[%s2948] sm:$0xff] %vm2947, %v2946
  %s2950 = scalar_lea.vmem %s0, 773
  %v2951 = vld [vmem:[%s2950] sm:$0x1]
  %s2952 = scalar_lea.vmem %s0, 804
  %v2953 = vld [vmem:[%s2952] sm:$0x2]
  %vm2954 = vcmask 1041409
  %v2955 = vsel %vm2954, %v2953, %v2951
  %s2956 = scalar_lea.vmem %s0, 835
  %v2957 = vld [vmem:[%s2956] sm:$0x4]
  %vm2958 = vcmask 1042434
  %v2959 = vsel %vm2958, %v2957, %v2955
  %s2960 = scalar_lea.vmem %s0, 866
  %v2961 = vld [vmem:[%s2960] sm:$0x8]
  %vm2962 = vcmask 1043459
  %v2963 = vsel %vm2962, %v2961, %v2959
  %s2964 = scalar_lea.vmem %s0, 897
  %v2965 = vld [vmem:[%s2964] sm:$0x10]
  %vm2966 = vcmask 1044484
  %v2967 = vsel %vm2966, %v2965, %v2963
  %s2968 = scalar_lea.vmem %s0, 928
  %v2969 = vld [vmem:[%s2968] sm:$0x20]
  %vm2970 = vcmask 1045509
  %v2971 = vsel %vm2970, %v2969, %v2967
  %s2972 = scalar_lea.vmem %s0, 959
  %v2973 = vld [vmem:[%s2972] sm:$0x40]
  %vm2974 = vcmask 1046534
  %v2975 = vsel %vm2974, %v2973, %v2971
  %s2976 = scalar_lea.vmem %s0, 990
  %v2977 = vld [vmem:[%s2976] sm:$0x80]
  %vm2978 = vcmask 1047559
  %v2979 = vsel %vm2978, %v2977, %v2975
  %2980 = vrot.lane.b32.xlu0 %v2979, 32
  %v2981 = vpop.permute.xlu0 %2980
  %vm2982 = vcmask 523520
  %s2983 = scalar_lea.vmem %s1, 200
  %2984 = vst.msk [vmem:[%s2983] sm:$0xff] %vm2982, %v2981
  %s2985 = scalar_lea.vmem %s0, 789
  %v2986 = vld [vmem:[%s2985] sm:$0x1]
  %s2987 = scalar_lea.vmem %s0, 820
  %v2988 = vld [vmem:[%s2987] sm:$0x2]
  %vm2989 = vcmask 1041409
  %v2990 = vsel %vm2989, %v2988, %v2986
  %s2991 = scalar_lea.vmem %s0, 851
  %v2992 = vld [vmem:[%s2991] sm:$0x4]
  %vm2993 = vcmask 1042434
  %v2994 = vsel %vm2993, %v2992, %v2990
  %s2995 = scalar_lea.vmem %s0, 882
  %v2996 = vld [vmem:[%s2995] sm:$0x8]
  %vm2997 = vcmask 1043459
  %v2998 = vsel %vm2997, %v2996, %v2994
  %s2999 = scalar_lea.vmem %s0, 913
  %v3000 = vld [vmem:[%s2999] sm:$0x10]
  %vm3001 = vcmask 1044484
  %v3002 = vsel %vm3001, %v3000, %v2998
  %s3003 = scalar_lea.vmem %s0, 944
  %v3004 = vld [vmem:[%s3003] sm:$0x20]
  %vm3005 = vcmask 1045509
  %v3006 = vsel %vm3005, %v3004, %v3002
  %s3007 = scalar_lea.vmem %s0, 975
  %v3008 = vld [vmem:[%s3007] sm:$0x40]
  %vm3009 = vcmask 1046534
  %v3010 = vsel %vm3009, %v3008, %v3006
  %s3011 = scalar_lea.vmem %s0, 1006
  %v3012 = vld [vmem:[%s3011] sm:$0x80]
  %vm3013 = vcmask 1047559
  %v3014 = vsel %vm3013, %v3012, %v3010
  %3015 = vrot.lane.b32.xlu0 %v3014, 32
  %v3016 = vpop.permute.xlu0 %3015
  %vm3017 = vcmask 523520
  %s3018 = scalar_lea.vmem %s1, 232
  %3019 = vst.msk [vmem:[%s3018] sm:$0xff] %vm3017, %v3016
  %s3020 = scalar_lea.vmem %s0, 9
  %v3021 = vld [vmem:[%s3020] sm:$0x1]
  %s3022 = scalar_lea.vmem %s0, 40
  %v3023 = vld [vmem:[%s3022] sm:$0x2]
  %vm3024 = vcmask 1041409
  %v3025 = vsel %vm3024, %v3023, %v3021
  %s3026 = scalar_lea.vmem %s0, 71
  %v3027 = vld [vmem:[%s3026] sm:$0x4]
  %vm3028 = vcmask 1042434
  %v3029 = vsel %vm3028, %v3027, %v3025
  %s3030 = scalar_lea.vmem %s0, 102
  %v3031 = vld [vmem:[%s3030] sm:$0x8]
  %vm3032 = vcmask 1043459
  %v3033 = vsel %vm3032, %v3031, %v3029
  %s3034 = scalar_lea.vmem %s0, 133
  %v3035 = vld [vmem:[%s3034] sm:$0x10]
  %vm3036 = vcmask 1044484
  %v3037 = vsel %vm3036, %v3035, %v3033
  %s3038 = scalar_lea.vmem %s0, 164
  %v3039 = vld [vmem:[%s3038] sm:$0x20]
  %vm3040 = vcmask 1045509
  %v3041 = vsel %vm3040, %v3039, %v3037
  %s3042 = scalar_lea.vmem %s0, 195
  %v3043 = vld [vmem:[%s3042] sm:$0x40]
  %vm3044 = vcmask 1046534
  %v3045 = vsel %vm3044, %v3043, %v3041
  %s3046 = scalar_lea.vmem %s0, 226
  %v3047 = vld [vmem:[%s3046] sm:$0x80]
  %vm3048 = vcmask 1047559
  %v3049 = vsel %vm3048, %v3047, %v3045
  %3050 = vrot.lane.b32.xlu0 %v3049, 32
  %v3051 = vpop.permute.xlu0 %3050
  %vm3052 = vcmask 523520
  %s3053 = scalar_lea.vmem %s1, 16
  %3054 = vst.msk [vmem:[%s3053] sm:$0xff] %vm3052, %v3051
  %s3055 = scalar_lea.vmem %s0, 25
  %v3056 = vld [vmem:[%s3055] sm:$0x1]
  %s3057 = scalar_lea.vmem %s0, 56
  %v3058 = vld [vmem:[%s3057] sm:$0x2]
  %vm3059 = vcmask 1041409
  %v3060 = vsel %vm3059, %v3058, %v3056
  %s3061 = scalar_lea.vmem %s0, 87
  %v3062 = vld [vmem:[%s3061] sm:$0x4]
  %vm3063 = vcmask 1042434
  %v3064 = vsel %vm3063, %v3062, %v3060
  %s3065 = scalar_lea.vmem %s0, 118
  %v3066 = vld [vmem:[%s3065] sm:$0x8]
  %vm3067 = vcmask 1043459
  %v3068 = vsel %vm3067, %v3066, %v3064
  %s3069 = scalar_lea.vmem %s0, 149
  %v3070 = vld [vmem:[%s3069] sm:$0x10]
  %vm3071 = vcmask 1044484
  %v3072 = vsel %vm3071, %v3070, %v3068
  %s3073 = scalar_lea.vmem %s0, 180
  %v3074 = vld [vmem:[%s3073] sm:$0x20]
  %vm3075 = vcmask 1045509
  %v3076 = vsel %vm3075, %v3074, %v3072
  %s3077 = scalar_lea.vmem %s0, 211
  %v3078 = vld [vmem:[%s3077] sm:$0x40]
  %vm3079 = vcmask 1046534
  %v3080 = vsel %vm3079, %v3078, %v3076
  %s3081 = scalar_lea.vmem %s0, 242
  %v3082 = vld [vmem:[%s3081] sm:$0x80]
  %vm3083 = vcmask 1047559
  %v3084 = vsel %vm3083, %v3082, %v3080
  %3085 = vrot.lane.b32.xlu0 %v3084, 32
  %v3086 = vpop.permute.xlu0 %3085
  %vm3087 = vcmask 523520
  %s3088 = scalar_lea.vmem %s1, 48
  %3089 = vst.msk [vmem:[%s3088] sm:$0xff] %vm3087, %v3086
  %s3090 = scalar_lea.vmem %s0, 265
  %v3091 = vld [vmem:[%s3090] sm:$0x1]
  %s3092 = scalar_lea.vmem %s0, 296
  %v3093 = vld [vmem:[%s3092] sm:$0x2]
  %vm3094 = vcmask 1041409
  %v3095 = vsel %vm3094, %v3093, %v3091
  %s3096 = scalar_lea.vmem %s0, 327
  %v3097 = vld [vmem:[%s3096] sm:$0x4]
  %vm3098 = vcmask 1042434
  %v3099 = vsel %vm3098, %v3097, %v3095
  %s3100 = scalar_lea.vmem %s0, 358
  %v3101 = vld [vmem:[%s3100] sm:$0x8]
  %vm3102 = vcmask 1043459
  %v3103 = vsel %vm3102, %v3101, %v3099
  %s3104 = scalar_lea.vmem %s0, 389
  %v3105 = vld [vmem:[%s3104] sm:$0x10]
  %vm3106 = vcmask 1044484
  %v3107 = vsel %vm3106, %v3105, %v3103
  %s3108 = scalar_lea.vmem %s0, 420
  %v3109 = vld [vmem:[%s3108] sm:$0x20]
  %vm3110 = vcmask 1045509
  %v3111 = vsel %vm3110, %v3109, %v3107
  %s3112 = scalar_lea.vmem %s0, 451
  %v3113 = vld [vmem:[%s3112] sm:$0x40]
  %vm3114 = vcmask 1046534
  %v3115 = vsel %vm3114, %v3113, %v3111
  %s3116 = scalar_lea.vmem %s0, 482
  %v3117 = vld [vmem:[%s3116] sm:$0x80]
  %vm3118 = vcmask 1047559
  %v3119 = vsel %vm3118, %v3117, %v3115
  %3120 = vrot.lane.b32.xlu0 %v3119, 32
  %v3121 = vpop.permute.xlu0 %3120
  %vm3122 = vcmask 523520
  %s3123 = scalar_lea.vmem %s1, 80
  %3124 = vst.msk [vmem:[%s3123] sm:$0xff] %vm3122, %v3121
  %s3125 = scalar_lea.vmem %s0, 281
  %v3126 = vld [vmem:[%s3125] sm:$0x1]
  %s3127 = scalar_lea.vmem %s0, 312
  %v3128 = vld [vmem:[%s3127] sm:$0x2]
  %vm3129 = vcmask 1041409
  %v3130 = vsel %vm3129, %v3128, %v3126
  %s3131 = scalar_lea.vmem %s0, 343
  %v3132 = vld [vmem:[%s3131] sm:$0x4]
  %vm3133 = vcmask 1042434
  %v3134 = vsel %vm3133, %v3132, %v3130
  %s3135 = scalar_lea.vmem %s0, 374
  %v3136 = vld [vmem:[%s3135] sm:$0x8]
  %vm3137 = vcmask 1043459
  %v3138 = vsel %vm3137, %v3136, %v3134
  %s3139 = scalar_lea.vmem %s0, 405
  %v3140 = vld [vmem:[%s3139] sm:$0x10]
  %vm3141 = vcmask 1044484
  %v3142 = vsel %vm3141, %v3140, %v3138
  %s3143 = scalar_lea.vmem %s0, 436
  %v3144 = vld [vmem:[%s3143] sm:$0x20]
  %vm3145 = vcmask 1045509
  %v3146 = vsel %vm3145, %v3144, %v3142
  %s3147 = scalar_lea.vmem %s0, 467
  %v3148 = vld [vmem:[%s3147] sm:$0x40]
  %vm3149 = vcmask 1046534
  %v3150 = vsel %vm3149, %v3148, %v3146
  %s3151 = scalar_lea.vmem %s0, 498
  %v3152 = vld [vmem:[%s3151] sm:$0x80]
  %vm3153 = vcmask 1047559
  %v3154 = vsel %vm3153, %v3152, %v3150
  %3155 = vrot.lane.b32.xlu0 %v3154, 32
  %v3156 = vpop.permute.xlu0 %3155
  %vm3157 = vcmask 523520
  %s3158 = scalar_lea.vmem %s1, 112
  %3159 = vst.msk [vmem:[%s3158] sm:$0xff] %vm3157, %v3156
  %s3160 = scalar_lea.vmem %s0, 521
  %v3161 = vld [vmem:[%s3160] sm:$0x1]
  %s3162 = scalar_lea.vmem %s0, 552
  %v3163 = vld [vmem:[%s3162] sm:$0x2]
  %vm3164 = vcmask 1041409
  %v3165 = vsel %vm3164, %v3163, %v3161
  %s3166 = scalar_lea.vmem %s0, 583
  %v3167 = vld [vmem:[%s3166] sm:$0x4]
  %vm3168 = vcmask 1042434
  %v3169 = vsel %vm3168, %v3167, %v3165
  %s3170 = scalar_lea.vmem %s0, 614
  %v3171 = vld [vmem:[%s3170] sm:$0x8]
  %vm3172 = vcmask 1043459
  %v3173 = vsel %vm3172, %v3171, %v3169
  %s3174 = scalar_lea.vmem %s0, 645
  %v3175 = vld [vmem:[%s3174] sm:$0x10]
  %vm3176 = vcmask 1044484
  %v3177 = vsel %vm3176, %v3175, %v3173
  %s3178 = scalar_lea.vmem %s0, 676
  %v3179 = vld [vmem:[%s3178] sm:$0x20]
  %vm3180 = vcmask 1045509
  %v3181 = vsel %vm3180, %v3179, %v3177
  %s3182 = scalar_lea.vmem %s0, 707
  %v3183 = vld [vmem:[%s3182] sm:$0x40]
  %vm3184 = vcmask 1046534
  %v3185 = vsel %vm3184, %v3183, %v3181
  %s3186 = scalar_lea.vmem %s0, 738
  %v3187 = vld [vmem:[%s3186] sm:$0x80]
  %vm3188 = vcmask 1047559
  %v3189 = vsel %vm3188, %v3187, %v3185
  %3190 = vrot.lane.b32.xlu0 %v3189, 32
  %v3191 = vpop.permute.xlu0 %3190
  %vm3192 = vcmask 523520
  %s3193 = scalar_lea.vmem %s1, 144
  %3194 = vst.msk [vmem:[%s3193] sm:$0xff] %vm3192, %v3191
  %s3195 = scalar_lea.vmem %s0, 537
  %v3196 = vld [vmem:[%s3195] sm:$0x1]
  %s3197 = scalar_lea.vmem %s0, 568
  %v3198 = vld [vmem:[%s3197] sm:$0x2]
  %vm3199 = vcmask 1041409
  %v3200 = vsel %vm3199, %v3198, %v3196
  %s3201 = scalar_lea.vmem %s0, 599
  %v3202 = vld [vmem:[%s3201] sm:$0x4]
  %vm3203 = vcmask 1042434
  %v3204 = vsel %vm3203, %v3202, %v3200
  %s3205 = scalar_lea.vmem %s0, 630
  %v3206 = vld [vmem:[%s3205] sm:$0x8]
  %vm3207 = vcmask 1043459
  %v3208 = vsel %vm3207, %v3206, %v3204
  %s3209 = scalar_lea.vmem %s0, 661
  %v3210 = vld [vmem:[%s3209] sm:$0x10]
  %vm3211 = vcmask 1044484
  %v3212 = vsel %vm3211, %v3210, %v3208
  %s3213 = scalar_lea.vmem %s0, 692
  %v3214 = vld [vmem:[%s3213] sm:$0x20]
  %vm3215 = vcmask 1045509
  %v3216 = vsel %vm3215, %v3214, %v3212
  %s3217 = scalar_lea.vmem %s0, 723
  %v3218 = vld [vmem:[%s3217] sm:$0x40]
  %vm3219 = vcmask 1046534
  %v3220 = vsel %vm3219, %v3218, %v3216
  %s3221 = scalar_lea.vmem %s0, 754
  %v3222 = vld [vmem:[%s3221] sm:$0x80]
  %vm3223 = vcmask 1047559
  %v3224 = vsel %vm3223, %v3222, %v3220
  %3225 = vrot.lane.b32.xlu0 %v3224, 32
  %v3226 = vpop.permute.xlu0 %3225
  %vm3227 = vcmask 523520
  %s3228 = scalar_lea.vmem %s1, 176
  %3229 = vst.msk [vmem:[%s3228] sm:$0xff] %vm3227, %v3226
  %s3230 = scalar_lea.vmem %s0, 777
  %v3231 = vld [vmem:[%s3230] sm:$0x1]
  %s3232 = scalar_lea.vmem %s0, 808
  %v3233 = vld [vmem:[%s3232] sm:$0x2]
  %vm3234 = vcmask 1041409
  %v3235 = vsel %vm3234, %v3233, %v3231
  %s3236 = scalar_lea.vmem %s0, 839
  %v3237 = vld [vmem:[%s3236] sm:$0x4]
  %vm3238 = vcmask 1042434
  %v3239 = vsel %vm3238, %v3237, %v3235
  %s3240 = scalar_lea.vmem %s0, 870
  %v3241 = vld [vmem:[%s3240] sm:$0x8]
  %vm3242 = vcmask 1043459
  %v3243 = vsel %vm3242, %v3241, %v3239
  %s3244 = scalar_lea.vmem %s0, 901
  %v3245 = vld [vmem:[%s3244] sm:$0x10]
  %vm3246 = vcmask 1044484
  %v3247 = vsel %vm3246, %v3245, %v3243
  %s3248 = scalar_lea.vmem %s0, 932
  %v3249 = vld [vmem:[%s3248] sm:$0x20]
  %vm3250 = vcmask 1045509
  %v3251 = vsel %vm3250, %v3249, %v3247
  %s3252 = scalar_lea.vmem %s0, 963
  %v3253 = vld [vmem:[%s3252] sm:$0x40]
  %vm3254 = vcmask 1046534
  %v3255 = vsel %vm3254, %v3253, %v3251
  %s3256 = scalar_lea.vmem %s0, 994
  %v3257 = vld [vmem:[%s3256] sm:$0x80]
  %vm3258 = vcmask 1047559
  %v3259 = vsel %vm3258, %v3257, %v3255
  %3260 = vrot.lane.b32.xlu0 %v3259, 32
  %v3261 = vpop.permute.xlu0 %3260
  %vm3262 = vcmask 523520
  %s3263 = scalar_lea.vmem %s1, 208
  %3264 = vst.msk [vmem:[%s3263] sm:$0xff] %vm3262, %v3261
  %s3265 = scalar_lea.vmem %s0, 793
  %v3266 = vld [vmem:[%s3265] sm:$0x1]
  %s3267 = scalar_lea.vmem %s0, 824
  %v3268 = vld [vmem:[%s3267] sm:$0x2]
  %vm3269 = vcmask 1041409
  %v3270 = vsel %vm3269, %v3268, %v3266
  %s3271 = scalar_lea.vmem %s0, 855
  %v3272 = vld [vmem:[%s3271] sm:$0x4]
  %vm3273 = vcmask 1042434
  %v3274 = vsel %vm3273, %v3272, %v3270
  %s3275 = scalar_lea.vmem %s0, 886
  %v3276 = vld [vmem:[%s3275] sm:$0x8]
  %vm3277 = vcmask 1043459
  %v3278 = vsel %vm3277, %v3276, %v3274
  %s3279 = scalar_lea.vmem %s0, 917
  %v3280 = vld [vmem:[%s3279] sm:$0x10]
  %vm3281 = vcmask 1044484
  %v3282 = vsel %vm3281, %v3280, %v3278
  %s3283 = scalar_lea.vmem %s0, 948
  %v3284 = vld [vmem:[%s3283] sm:$0x20]
  %vm3285 = vcmask 1045509
  %v3286 = vsel %vm3285, %v3284, %v3282
  %s3287 = scalar_lea.vmem %s0, 979
  %v3288 = vld [vmem:[%s3287] sm:$0x40]
  %vm3289 = vcmask 1046534
  %v3290 = vsel %vm3289, %v3288, %v3286
  %s3291 = scalar_lea.vmem %s0, 1010
  %v3292 = vld [vmem:[%s3291] sm:$0x80]
  %vm3293 = vcmask 1047559
  %v3294 = vsel %vm3293, %v3292, %v3290
  %3295 = vrot.lane.b32.xlu0 %v3294, 32
  %v3296 = vpop.permute.xlu0 %3295
  %vm3297 = vcmask 523520
  %s3298 = scalar_lea.vmem %s1, 240
  %3299 = vst.msk [vmem:[%s3298] sm:$0xff] %vm3297, %v3296
  %s3300 = scalar_lea.vmem %s0, 13
  %v3301 = vld [vmem:[%s3300] sm:$0x1]
  %s3302 = scalar_lea.vmem %s0, 44
  %v3303 = vld [vmem:[%s3302] sm:$0x2]
  %vm3304 = vcmask 1041409
  %v3305 = vsel %vm3304, %v3303, %v3301
  %s3306 = scalar_lea.vmem %s0, 75
  %v3307 = vld [vmem:[%s3306] sm:$0x4]
  %vm3308 = vcmask 1042434
  %v3309 = vsel %vm3308, %v3307, %v3305
  %s3310 = scalar_lea.vmem %s0, 106
  %v3311 = vld [vmem:[%s3310] sm:$0x8]
  %vm3312 = vcmask 1043459
  %v3313 = vsel %vm3312, %v3311, %v3309
  %s3314 = scalar_lea.vmem %s0, 137
  %v3315 = vld [vmem:[%s3314] sm:$0x10]
  %vm3316 = vcmask 1044484
  %v3317 = vsel %vm3316, %v3315, %v3313
  %s3318 = scalar_lea.vmem %s0, 168
  %v3319 = vld [vmem:[%s3318] sm:$0x20]
  %vm3320 = vcmask 1045509
  %v3321 = vsel %vm3320, %v3319, %v3317
  %s3322 = scalar_lea.vmem %s0, 199
  %v3323 = vld [vmem:[%s3322] sm:$0x40]
  %vm3324 = vcmask 1046534
  %v3325 = vsel %vm3324, %v3323, %v3321
  %s3326 = scalar_lea.vmem %s0, 230
  %v3327 = vld [vmem:[%s3326] sm:$0x80]
  %vm3328 = vcmask 1047559
  %v3329 = vsel %vm3328, %v3327, %v3325
  %3330 = vrot.lane.b32.xlu0 %v3329, 32
  %v3331 = vpop.permute.xlu0 %3330
  %vm3332 = vcmask 523520
  %s3333 = scalar_lea.vmem %s1, 24
  %3334 = vst.msk [vmem:[%s3333] sm:$0xff] %vm3332, %v3331
  %s3335 = scalar_lea.vmem %s0, 29
  %v3336 = vld [vmem:[%s3335] sm:$0x1]
  %s3337 = scalar_lea.vmem %s0, 60
  %v3338 = vld [vmem:[%s3337] sm:$0x2]
  %vm3339 = vcmask 1041409
  %v3340 = vsel %vm3339, %v3338, %v3336
  %s3341 = scalar_lea.vmem %s0, 91
  %v3342 = vld [vmem:[%s3341] sm:$0x4]
  %vm3343 = vcmask 1042434
  %v3344 = vsel %vm3343, %v3342, %v3340
  %s3345 = scalar_lea.vmem %s0, 122
  %v3346 = vld [vmem:[%s3345] sm:$0x8]
  %vm3347 = vcmask 1043459
  %v3348 = vsel %vm3347, %v3346, %v3344
  %s3349 = scalar_lea.vmem %s0, 153
  %v3350 = vld [vmem:[%s3349] sm:$0x10]
  %vm3351 = vcmask 1044484
  %v3352 = vsel %vm3351, %v3350, %v3348
  %s3353 = scalar_lea.vmem %s0, 184
  %v3354 = vld [vmem:[%s3353] sm:$0x20]
  %vm3355 = vcmask 1045509
  %v3356 = vsel %vm3355, %v3354, %v3352
  %s3357 = scalar_lea.vmem %s0, 215
  %v3358 = vld [vmem:[%s3357] sm:$0x40]
  %vm3359 = vcmask 1046534
  %v3360 = vsel %vm3359, %v3358, %v3356
  %s3361 = scalar_lea.vmem %s0, 246
  %v3362 = vld [vmem:[%s3361] sm:$0x80]
  %vm3363 = vcmask 1047559
  %v3364 = vsel %vm3363, %v3362, %v3360
  %3365 = vrot.lane.b32.xlu0 %v3364, 32
  %v3366 = vpop.permute.xlu0 %3365
  %vm3367 = vcmask 523520
  %s3368 = scalar_lea.vmem %s1, 56
  %3369 = vst.msk [vmem:[%s3368] sm:$0xff] %vm3367, %v3366
  %s3370 = scalar_lea.vmem %s0, 269
  %v3371 = vld [vmem:[%s3370] sm:$0x1]
  %s3372 = scalar_lea.vmem %s0, 300
  %v3373 = vld [vmem:[%s3372] sm:$0x2]
  %vm3374 = vcmask 1041409
  %v3375 = vsel %vm3374, %v3373, %v3371
  %s3376 = scalar_lea.vmem %s0, 331
  %v3377 = vld [vmem:[%s3376] sm:$0x4]
  %vm3378 = vcmask 1042434
  %v3379 = vsel %vm3378, %v3377, %v3375
  %s3380 = scalar_lea.vmem %s0, 362
  %v3381 = vld [vmem:[%s3380] sm:$0x8]
  %vm3382 = vcmask 1043459
  %v3383 = vsel %vm3382, %v3381, %v3379
  %s3384 = scalar_lea.vmem %s0, 393
  %v3385 = vld [vmem:[%s3384] sm:$0x10]
  %vm3386 = vcmask 1044484
  %v3387 = vsel %vm3386, %v3385, %v3383
  %s3388 = scalar_lea.vmem %s0, 424
  %v3389 = vld [vmem:[%s3388] sm:$0x20]
  %vm3390 = vcmask 1045509
  %v3391 = vsel %vm3390, %v3389, %v3387
  %s3392 = scalar_lea.vmem %s0, 455
  %v3393 = vld [vmem:[%s3392] sm:$0x40]
  %vm3394 = vcmask 1046534
  %v3395 = vsel %vm3394, %v3393, %v3391
  %s3396 = scalar_lea.vmem %s0, 486
  %v3397 = vld [vmem:[%s3396] sm:$0x80]
  %vm3398 = vcmask 1047559
  %v3399 = vsel %vm3398, %v3397, %v3395
  %3400 = vrot.lane.b32.xlu0 %v3399, 32
  %v3401 = vpop.permute.xlu0 %3400
  %vm3402 = vcmask 523520
  %s3403 = scalar_lea.vmem %s1, 88
  %3404 = vst.msk [vmem:[%s3403] sm:$0xff] %vm3402, %v3401
  %s3405 = scalar_lea.vmem %s0, 285
  %v3406 = vld [vmem:[%s3405] sm:$0x1]
  %s3407 = scalar_lea.vmem %s0, 316
  %v3408 = vld [vmem:[%s3407] sm:$0x2]
  %vm3409 = vcmask 1041409
  %v3410 = vsel %vm3409, %v3408, %v3406
  %s3411 = scalar_lea.vmem %s0, 347
  %v3412 = vld [vmem:[%s3411] sm:$0x4]
  %vm3413 = vcmask 1042434
  %v3414 = vsel %vm3413, %v3412, %v3410
  %s3415 = scalar_lea.vmem %s0, 378
  %v3416 = vld [vmem:[%s3415] sm:$0x8]
  %vm3417 = vcmask 1043459
  %v3418 = vsel %vm3417, %v3416, %v3414
  %s3419 = scalar_lea.vmem %s0, 409
  %v3420 = vld [vmem:[%s3419] sm:$0x10]
  %vm3421 = vcmask 1044484
  %v3422 = vsel %vm3421, %v3420, %v3418
  %s3423 = scalar_lea.vmem %s0, 440
  %v3424 = vld [vmem:[%s3423] sm:$0x20]
  %vm3425 = vcmask 1045509
  %v3426 = vsel %vm3425, %v3424, %v3422
  %s3427 = scalar_lea.vmem %s0, 471
  %v3428 = vld [vmem:[%s3427] sm:$0x40]
  %vm3429 = vcmask 1046534
  %v3430 = vsel %vm3429, %v3428, %v3426
  %s3431 = scalar_lea.vmem %s0, 502
  %v3432 = vld [vmem:[%s3431] sm:$0x80]
  %vm3433 = vcmask 1047559
  %v3434 = vsel %vm3433, %v3432, %v3430
  %3435 = vrot.lane.b32.xlu0 %v3434, 32
  %v3436 = vpop.permute.xlu0 %3435
  %vm3437 = vcmask 523520
  %s3438 = scalar_lea.vmem %s1, 120
  %3439 = vst.msk [vmem:[%s3438] sm:$0xff] %vm3437, %v3436
  %s3440 = scalar_lea.vmem %s0, 525
  %v3441 = vld [vmem:[%s3440] sm:$0x1]
  %s3442 = scalar_lea.vmem %s0, 556
  %v3443 = vld [vmem:[%s3442] sm:$0x2]
  %vm3444 = vcmask 1041409
  %v3445 = vsel %vm3444, %v3443, %v3441
  %s3446 = scalar_lea.vmem %s0, 587
  %v3447 = vld [vmem:[%s3446] sm:$0x4]
  %vm3448 = vcmask 1042434
  %v3449 = vsel %vm3448, %v3447, %v3445
  %s3450 = scalar_lea.vmem %s0, 618
  %v3451 = vld [vmem:[%s3450] sm:$0x8]
  %vm3452 = vcmask 1043459
  %v3453 = vsel %vm3452, %v3451, %v3449
  %s3454 = scalar_lea.vmem %s0, 649
  %v3455 = vld [vmem:[%s3454] sm:$0x10]
  %vm3456 = vcmask 1044484
  %v3457 = vsel %vm3456, %v3455, %v3453
  %s3458 = scalar_lea.vmem %s0, 680
  %v3459 = vld [vmem:[%s3458] sm:$0x20]
  %vm3460 = vcmask 1045509
  %v3461 = vsel %vm3460, %v3459, %v3457
  %s3462 = scalar_lea.vmem %s0, 711
  %v3463 = vld [vmem:[%s3462] sm:$0x40]
  %vm3464 = vcmask 1046534
  %v3465 = vsel %vm3464, %v3463, %v3461
  %s3466 = scalar_lea.vmem %s0, 742
  %v3467 = vld [vmem:[%s3466] sm:$0x80]
  %vm3468 = vcmask 1047559
  %v3469 = vsel %vm3468, %v3467, %v3465
  %3470 = vrot.lane.b32.xlu0 %v3469, 32
  %v3471 = vpop.permute.xlu0 %3470
  %vm3472 = vcmask 523520
  %s3473 = scalar_lea.vmem %s1, 152
  %3474 = vst.msk [vmem:[%s3473] sm:$0xff] %vm3472, %v3471
  %s3475 = scalar_lea.vmem %s0, 541
  %v3476 = vld [vmem:[%s3475] sm:$0x1]
  %s3477 = scalar_lea.vmem %s0, 572
  %v3478 = vld [vmem:[%s3477] sm:$0x2]
  %vm3479 = vcmask 1041409
  %v3480 = vsel %vm3479, %v3478, %v3476
  %s3481 = scalar_lea.vmem %s0, 603
  %v3482 = vld [vmem:[%s3481] sm:$0x4]
  %vm3483 = vcmask 1042434
  %v3484 = vsel %vm3483, %v3482, %v3480
  %s3485 = scalar_lea.vmem %s0, 634
  %v3486 = vld [vmem:[%s3485] sm:$0x8]
  %vm3487 = vcmask 1043459
  %v3488 = vsel %vm3487, %v3486, %v3484
  %s3489 = scalar_lea.vmem %s0, 665
  %v3490 = vld [vmem:[%s3489] sm:$0x10]
  %vm3491 = vcmask 1044484
  %v3492 = vsel %vm3491, %v3490, %v3488
  %s3493 = scalar_lea.vmem %s0, 696
  %v3494 = vld [vmem:[%s3493] sm:$0x20]
  %vm3495 = vcmask 1045509
  %v3496 = vsel %vm3495, %v3494, %v3492
  %s3497 = scalar_lea.vmem %s0, 727
  %v3498 = vld [vmem:[%s3497] sm:$0x40]
  %vm3499 = vcmask 1046534
  %v3500 = vsel %vm3499, %v3498, %v3496
  %s3501 = scalar_lea.vmem %s0, 758
  %v3502 = vld [vmem:[%s3501] sm:$0x80]
  %vm3503 = vcmask 1047559
  %v3504 = vsel %vm3503, %v3502, %v3500
  %3505 = vrot.lane.b32.xlu0 %v3504, 32
  %v3506 = vpop.permute.xlu0 %3505
  %vm3507 = vcmask 523520
  %s3508 = scalar_lea.vmem %s1, 184
  %3509 = vst.msk [vmem:[%s3508] sm:$0xff] %vm3507, %v3506
  %s3510 = scalar_lea.vmem %s0, 781
  %v3511 = vld [vmem:[%s3510] sm:$0x1]
  %s3512 = scalar_lea.vmem %s0, 812
  %v3513 = vld [vmem:[%s3512] sm:$0x2]
  %vm3514 = vcmask 1041409
  %v3515 = vsel %vm3514, %v3513, %v3511
  %s3516 = scalar_lea.vmem %s0, 843
  %v3517 = vld [vmem:[%s3516] sm:$0x4]
  %vm3518 = vcmask 1042434
  %v3519 = vsel %vm3518, %v3517, %v3515
  %s3520 = scalar_lea.vmem %s0, 874
  %v3521 = vld [vmem:[%s3520] sm:$0x8]
  %vm3522 = vcmask 1043459
  %v3523 = vsel %vm3522, %v3521, %v3519
  %s3524 = scalar_lea.vmem %s0, 905
  %v3525 = vld [vmem:[%s3524] sm:$0x10]
  %vm3526 = vcmask 1044484
  %v3527 = vsel %vm3526, %v3525, %v3523
  %s3528 = scalar_lea.vmem %s0, 936
  %v3529 = vld [vmem:[%s3528] sm:$0x20]
  %vm3530 = vcmask 1045509
  %v3531 = vsel %vm3530, %v3529, %v3527
  %s3532 = scalar_lea.vmem %s0, 967
  %v3533 = vld [vmem:[%s3532] sm:$0x40]
  %vm3534 = vcmask 1046534
  %v3535 = vsel %vm3534, %v3533, %v3531
  %s3536 = scalar_lea.vmem %s0, 998
  %v3537 = vld [vmem:[%s3536] sm:$0x80]
  %vm3538 = vcmask 1047559
  %v3539 = vsel %vm3538, %v3537, %v3535
  %3540 = vrot.lane.b32.xlu0 %v3539, 32
  %v3541 = vpop.permute.xlu0 %3540
  %vm3542 = vcmask 523520
  %s3543 = scalar_lea.vmem %s1, 216
  %3544 = vst.msk [vmem:[%s3543] sm:$0xff] %vm3542, %v3541
  %s3545 = scalar_lea.vmem %s0, 797
  %v3546 = vld [vmem:[%s3545] sm:$0x1]
  %s3547 = scalar_lea.vmem %s0, 828
  %v3548 = vld [vmem:[%s3547] sm:$0x2]
  %vm3549 = vcmask 1041409
  %v3550 = vsel %vm3549, %v3548, %v3546
  %s3551 = scalar_lea.vmem %s0, 859
  %v3552 = vld [vmem:[%s3551] sm:$0x4]
  %vm3553 = vcmask 1042434
  %v3554 = vsel %vm3553, %v3552, %v3550
  %s3555 = scalar_lea.vmem %s0, 890
  %v3556 = vld [vmem:[%s3555] sm:$0x8]
  %vm3557 = vcmask 1043459
  %v3558 = vsel %vm3557, %v3556, %v3554
  %s3559 = scalar_lea.vmem %s0, 921
  %v3560 = vld [vmem:[%s3559] sm:$0x10]
  %vm3561 = vcmask 1044484
  %v3562 = vsel %vm3561, %v3560, %v3558
  %s3563 = scalar_lea.vmem %s0, 952
  %v3564 = vld [vmem:[%s3563] sm:$0x20]
  %vm3565 = vcmask 1045509
  %v3566 = vsel %vm3565, %v3564, %v3562
  %s3567 = scalar_lea.vmem %s0, 983
  %v3568 = vld [vmem:[%s3567] sm:$0x40]
  %vm3569 = vcmask 1046534
  %v3570 = vsel %vm3569, %v3568, %v3566
  %s3571 = scalar_lea.vmem %s0, 1014
  %v3572 = vld [vmem:[%s3571] sm:$0x80]
  %vm3573 = vcmask 1047559
  %v3574 = vsel %vm3573, %v3572, %v3570
  %3575 = vrot.lane.b32.xlu0 %v3574, 32
  %v3576 = vpop.permute.xlu0 %3575
  %vm3577 = vcmask 523520
  %s3578 = scalar_lea.vmem %s1, 248
  %3579 = vst.msk [vmem:[%s3578] sm:$0xff] %vm3577, %v3576

// kernel: edge_attribute_decoder.1
$region0: #{edge_attribute_decoder.1}
  #allocation0 [shape = 'u32[]', space=smem, size = 0x4, offset = 0x4, fixed_abs, tag = 'smem constant byte address 0x4 - core index']
  #allocation1 [shape = 'u32[72,128]{1,0:T(1,128)}', space=vmem, size = 0x9000, scoped, tag = 'internal scratch']
  %s0 = inlined_call_operand.vmem [shape: f32[16,32], index: 0, kind: input, shape index: {}]
  %s1 = inlined_call_operand.vmem [shape: f32[16,32], index: 1, kind: input, shape index: {}]
  %s2 = inlined_call_operand.vmem [shape: f32[32,1024], index: 2, kind: input, shape index: {}]
  %s3 = inlined_call_operand.vmem [shape: f32[32,1024], index: 3, kind: input, shape index: {}]
  %s4 = inlined_call_operand.vmem [shape: f32[1024,32], index: 4, kind: input, shape index: {}]
  %s5 = inlined_call_operand.vmem [shape: f32[32,32], index: 5, kind: input, shape index: {}]
  %s6 = inlined_call_operand.vmem [shape: f32[32,32], index: 6, kind: input, shape index: {}]
  %s7 = inlined_call_operand.vmem [shape: f32[1,32], index: 7, kind: input, shape index: {}]
  %s8 = inlined_call_operand.vmem [shape: f32[32,64], index: 8, kind: input, shape index: {}]
  %s9 = inlined_call_operand.vmem [shape: f32[32,64], index: 9, kind: input, shape index: {}]
  %s10 = inlined_call_operand.vmem [shape: f32[32,64], index: 10, kind: input, shape index: {}]
  %s11 = inlined_call_operand.vmem [shape: f32[1,64], index: 11, kind: input, shape index: {}]
  %s12 = inlined_call_operand.vmem [shape: f32[64,64], index: 12, kind: input, shape index: {}]
  %s13 = inlined_call_operand.vmem [shape: f32[1,64], index: 13, kind: input, shape index: {}]
  %s14 = inlined_call_operand.vmem [shape: f32[64,32], index: 14, kind: input, shape index: {}]
  %s15 = inlined_call_operand.vmem [shape: f32[1,32], index: 15, kind: input, shape index: {}]
  %s16 = inlined_call_operand.vmem [shape: f32[16,32], index: 16, kind: output, shape index: {}]
  %s17 = sld [smem:[#allocation0]]
  $region97: #{edge_attribute_decoder.1} parent=0
    _
  %s19 = ssub.s32 1, %s17
  %s20 = scalar_select 0, %s19, %s17
  loop: start=0, step=1, limit=4
  $region2: #{edge_attribute_decoder.1} parent=0 // loop_pre_header
    _
  $region3: #{edge_attribute_decoder.1} parent=0 // loop_header
    %s22 = sphi 0, %s26
    %p23 = scmp.ge.s32.totalorder %s22, 4
    %s32 = sphi 0, %s34
    %s35 = sphi 0, %s32
    %s36 = sphi 0, %s35
    %s52 = sphi 0, %s36
    %s58 = sphi 0, %s60
    %s61 = sphi 0, %s58
    %s62 = sphi 0, %s61
    %s78 = sphi 0, %s62
    %s82 = sphi 0, %s82
    %s84 = sphi 0, %s82
    %s85 = sphi 0, %s84
    %s99 = sphi 0, %s85
    %s103 = sphi 0, %s103
    %s105 = sphi 0, %s103
    %s106 = sphi 0, %s105
    %s120 = sphi 0, %s106
    %s124 = sphi 0, %s124
    %s126 = sphi 0, %s124
    %s127 = sphi 0, %s126
    %s141 = sphi 0, %s127
    %s145 = sphi 0, %s145
    %s147 = sphi 0, %s145
    %s148 = sphi 0, %s147
    %s162 = sphi 0, %s148
    %s166 = sphi 0, %s166
    %s168 = sphi 0, %s166
    %s169 = sphi 0, %s168
    %s183 = sphi 0, %s169
    %s187 = sphi 0, %s187
    %s189 = sphi 0, %s187
    %s190 = sphi 0, %s189
    %s204 = sphi 0, %s190
    %s208 = sphi 0, %s208
    %s210 = sphi 0, %s208
    %s211 = sphi 0, %s210
    %s225 = sphi 0, %s211
    %s229 = sphi 0, %s229
    %s231 = sphi 0, %s229
    %s232 = sphi 0, %s231
    %s246 = sphi 0, %s232
    %s250 = sphi 0, %s250
    %s252 = sphi 0, %s250
    %s253 = sphi 0, %s252
    %s267 = sphi 0, %s253
    %s271 = sphi 0, %s271
    %s273 = sphi 0, %s271
    %s274 = sphi 0, %s273
    %s288 = sphi 0, %s274
    %s292 = sphi 0, %s292
    %s294 = sphi 0, %s292
    %s295 = sphi 0, %s294
    %s309 = sphi 0, %s295
    %s313 = sphi 0, %s313
    %s315 = sphi 0, %s313
    %s316 = sphi 0, %s315
    %s330 = sphi 0, %s316
    %s334 = sphi 0, %s334
    %s336 = sphi 0, %s334
    %s337 = sphi 0, %s336
    %s351 = sphi 0, %s337
    %s355 = sphi 0, %s355
    %s357 = sphi 0, %s355
    %s358 = sphi 0, %s357
    %s372 = sphi 0, %s358
    %s378 = sphi 0, %s380
    %s381 = sphi 0, %s378
    %s382 = sphi 0, %s381
    %s398 = sphi 0, %s382
  $region4: #{edge_attribute_decoder.1} parent=0 // loop_header_branch
    %25 = sbr.rel (%p23) target = $region8
  $region5: #{edge_attribute_decoder.1} parent=0 // loop_body
    %s27 = ssub.s32 %s22, 1
    %s28 = ssub.s32 %s22, 2
    %s29 = sadd.s32 %s22, 1
    %s30 = ssub.s32 %s22, %s29
    %p31 = scmp.eq.s32.totalorder %s30, 0
    %s33 = sadd.s32 %s32, 1
    %s34 = scalar_select %p31, %s32, %s33
    %p37 = pneg %p31
    %p38 = scmp.eq.s32.totalorder %s22, 1
    %p39 = por %p37, %p38
    %p40 = scmp.ne.s32.totalorder %s32, %s35
    %p41 = scmp.eq.s32.totalorder %s22, 0
    %p42 = por %p40, %p41
    %p43 = scmp.ne.s32.totalorder %s32, %s35
    %p44 = scmp.eq.s32.totalorder %s27, 1
    %p45 = por %p43, %p44
    %p46 = scmp.ne.s32.totalorder %s35, %s36
    %p47 = scmp.eq.s32.totalorder %s27, 0
    %p48 = por %p46, %p47
    %p49 = scmp.ne.s32.totalorder %s35, %s36
    %p50 = scmp.eq.s32.totalorder %s28, 1
    %p51 = por %p49, %p50
    %p53 = scmp.ne.s32.totalorder %s36, %s52
    %p54 = scmp.eq.s32.totalorder %s28, 0
    %p55 = por %p53, %p54
    %s56 = ssub.s32 %s22, %s29
    %p57 = scmp.eq.s32.totalorder %s56, 0
    %s59 = sadd.s32 %s58, 1
    %s60 = scalar_select %p57, %s58, %s59
    %p63 = pneg %p57
    %p64 = scmp.eq.s32.totalorder %s22, 1
    %p65 = por %p63, %p64
    %p66 = scmp.ne.s32.totalorder %s58, %s61
    %p67 = scmp.eq.s32.totalorder %s22, 0
    %p68 = por %p66, %p67
    %p69 = scmp.ne.s32.totalorder %s58, %s61
    %p70 = scmp.eq.s32.totalorder %s27, 1
    %p71 = por %p69, %p70
    %p72 = scmp.ne.s32.totalorder %s61, %s62
    %p73 = scmp.eq.s32.totalorder %s27, 0
    %p74 = por %p72, %p73
    %p75 = scmp.ne.s32.totalorder %s61, %s62
    %p76 = scmp.eq.s32.totalorder %s28, 1
    %p77 = por %p75, %p76
    %p79 = scmp.ne.s32.totalorder %s62, %s78
    %p80 = scmp.eq.s32.totalorder %s28, 0
    %p81 = por %p79, %p80
    %s83 = sadd.s32 %s82, 1
    %p86 = scmp.eq.s32.totalorder %s22, 1
    %p87 = scmp.ne.s32.totalorder %s82, %s84
    %p88 = scmp.eq.s32.totalorder %s22, 0
    %p89 = por %p87, %p88
    %p90 = scmp.ne.s32.totalorder %s82, %s84
    %p91 = scmp.eq.s32.totalorder %s27, 1
    %p92 = por %p90, %p91
    %p93 = scmp.ne.s32.totalorder %s84, %s85
    %p94 = scmp.eq.s32.totalorder %s27, 0
    %p95 = por %p93, %p94
    %p96 = scmp.ne.s32.totalorder %s84, %s85
    %p97 = scmp.eq.s32.totalorder %s28, 1
    %p98 = por %p96, %p97
    %p100 = scmp.ne.s32.totalorder %s85, %s99
    %p101 = scmp.eq.s32.totalorder %s28, 0
    %p102 = por %p100, %p101
    %s104 = sadd.s32 %s103, 1
    %p107 = scmp.eq.s32.totalorder %s22, 1
    %p108 = scmp.ne.s32.totalorder %s103, %s105
    %p109 = scmp.eq.s32.totalorder %s22, 0
    %p110 = por %p108, %p109
    %p111 = scmp.ne.s32.totalorder %s103, %s105
    %p112 = scmp.eq.s32.totalorder %s27, 1
    %p113 = por %p111, %p112
    %p114 = scmp.ne.s32.totalorder %s105, %s106
    %p115 = scmp.eq.s32.totalorder %s27, 0
    %p116 = por %p114, %p115
    %p117 = scmp.ne.s32.totalorder %s105, %s106
    %p118 = scmp.eq.s32.totalorder %s28, 1
    %p119 = por %p117, %p118
    %p121 = scmp.ne.s32.totalorder %s106, %s120
    %p122 = scmp.eq.s32.totalorder %s28, 0
    %p123 = por %p121, %p122
    %s125 = sadd.s32 %s124, 1
    %p128 = scmp.eq.s32.totalorder %s22, 1
    %p129 = scmp.ne.s32.totalorder %s124, %s126
    %p130 = scmp.eq.s32.totalorder %s22, 0
    %p131 = por %p129, %p130
    %p132 = scmp.ne.s32.totalorder %s124, %s126
    %p133 = scmp.eq.s32.totalorder %s27, 1
    %p134 = por %p132, %p133
    %p135 = scmp.ne.s32.totalorder %s126, %s127
    %p136 = scmp.eq.s32.totalorder %s27, 0
    %p137 = por %p135, %p136
    %p138 = scmp.ne.s32.totalorder %s126, %s127
    %p139 = scmp.eq.s32.totalorder %s28, 1
    %p140 = por %p138, %p139
    %p142 = scmp.ne.s32.totalorder %s127, %s141
    %p143 = scmp.eq.s32.totalorder %s28, 0
    %p144 = por %p142, %p143
    %s146 = sadd.s32 %s145, 1
    %p149 = scmp.eq.s32.totalorder %s22, 1
    %p150 = scmp.ne.s32.totalorder %s145, %s147
    %p151 = scmp.eq.s32.totalorder %s22, 0
    %p152 = por %p150, %p151
    %p153 = scmp.ne.s32.totalorder %s145, %s147
    %p154 = scmp.eq.s32.totalorder %s27, 1
    %p155 = por %p153, %p154
    %p156 = scmp.ne.s32.totalorder %s147, %s148
    %p157 = scmp.eq.s32.totalorder %s27, 0
    %p158 = por %p156, %p157
    %p159 = scmp.ne.s32.totalorder %s147, %s148
    %p160 = scmp.eq.s32.totalorder %s28, 1
    %p161 = por %p159, %p160
    %p163 = scmp.ne.s32.totalorder %s148, %s162
    %p164 = scmp.eq.s32.totalorder %s28, 0
    %p165 = por %p163, %p164
    %s167 = sadd.s32 %s166, 1
    %p170 = scmp.eq.s32.totalorder %s22, 1
    %p171 = scmp.ne.s32.totalorder %s166, %s168
    %p172 = scmp.eq.s32.totalorder %s22, 0
    %p173 = por %p171, %p172
    %p174 = scmp.ne.s32.totalorder %s166, %s168
    %p175 = scmp.eq.s32.totalorder %s27, 1
    %p176 = por %p174, %p175
    %p177 = scmp.ne.s32.totalorder %s168, %s169
    %p178 = scmp.eq.s32.totalorder %s27, 0
    %p179 = por %p177, %p178
    %p180 = scmp.ne.s32.totalorder %s168, %s169
    %p181 = scmp.eq.s32.totalorder %s28, 1
    %p182 = por %p180, %p181
    %p184 = scmp.ne.s32.totalorder %s169, %s183
    %p185 = scmp.eq.s32.totalorder %s28, 0
    %p186 = por %p184, %p185
    %s188 = sadd.s32 %s187, 1
    %p191 = scmp.eq.s32.totalorder %s22, 1
    %p192 = scmp.ne.s32.totalorder %s187, %s189
    %p193 = scmp.eq.s32.totalorder %s22, 0
    %p194 = por %p192, %p193
    %p195 = scmp.ne.s32.totalorder %s187, %s189
    %p196 = scmp.eq.s32.totalorder %s27, 1
    %p197 = por %p195, %p196
    %p198 = scmp.ne.s32.totalorder %s189, %s190
    %p199 = scmp.eq.s32.totalorder %s27, 0
    %p200 = por %p198, %p199
    %p201 = scmp.ne.s32.totalorder %s189, %s190
    %p202 = scmp.eq.s32.totalorder %s28, 1
    %p203 = por %p201, %p202
    %p205 = scmp.ne.s32.totalorder %s190, %s204
    %p206 = scmp.eq.s32.totalorder %s28, 0
    %p207 = por %p205, %p206
    %s209 = sadd.s32 %s208, 1
    %p212 = scmp.eq.s32.totalorder %s22, 1
    %p213 = scmp.ne.s32.totalorder %s208, %s210
    %p214 = scmp.eq.s32.totalorder %s22, 0
    %p215 = por %p213, %p214
    %p216 = scmp.ne.s32.totalorder %s208, %s210
    %p217 = scmp.eq.s32.totalorder %s27, 1
    %p218 = por %p216, %p217
    %p219 = scmp.ne.s32.totalorder %s210, %s211
    %p220 = scmp.eq.s32.totalorder %s27, 0
    %p221 = por %p219, %p220
    %p222 = scmp.ne.s32.totalorder %s210, %s211
    %p223 = scmp.eq.s32.totalorder %s28, 1
    %p224 = por %p222, %p223
    %p226 = scmp.ne.s32.totalorder %s211, %s225
    %p227 = scmp.eq.s32.totalorder %s28, 0
    %p228 = por %p226, %p227
    %s230 = sadd.s32 %s229, 1
    %p233 = scmp.eq.s32.totalorder %s22, 1
    %p234 = scmp.ne.s32.totalorder %s229, %s231
    %p235 = scmp.eq.s32.totalorder %s22, 0
    %p236 = por %p234, %p235
    %p237 = scmp.ne.s32.totalorder %s229, %s231
    %p238 = scmp.eq.s32.totalorder %s27, 1
    %p239 = por %p237, %p238
    %p240 = scmp.ne.s32.totalorder %s231, %s232
    %p241 = scmp.eq.s32.totalorder %s27, 0
    %p242 = por %p240, %p241
    %p243 = scmp.ne.s32.totalorder %s231, %s232
    %p244 = scmp.eq.s32.totalorder %s28, 1
    %p245 = por %p243, %p244
    %p247 = scmp.ne.s32.totalorder %s232, %s246
    %p248 = scmp.eq.s32.totalorder %s28, 0
    %p249 = por %p247, %p248
    %s251 = sadd.s32 %s250, 1
    %p254 = scmp.eq.s32.totalorder %s22, 1
    %p255 = scmp.ne.s32.totalorder %s250, %s252
    %p256 = scmp.eq.s32.totalorder %s22, 0
    %p257 = por %p255, %p256
    %p258 = scmp.ne.s32.totalorder %s250, %s252
    %p259 = scmp.eq.s32.totalorder %s27, 1
    %p260 = por %p258, %p259
    %p261 = scmp.ne.s32.totalorder %s252, %s253
    %p262 = scmp.eq.s32.totalorder %s27, 0
    %p263 = por %p261, %p262
    %p264 = scmp.ne.s32.totalorder %s252, %s253
    %p265 = scmp.eq.s32.totalorder %s28, 1
    %p266 = por %p264, %p265
    %p268 = scmp.ne.s32.totalorder %s253, %s267
    %p269 = scmp.eq.s32.totalorder %s28, 0
    %p270 = por %p268, %p269
    %s272 = sadd.s32 %s271, 1
    %p275 = scmp.eq.s32.totalorder %s22, 1
    %p276 = scmp.ne.s32.totalorder %s271, %s273
    %p277 = scmp.eq.s32.totalorder %s22, 0
    %p278 = por %p276, %p277
    %p279 = scmp.ne.s32.totalorder %s271, %s273
    %p280 = scmp.eq.s32.totalorder %s27, 1
    %p281 = por %p279, %p280
    %p282 = scmp.ne.s32.totalorder %s273, %s274
    %p283 = scmp.eq.s32.totalorder %s27, 0
    %p284 = por %p282, %p283
    %p285 = scmp.ne.s32.totalorder %s273, %s274
    %p286 = scmp.eq.s32.totalorder %s28, 1
    %p287 = por %p285, %p286
    %p289 = scmp.ne.s32.totalorder %s274, %s288
    %p290 = scmp.eq.s32.totalorder %s28, 0
    %p291 = por %p289, %p290
    %s293 = sadd.s32 %s292, 1
    %p296 = scmp.eq.s32.totalorder %s22, 1
    %p297 = scmp.ne.s32.totalorder %s292, %s294
    %p298 = scmp.eq.s32.totalorder %s22, 0
    %p299 = por %p297, %p298
    %p300 = scmp.ne.s32.totalorder %s292, %s294
    %p301 = scmp.eq.s32.totalorder %s27, 1
    %p302 = por %p300, %p301
    %p303 = scmp.ne.s32.totalorder %s294, %s295
    %p304 = scmp.eq.s32.totalorder %s27, 0
    %p305 = por %p303, %p304
    %p306 = scmp.ne.s32.totalorder %s294, %s295
    %p307 = scmp.eq.s32.totalorder %s28, 1
    %p308 = por %p306, %p307
    %p310 = scmp.ne.s32.totalorder %s295, %s309
    %p311 = scmp.eq.s32.totalorder %s28, 0
    %p312 = por %p310, %p311
    %s314 = sadd.s32 %s313, 1
    %p317 = scmp.eq.s32.totalorder %s22, 1
    %p318 = scmp.ne.s32.totalorder %s313, %s315
    %p319 = scmp.eq.s32.totalorder %s22, 0
    %p320 = por %p318, %p319
    %p321 = scmp.ne.s32.totalorder %s313, %s315
    %p322 = scmp.eq.s32.totalorder %s27, 1
    %p323 = por %p321, %p322
    %p324 = scmp.ne.s32.totalorder %s315, %s316
    %p325 = scmp.eq.s32.totalorder %s27, 0
    %p326 = por %p324, %p325
    %p327 = scmp.ne.s32.totalorder %s315, %s316
    %p328 = scmp.eq.s32.totalorder %s28, 1
    %p329 = por %p327, %p328
    %p331 = scmp.ne.s32.totalorder %s316, %s330
    %p332 = scmp.eq.s32.totalorder %s28, 0
    %p333 = por %p331, %p332
    %s335 = sadd.s32 %s334, 1
    %p338 = scmp.eq.s32.totalorder %s22, 1
    %p339 = scmp.ne.s32.totalorder %s334, %s336
    %p340 = scmp.eq.s32.totalorder %s22, 0
    %p341 = por %p339, %p340
    %p342 = scmp.ne.s32.totalorder %s334, %s336
    %p343 = scmp.eq.s32.totalorder %s27, 1
    %p344 = por %p342, %p343
    %p345 = scmp.ne.s32.totalorder %s336, %s337
    %p346 = scmp.eq.s32.totalorder %s27, 0
    %p347 = por %p345, %p346
    %p348 = scmp.ne.s32.totalorder %s336, %s337
    %p349 = scmp.eq.s32.totalorder %s28, 1
    %p350 = por %p348, %p349
    %p352 = scmp.ne.s32.totalorder %s337, %s351
    %p353 = scmp.eq.s32.totalorder %s28, 0
    %p354 = por %p352, %p353
    %s356 = sadd.s32 %s355, 1
    %p359 = scmp.eq.s32.totalorder %s22, 1
    %p360 = scmp.ne.s32.totalorder %s355, %s357
    %p361 = scmp.eq.s32.totalorder %s22, 0
    %p362 = por %p360, %p361
    %p363 = scmp.ne.s32.totalorder %s355, %s357
    %p364 = scmp.eq.s32.totalorder %s27, 1
    %p365 = por %p363, %p364
    %p366 = scmp.ne.s32.totalorder %s357, %s358
    %p367 = scmp.eq.s32.totalorder %s27, 0
    %p368 = por %p366, %p367
    %p369 = scmp.ne.s32.totalorder %s357, %s358
    %p370 = scmp.eq.s32.totalorder %s28, 1
    %p371 = por %p369, %p370
    %p373 = scmp.ne.s32.totalorder %s358, %s372
    %p374 = scmp.eq.s32.totalorder %s28, 0
    %p375 = por %p373, %p374
    %s376 = ssub.s32 %s22, %s29
    %p377 = scmp.eq.s32.totalorder %s376, 0
    %s379 = sadd.s32 %s378, 1
    %s380 = scalar_select %p377, %s378, %s379
    %p383 = pneg %p377
    %p384 = scmp.eq.s32.totalorder %s22, 1
    %p385 = por %p383, %p384
    %p386 = scmp.ne.s32.totalorder %s378, %s381
    %p387 = scmp.eq.s32.totalorder %s22, 0
    %p388 = por %p386, %p387
    %p389 = scmp.ne.s32.totalorder %s378, %s381
    %p390 = scmp.eq.s32.totalorder %s27, 1
    %p391 = por %p389, %p390
    %p392 = scmp.ne.s32.totalorder %s381, %s382
    %p393 = scmp.eq.s32.totalorder %s27, 0
    %p394 = por %p392, %p393
    %p395 = scmp.ne.s32.totalorder %s381, %s382
    %p396 = scmp.eq.s32.totalorder %s28, 1
    %p397 = por %p395, %p396
    %p399 = scmp.ne.s32.totalorder %s382, %s398
    %p400 = scmp.eq.s32.totalorder %s28, 0
    %p401 = por %p399, %p400
    %p402 = scmp.le.s32.totalorder 1, %s22
    %p403 = scmp.lt.s32.totalorder %s22, 3
    %p404 = pnand %p402, %p403
    %p405 = pneg %p404
    // Predicated region
    $region9: #{edge_attribute_decoder.1} parent=5 // pred_check
      _
    $region10: #{edge_attribute_decoder.1} parent=5 // pred_check_branch
      %407 = sbr.rel (%p404) target = $region12
    $region11: #{edge_attribute_decoder.1} parent=5 // pred_region
      %s408 = ssub.s32 %s22, 1
      // Predicated region
      $region13: #{edge_attribute_decoder.1} parent=11 // pred_check
        %p409 = pneg %p95
      $region14: #{edge_attribute_decoder.1} parent=11 // pred_check_branch
        %411 = sbr.rel (%p409) target = $region16
      $region15: #{edge_attribute_decoder.1} parent=11 // pred_region
        _
      $region16: #{edge_attribute_decoder.1} parent=11 // pred_fallthru
        _
      // Predicated region
      $region17: #{edge_attribute_decoder.1} parent=11 // pred_check
        %p412 = pneg %p116
      $region18: #{edge_attribute_decoder.1} parent=11 // pred_check_branch
        %414 = sbr.rel (%p412) target = $region20
      $region19: #{edge_attribute_decoder.1} parent=11 // pred_region
        _
      $region20: #{edge_attribute_decoder.1} parent=11 // pred_fallthru
        _
      // Predicated region
      $region21: #{edge_attribute_decoder.1} parent=11 // pred_check
        %p415 = pneg %p137
      $region22: #{edge_attribute_decoder.1} parent=11 // pred_check_branch
        %417 = sbr.rel (%p415) target = $region24
      $region23: #{edge_attribute_decoder.1} parent=11 // pred_region
        _
      $region24: #{edge_attribute_decoder.1} parent=11 // pred_fallthru
        _
      // Predicated region
      $region25: #{edge_attribute_decoder.1} parent=11 // pred_check
        %p418 = pneg %p158
      $region26: #{edge_attribute_decoder.1} parent=11 // pred_check_branch
        %420 = sbr.rel (%p418) target = $region28
      $region27: #{edge_attribute_decoder.1} parent=11 // pred_region
        _
      $region28: #{edge_attribute_decoder.1} parent=11 // pred_fallthru
        _
      // Predicated region
      $region29: #{edge_attribute_decoder.1} parent=11 // pred_check
        %p421 = pneg %p179
      $region30: #{edge_attribute_decoder.1} parent=11 // pred_check_branch
        %423 = sbr.rel (%p421) target = $region32
      $region31: #{edge_attribute_decoder.1} parent=11 // pred_region
        _
      $region32: #{edge_attribute_decoder.1} parent=11 // pred_fallthru
        _
      // Predicated region
      $region33: #{edge_attribute_decoder.1} parent=11 // pred_check
        %p424 = pneg %p200
      $region34: #{edge_attribute_decoder.1} parent=11 // pred_check_branch
        %426 = sbr.rel (%p424) target = $region36
      $region35: #{edge_attribute_decoder.1} parent=11 // pred_region
        _
      $region36: #{edge_attribute_decoder.1} parent=11 // pred_fallthru
        _
      // Predicated region
      $region37: #{edge_attribute_decoder.1} parent=11 // pred_check
        %p427 = pneg %p221
      $region38: #{edge_attribute_decoder.1} parent=11 // pred_check_branch
        %429 = sbr.rel (%p427) target = $region40
      $region39: #{edge_attribute_decoder.1} parent=11 // pred_region
        _
      $region40: #{edge_attribute_decoder.1} parent=11 // pred_fallthru
        _
      // Predicated region
      $region41: #{edge_attribute_decoder.1} parent=11 // pred_check
        %p430 = pneg %p242
      $region42: #{edge_attribute_decoder.1} parent=11 // pred_check_branch
        %432 = sbr.rel (%p430) target = $region44
      $region43: #{edge_attribute_decoder.1} parent=11 // pred_region
        _
      $region44: #{edge_attribute_decoder.1} parent=11 // pred_fallthru
        _
      // Predicated region
      $region45: #{edge_attribute_decoder.1} parent=11 // pred_check
        %p433 = pneg %p263
      $region46: #{edge_attribute_decoder.1} parent=11 // pred_check_branch
        %435 = sbr.rel (%p433) target = $region48
      $region47: #{edge_attribute_decoder.1} parent=11 // pred_region
        _
      $region48: #{edge_attribute_decoder.1} parent=11 // pred_fallthru
        _
      // Predicated region
      $region49: #{edge_attribute_decoder.1} parent=11 // pred_check
        %p436 = pneg %p284
      $region50: #{edge_attribute_decoder.1} parent=11 // pred_check_branch
        %438 = sbr.rel (%p436) target = $region52
      $region51: #{edge_attribute_decoder.1} parent=11 // pred_region
        _
      $region52: #{edge_attribute_decoder.1} parent=11 // pred_fallthru
        _
      // Predicated region
      $region53: #{edge_attribute_decoder.1} parent=11 // pred_check
        %p439 = pneg %p305
      $region54: #{edge_attribute_decoder.1} parent=11 // pred_check_branch
        %441 = sbr.rel (%p439) target = $region56
      $region55: #{edge_attribute_decoder.1} parent=11 // pred_region
        _
      $region56: #{edge_attribute_decoder.1} parent=11 // pred_fallthru
        _
      // Predicated region
      $region57: #{edge_attribute_decoder.1} parent=11 // pred_check
        %p442 = pneg %p326
      $region58: #{edge_attribute_decoder.1} parent=11 // pred_check_branch
        %444 = sbr.rel (%p442) target = $region60
      $region59: #{edge_attribute_decoder.1} parent=11 // pred_region
        _
      $region60: #{edge_attribute_decoder.1} parent=11 // pred_fallthru
        _
      // Predicated region
      $region61: #{edge_attribute_decoder.1} parent=11 // pred_check
        %p445 = pneg %p347
      $region62: #{edge_attribute_decoder.1} parent=11 // pred_check_branch
        %447 = sbr.rel (%p445) target = $region64
      $region63: #{edge_attribute_decoder.1} parent=11 // pred_region
        _
      $region64: #{edge_attribute_decoder.1} parent=11 // pred_fallthru
        _
      // Predicated region
      $region65: #{edge_attribute_decoder.1} parent=11 // pred_check
        %p448 = pneg %p368
      $region66: #{edge_attribute_decoder.1} parent=11 // pred_check_branch
        %450 = sbr.rel (%p448) target = $region68
      $region67: #{edge_attribute_decoder.1} parent=11 // pred_region
        _
      $region68: #{edge_attribute_decoder.1} parent=11 // pred_fallthru
        _
    $region12: #{edge_attribute_decoder.1} parent=5 // pred_fallthru
      _
    %p451 = scmp.lt.s32.totalorder %s22, 2
    // Predicated region
    $region69: #{edge_attribute_decoder.1} parent=5 // pred_check
      %p452 = pneg %p451
    $region70: #{edge_attribute_decoder.1} parent=5 // pred_check_branch
      %454 = sbr.rel (%p452) target = $region72
    $region71: #{edge_attribute_decoder.1} parent=5 // pred_region
      // Predicated region
      $region73: #{edge_attribute_decoder.1} parent=71 // pred_check
        %p455 = pneg %p42
      $region74: #{edge_attribute_decoder.1} parent=71 // pred_check_branch
        %457 = sbr.rel (%p455) target = $region76
      $region75: #{edge_attribute_decoder.1} parent=71 // pred_region
        %p458 = scmp.lt.s32.totalorder %s22, 1
        %s459 = scalar_select %p458, %s22, 1
        %s460 = smul.addr %s459, 8
        %s461 = scalar_lea.vmem %s0, %s460
      $region76: #{edge_attribute_decoder.1} parent=71 // pred_fallthru
        _
      // Predicated region
      $region77: #{edge_attribute_decoder.1} parent=71 // pred_check
        %p462 = pneg %p68
      $region78: #{edge_attribute_decoder.1} parent=71 // pred_check_branch
        %464 = sbr.rel (%p462) target = $region80
      $region79: #{edge_attribute_decoder.1} parent=71 // pred_region
        %p465 = scmp.lt.s32.totalorder %s22, 1
        %s466 = scalar_select %p465, %s22, 1
        %s467 = smul.addr %s466, 8
        %s468 = scalar_lea.vmem %s1, %s467
      $region80: #{edge_attribute_decoder.1} parent=71 // pred_fallthru
        _
    $region72: #{edge_attribute_decoder.1} parent=5 // pred_fallthru
      _
    %p469 = scmp.le.s32.totalorder 1, %s22
    %p470 = scmp.lt.s32.totalorder %s22, 3
    %p471 = pnand %p469, %p470
    %p472 = pneg %p471
    // Predicated region
    $region81: #{edge_attribute_decoder.1} parent=5 // pred_check
      _
    $region82: #{edge_attribute_decoder.1} parent=5 // pred_check_branch
      %474 = sbr.rel (%p471) target = $region84
    $region83: #{edge_attribute_decoder.1} parent=5 // pred_region
      %s475 = ssub.s32 %s22, 1
      %p476 = scmp.lt.s32.totalorder %s27, 1
      %s477 = scalar_select %p476, %s27, 1
      %s478 = smul.addr %s477, 8
      %s479 = scalar_lea.vmem %s0, %s478
      %p480 = pneg %p48
      %p481 = pneg %p45
      %p482 = scmp.lt.s32.totalorder %s27, 1
      %s483 = scalar_select %p482, %s27, 1
      %s484 = smul.addr %s483, 8
      %s485 = scalar_lea.vmem %s1, %s484
      %p486 = pneg %p74
      %p487 = pneg %p71
      %p488 = pneg %p95
      %p489 = pneg %p92
      %p490 = pneg %p116
      %p491 = pneg %p113
      %p492 = pneg %p137
      %p493 = pneg %p134
      %p494 = pneg %p158
      %p495 = pneg %p155
      %p496 = pneg %p179
      %p497 = pneg %p176
      %p498 = pneg %p200
      %p499 = pneg %p197
      %p500 = pneg %p221
      %p501 = pneg %p218
      %p502 = pneg %p242
      %p503 = pneg %p239
      %p504 = pneg %p263
      %p505 = pneg %p260
      %p506 = pneg %p284
      %p507 = pneg %p281
      %p508 = pneg %p305
      %p509 = pneg %p302
      %p510 = pneg %p326
      %p511 = pneg %p323
      %p512 = pneg %p347
      %p513 = pneg %p344
      %p514 = pneg %p368
      %p515 = pneg %p365
      %p516 = pneg %p394
      %p517 = pneg %p391
      %p518 = scmp.lt.s32.totalorder %s27, 1
      %s519 = scalar_select %p518, %s27, 1
      %s520 = smul.addr %s519, 8
      %s521 = scalar_lea.vmem %s16, %s520
      %p522 = scmp.lt.s32.totalorder %s27, 1
      %s523 = scalar_select %p522, %s27, 1
      %s524 = smul.addr %s523, 8
      %s525 = scalar_lea.vmem %s0, %s524
      %p526 = scmp.lt.s32.totalorder %s27, 1
      %s527 = scalar_select %p526, %s27, 1
      %s528 = smul.addr %s527, 8
      %s529 = scalar_lea.vmem %s1, %s528
      %p530 = scmp.lt.s32.totalorder %s27, 1
      %s531 = scalar_select %p530, %s27, 1
      %s532 = smul.addr %s531, 8
      %s533 = scalar_lea.vmem %s16, %s532
      %v534 = vld [vmem:[%s525] sm:$0xff]
      %v535 = vld [vmem:[%s529] sm:$0xff]
      %v536 = vld [vmem:[%s2] sm:$0xff]
      %v537 = vld [vmem:[%s2 + $0x8] sm:$0xff]
      %v538 = vld [vmem:[%s2 + $0x10] sm:$0xff]
      %v539 = vld [vmem:[%s2 + $0x18] sm:$0xff]
      %v540 = vld [vmem:[%s2 + $0x20] sm:$0xff]
      %v541 = vld [vmem:[%s2 + $0x28] sm:$0xff]
      %v542 = vld [vmem:[%s2 + $0x30] sm:$0xff]
      %v543 = vld [vmem:[%s2 + $0x38] sm:$0xff]
      %v544 = vld [vmem:[%s2 + $0x40] sm:$0xff]
      %v545 = vld [vmem:[%s2 + $0x48] sm:$0xff]
      %v546 = vld [vmem:[%s2 + $0x50] sm:$0xff]
      %v547 = vld [vmem:[%s2 + $0x58] sm:$0xff]
      %v548 = vld [vmem:[%s2 + $0x60] sm:$0xff]
      %v549 = vld [vmem:[%s2 + $0x68] sm:$0xff]
      %v550 = vld [vmem:[%s2 + $0x70] sm:$0xff]
      %v551 = vld [vmem:[%s2 + $0x78] sm:$0xff]
      %v552 = vld [vmem:[%s2 + $0x80] sm:$0xff]
      %v553 = vld [vmem:[%s2 + $0x88] sm:$0xff]
      %v554 = vld [vmem:[%s2 + $0x90] sm:$0xff]
      %v555 = vld [vmem:[%s2 + $0x98] sm:$0xff]
      %v556 = vld [vmem:[%s2 + $0xa0] sm:$0xff]
      %v557 = vld [vmem:[%s2 + $0xa8] sm:$0xff]
      %v558 = vld [vmem:[%s2 + $0xb0] sm:$0xff]
      %v559 = vld [vmem:[%s2 + $0xb8] sm:$0xff]
      %v560 = vld [vmem:[%s2 + $0xc0] sm:$0xff]
      %v561 = vld [vmem:[%s2 + $0xc8] sm:$0xff]
      %v562 = vld [vmem:[%s2 + $0xd0] sm:$0xff]
      %v563 = vld [vmem:[%s2 + $0xd8] sm:$0xff]
      %v564 = vld [vmem:[%s2 + $0xe0] sm:$0xff]
      %v565 = vld [vmem:[%s2 + $0xe8] sm:$0xff]
      %v566 = vld [vmem:[%s2 + $0xf0] sm:$0xff]
      %v567 = vld [vmem:[%s2 + $0xf8] sm:$0xff]
      %vm568 = vcmask 261120
      %v570 = vsel %vm568, %v534, 0
      %572 = vmatpush.msra.mxu0 0.0
      %573 = vmatpush.msra.mxu0 0.0
      %574 = vmatpush.msra.mxu0 0.0
      %575 = vmatpush.msra.mxu0 0.0
      %576 = vmatpush.msra.mxu0 0.0
      %577 = vmatpush.msra.mxu0 0.0
      %578 = vmatpush.msra.mxu0 0.0
      %579 = vmatpush.msra.mxu0 0.0
      %580 = vmatpush.msra.mxu0 0.0
      %581 = vmatpush.msra.mxu0 0.0
      %582 = vmatpush.msra.mxu0 0.0
      %583 = vmatpush.msra.mxu0 0.0
      %584 = vmatpush.msra.mxu0 %v560
      %585 = vmatpush.msra.mxu0 %v552
      %586 = vmatpush.msra.mxu0 %v544
      %587 = vmatpush.msra.mxu0 %v536
      %588 = vmatmul.f32.gmra.mxu0 %v570
      %v589 = vpop.f32.mrf.mxu0
      %v590 = vadd.f32 0.0, %v589
      %591 = vdwg.mxu0
      %592 = vmatpush.msra.mxu0 0.0
      %593 = vmatpush.msra.mxu0 0.0
      %594 = vmatpush.msra.mxu0 0.0
      %595 = vmatpush.msra.mxu0 0.0
      %596 = vmatpush.msra.mxu0 0.0
      %597 = vmatpush.msra.mxu0 0.0
      %598 = vmatpush.msra.mxu0 0.0
      %599 = vmatpush.msra.mxu0 0.0
      %600 = vmatpush.msra.mxu0 0.0
      %601 = vmatpush.msra.mxu0 0.0
      %602 = vmatpush.msra.mxu0 0.0
      %603 = vmatpush.msra.mxu0 0.0
      %604 = vmatpush.msra.mxu0 %v561
      %605 = vmatpush.msra.mxu0 %v553
      %606 = vmatpush.msra.mxu0 %v545
      %607 = vmatpush.msra.mxu0 %v537
      %608 = vmatmul.f32.gmra.mxu0 %v570
      %v609 = vpop.f32.mrf.mxu0
      %v610 = vadd.f32 0.0, %v609
      %611 = vdwg.mxu0
      %612 = vmatpush.msra.mxu0 0.0
      %613 = vmatpush.msra.mxu0 0.0
      %614 = vmatpush.msra.mxu0 0.0
      %615 = vmatpush.msra.mxu0 0.0
      %616 = vmatpush.msra.mxu0 0.0
      %617 = vmatpush.msra.mxu0 0.0
      %618 = vmatpush.msra.mxu0 0.0
      %619 = vmatpush.msra.mxu0 0.0
      %620 = vmatpush.msra.mxu0 0.0
      %621 = vmatpush.msra.mxu0 0.0
      %622 = vmatpush.msra.mxu0 0.0
      %623 = vmatpush.msra.mxu0 0.0
      %624 = vmatpush.msra.mxu0 %v562
      %625 = vmatpush.msra.mxu0 %v554
      %626 = vmatpush.msra.mxu0 %v546
      %627 = vmatpush.msra.mxu0 %v538
      %628 = vmatmul.f32.gmra.mxu0 %v570
      %v629 = vpop.f32.mrf.mxu0
      %v630 = vadd.f32 0.0, %v629
      %631 = vdwg.mxu0
      %632 = vmatpush.msra.mxu0 0.0
      %633 = vmatpush.msra.mxu0 0.0
      %634 = vmatpush.msra.mxu0 0.0
      %635 = vmatpush.msra.mxu0 0.0
      %636 = vmatpush.msra.mxu0 0.0
      %637 = vmatpush.msra.mxu0 0.0
      %638 = vmatpush.msra.mxu0 0.0
      %639 = vmatpush.msra.mxu0 0.0
      %640 = vmatpush.msra.mxu0 0.0
      %641 = vmatpush.msra.mxu0 0.0
      %642 = vmatpush.msra.mxu0 0.0
      %643 = vmatpush.msra.mxu0 0.0
      %644 = vmatpush.msra.mxu0 %v563
      %645 = vmatpush.msra.mxu0 %v555
      %646 = vmatpush.msra.mxu0 %v547
      %647 = vmatpush.msra.mxu0 %v539
      %648 = vmatmul.f32.gmra.mxu0 %v570
      %v649 = vpop.f32.mrf.mxu0
      %v650 = vadd.f32 0.0, %v649
      %651 = vdwg.mxu0
      %652 = vmatpush.msra.mxu0 0.0
      %653 = vmatpush.msra.mxu0 0.0
      %654 = vmatpush.msra.mxu0 0.0
      %655 = vmatpush.msra.mxu0 0.0
      %656 = vmatpush.msra.mxu0 0.0
      %657 = vmatpush.msra.mxu0 0.0
      %658 = vmatpush.msra.mxu0 0.0
      %659 = vmatpush.msra.mxu0 0.0
      %660 = vmatpush.msra.mxu0 0.0
      %661 = vmatpush.msra.mxu0 0.0
      %662 = vmatpush.msra.mxu0 0.0
      %663 = vmatpush.msra.mxu0 0.0
      %664 = vmatpush.msra.mxu0 %v564
      %665 = vmatpush.msra.mxu0 %v556
      %666 = vmatpush.msra.mxu0 %v548
      %667 = vmatpush.msra.mxu0 %v540
      %668 = vmatmul.f32.gmra.mxu0 %v570
      %v669 = vpop.f32.mrf.mxu0
      %v670 = vadd.f32 0.0, %v669
      %671 = vdwg.mxu0
      %672 = vmatpush.msra.mxu0 0.0
      %673 = vmatpush.msra.mxu0 0.0
      %674 = vmatpush.msra.mxu0 0.0
      %675 = vmatpush.msra.mxu0 0.0
      %676 = vmatpush.msra.mxu0 0.0
      %677 = vmatpush.msra.mxu0 0.0
      %678 = vmatpush.msra.mxu0 0.0
      %679 = vmatpush.msra.mxu0 0.0
      %680 = vmatpush.msra.mxu0 0.0
      %681 = vmatpush.msra.mxu0 0.0
      %682 = vmatpush.msra.mxu0 0.0
      %683 = vmatpush.msra.mxu0 0.0
      %684 = vmatpush.msra.mxu0 %v565
      %685 = vmatpush.msra.mxu0 %v557
      %686 = vmatpush.msra.mxu0 %v549
      %687 = vmatpush.msra.mxu0 %v541
      %688 = vmatmul.f32.gmra.mxu0 %v570
      %v689 = vpop.f32.mrf.mxu0
      %v690 = vadd.f32 0.0, %v689
      %691 = vdwg.mxu0
      %692 = vmatpush.msra.mxu0 0.0
      %693 = vmatpush.msra.mxu0 0.0
      %694 = vmatpush.msra.mxu0 0.0
      %695 = vmatpush.msra.mxu0 0.0
      %696 = vmatpush.msra.mxu0 0.0
      %697 = vmatpush.msra.mxu0 0.0
      %698 = vmatpush.msra.mxu0 0.0
      %699 = vmatpush.msra.mxu0 0.0
      %700 = vmatpush.msra.mxu0 0.0
      %701 = vmatpush.msra.mxu0 0.0
      %702 = vmatpush.msra.mxu0 0.0
      %703 = vmatpush.msra.mxu0 0.0
      %704 = vmatpush.msra.mxu0 %v566
      %705 = vmatpush.msra.mxu0 %v558
      %706 = vmatpush.msra.mxu0 %v550
      %707 = vmatpush.msra.mxu0 %v542
      %708 = vmatmul.f32.gmra.mxu0 %v570
      %v709 = vpop.f32.mrf.mxu0
      %v710 = vadd.f32 0.0, %v709
      %711 = vdwg.mxu0
      %712 = vmatpush.msra.mxu0 0.0
      %713 = vmatpush.msra.mxu0 0.0
      %714 = vmatpush.msra.mxu0 0.0
      %715 = vmatpush.msra.mxu0 0.0
      %716 = vmatpush.msra.mxu0 0.0
      %717 = vmatpush.msra.mxu0 0.0
      %718 = vmatpush.msra.mxu0 0.0
      %719 = vmatpush.msra.mxu0 0.0
      %720 = vmatpush.msra.mxu0 0.0
      %721 = vmatpush.msra.mxu0 0.0
      %722 = vmatpush.msra.mxu0 0.0
      %723 = vmatpush.msra.mxu0 0.0
      %724 = vmatpush.msra.mxu0 %v567
      %725 = vmatpush.msra.mxu0 %v559
      %726 = vmatpush.msra.mxu0 %v551
      %727 = vmatpush.msra.mxu0 %v543
      %728 = vmatmul.f32.gmra.mxu0 %v570
      %v729 = vpop.f32.mrf.mxu0
      %v730 = vadd.f32 0.0, %v729
      %731 = vdwg.mxu0
      %v732 = vld [vmem:[%s3] sm:$0xff]
      %v733 = vld [vmem:[%s3 + $0x8] sm:$0xff]
      %v734 = vld [vmem:[%s3 + $0x10] sm:$0xff]
      %v735 = vld [vmem:[%s3 + $0x18] sm:$0xff]
      %v736 = vld [vmem:[%s3 + $0x20] sm:$0xff]
      %v737 = vld [vmem:[%s3 + $0x28] sm:$0xff]
      %v738 = vld [vmem:[%s3 + $0x30] sm:$0xff]
      %v739 = vld [vmem:[%s3 + $0x38] sm:$0xff]
      %v740 = vld [vmem:[%s3 + $0x40] sm:$0xff]
      %v741 = vld [vmem:[%s3 + $0x48] sm:$0xff]
      %v742 = vld [vmem:[%s3 + $0x50] sm:$0xff]
      %v743 = vld [vmem:[%s3 + $0x58] sm:$0xff]
      %v744 = vld [vmem:[%s3 + $0x60] sm:$0xff]
      %v745 = vld [vmem:[%s3 + $0x68] sm:$0xff]
      %v746 = vld [vmem:[%s3 + $0x70] sm:$0xff]
      %v747 = vld [vmem:[%s3 + $0x78] sm:$0xff]
      %v748 = vld [vmem:[%s3 + $0x80] sm:$0xff]
      %v749 = vld [vmem:[%s3 + $0x88] sm:$0xff]
      %v750 = vld [vmem:[%s3 + $0x90] sm:$0xff]
      %v751 = vld [vmem:[%s3 + $0x98] sm:$0xff]
      %v752 = vld [vmem:[%s3 + $0xa0] sm:$0xff]
      %v753 = vld [vmem:[%s3 + $0xa8] sm:$0xff]
      %v754 = vld [vmem:[%s3 + $0xb0] sm:$0xff]
      %v755 = vld [vmem:[%s3 + $0xb8] sm:$0xff]
      %v756 = vld [vmem:[%s3 + $0xc0] sm:$0xff]
      %v757 = vld [vmem:[%s3 + $0xc8] sm:$0xff]
      %v758 = vld [vmem:[%s3 + $0xd0] sm:$0xff]
      %v759 = vld [vmem:[%s3 + $0xd8] sm:$0xff]
      %v760 = vld [vmem:[%s3 + $0xe0] sm:$0xff]
      %v761 = vld [vmem:[%s3 + $0xe8] sm:$0xff]
      %v762 = vld [vmem:[%s3 + $0xf0] sm:$0xff]
      %v763 = vld [vmem:[%s3 + $0xf8] sm:$0xff]
      %v765 = vsel %vm568, %v535, 0
      %767 = vmatpush.msra.mxu0 0.0
      %768 = vmatpush.msra.mxu0 0.0
      %769 = vmatpush.msra.mxu0 0.0
      %770 = vmatpush.msra.mxu0 0.0
      %771 = vmatpush.msra.mxu0 0.0
      %772 = vmatpush.msra.mxu0 0.0
      %773 = vmatpush.msra.mxu0 0.0
      %774 = vmatpush.msra.mxu0 0.0
      %775 = vmatpush.msra.mxu0 0.0
      %776 = vmatpush.msra.mxu0 0.0
      %777 = vmatpush.msra.mxu0 0.0
      %778 = vmatpush.msra.mxu0 0.0
      %779 = vmatpush.msra.mxu0 %v756
      %780 = vmatpush.msra.mxu0 %v748
      %781 = vmatpush.msra.mxu0 %v740
      %782 = vmatpush.msra.mxu0 %v732
      %783 = vmatmul.f32.gmra.mxu0 %v765
      %v784 = vpop.f32.mrf.mxu0
      %v785 = vadd.f32 0.0, %v784
      %786 = vdwg.mxu0
      %787 = vmatpush.msra.mxu0 0.0
      %788 = vmatpush.msra.mxu0 0.0
      %789 = vmatpush.msra.mxu0 0.0
      %790 = vmatpush.msra.mxu0 0.0
      %791 = vmatpush.msra.mxu0 0.0
      %792 = vmatpush.msra.mxu0 0.0
      %793 = vmatpush.msra.mxu0 0.0
      %794 = vmatpush.msra.mxu0 0.0
      %795 = vmatpush.msra.mxu0 0.0
      %796 = vmatpush.msra.mxu0 0.0
      %797 = vmatpush.msra.mxu0 0.0
      %798 = vmatpush.msra.mxu0 0.0
      %799 = vmatpush.msra.mxu0 %v757
      %800 = vmatpush.msra.mxu0 %v749
      %801 = vmatpush.msra.mxu0 %v741
      %802 = vmatpush.msra.mxu0 %v733
      %803 = vmatmul.f32.gmra.mxu0 %v765
      %v804 = vpop.f32.mrf.mxu0
      %v805 = vadd.f32 0.0, %v804
      %806 = vdwg.mxu0
      %807 = vmatpush.msra.mxu0 0.0
      %808 = vmatpush.msra.mxu0 0.0
      %809 = vmatpush.msra.mxu0 0.0
      %810 = vmatpush.msra.mxu0 0.0
      %811 = vmatpush.msra.mxu0 0.0
      %812 = vmatpush.msra.mxu0 0.0
      %813 = vmatpush.msra.mxu0 0.0
      %814 = vmatpush.msra.mxu0 0.0
      %815 = vmatpush.msra.mxu0 0.0
      %816 = vmatpush.msra.mxu0 0.0
      %817 = vmatpush.msra.mxu0 0.0
      %818 = vmatpush.msra.mxu0 0.0
      %819 = vmatpush.msra.mxu0 %v758
      %820 = vmatpush.msra.mxu0 %v750
      %821 = vmatpush.msra.mxu0 %v742
      %822 = vmatpush.msra.mxu0 %v734
      %823 = vmatmul.f32.gmra.mxu0 %v765
      %v824 = vpop.f32.mrf.mxu0
      %v825 = vadd.f32 0.0, %v824
      %826 = vdwg.mxu0
      %827 = vmatpush.msra.mxu0 0.0
      %828 = vmatpush.msra.mxu0 0.0
      %829 = vmatpush.msra.mxu0 0.0
      %830 = vmatpush.msra.mxu0 0.0
      %831 = vmatpush.msra.mxu0 0.0
      %832 = vmatpush.msra.mxu0 0.0
      %833 = vmatpush.msra.mxu0 0.0
      %834 = vmatpush.msra.mxu0 0.0
      %835 = vmatpush.msra.mxu0 0.0
      %836 = vmatpush.msra.mxu0 0.0
      %837 = vmatpush.msra.mxu0 0.0
      %838 = vmatpush.msra.mxu0 0.0
      %839 = vmatpush.msra.mxu0 %v759
      %840 = vmatpush.msra.mxu0 %v751
      %841 = vmatpush.msra.mxu0 %v743
      %842 = vmatpush.msra.mxu0 %v735
      %843 = vmatmul.f32.gmra.mxu0 %v765
      %v844 = vpop.f32.mrf.mxu0
      %v845 = vadd.f32 0.0, %v844
      %846 = vdwg.mxu0
      %847 = vmatpush.msra.mxu0 0.0
      %848 = vmatpush.msra.mxu0 0.0
      %849 = vmatpush.msra.mxu0 0.0
      %850 = vmatpush.msra.mxu0 0.0
      %851 = vmatpush.msra.mxu0 0.0
      %852 = vmatpush.msra.mxu0 0.0
      %853 = vmatpush.msra.mxu0 0.0
      %854 = vmatpush.msra.mxu0 0.0
      %855 = vmatpush.msra.mxu0 0.0
      %856 = vmatpush.msra.mxu0 0.0
      %857 = vmatpush.msra.mxu0 0.0
      %858 = vmatpush.msra.mxu0 0.0
      %859 = vmatpush.msra.mxu0 %v760
      %860 = vmatpush.msra.mxu0 %v752
      %861 = vmatpush.msra.mxu0 %v744
      %862 = vmatpush.msra.mxu0 %v736
      %863 = vmatmul.f32.gmra.mxu0 %v765
      %v864 = vpop.f32.mrf.mxu0
      %v865 = vadd.f32 0.0, %v864
      %866 = vdwg.mxu0
      %867 = vmatpush.msra.mxu0 0.0
      %868 = vmatpush.msra.mxu0 0.0
      %869 = vmatpush.msra.mxu0 0.0
      %870 = vmatpush.msra.mxu0 0.0
      %871 = vmatpush.msra.mxu0 0.0
      %872 = vmatpush.msra.mxu0 0.0
      %873 = vmatpush.msra.mxu0 0.0
      %874 = vmatpush.msra.mxu0 0.0
      %875 = vmatpush.msra.mxu0 0.0
      %876 = vmatpush.msra.mxu0 0.0
      %877 = vmatpush.msra.mxu0 0.0
      %878 = vmatpush.msra.mxu0 0.0
      %879 = vmatpush.msra.mxu0 %v761
      %880 = vmatpush.msra.mxu0 %v753
      %881 = vmatpush.msra.mxu0 %v745
      %882 = vmatpush.msra.mxu0 %v737
      %883 = vmatmul.f32.gmra.mxu0 %v765
      %v884 = vpop.f32.mrf.mxu0
      %v885 = vadd.f32 0.0, %v884
      %886 = vdwg.mxu0
      %887 = vmatpush.msra.mxu0 0.0
      %888 = vmatpush.msra.mxu0 0.0
      %889 = vmatpush.msra.mxu0 0.0
      %890 = vmatpush.msra.mxu0 0.0
      %891 = vmatpush.msra.mxu0 0.0
      %892 = vmatpush.msra.mxu0 0.0
      %893 = vmatpush.msra.mxu0 0.0
      %894 = vmatpush.msra.mxu0 0.0
      %895 = vmatpush.msra.mxu0 0.0
      %896 = vmatpush.msra.mxu0 0.0
      %897 = vmatpush.msra.mxu0 0.0
      %898 = vmatpush.msra.mxu0 0.0
      %899 = vmatpush.msra.mxu0 %v762
      %900 = vmatpush.msra.mxu0 %v754
      %901 = vmatpush.msra.mxu0 %v746
      %902 = vmatpush.msra.mxu0 %v738
      %903 = vmatmul.f32.gmra.mxu0 %v765
      %v904 = vpop.f32.mrf.mxu0
      %v905 = vadd.f32 0.0, %v904
      %906 = vdwg.mxu0
      %907 = vmatpush.msra.mxu0 0.0
      %908 = vmatpush.msra.mxu0 0.0
      %909 = vmatpush.msra.mxu0 0.0
      %910 = vmatpush.msra.mxu0 0.0
      %911 = vmatpush.msra.mxu0 0.0
      %912 = vmatpush.msra.mxu0 0.0
      %913 = vmatpush.msra.mxu0 0.0
      %914 = vmatpush.msra.mxu0 0.0
      %915 = vmatpush.msra.mxu0 0.0
      %916 = vmatpush.msra.mxu0 0.0
      %917 = vmatpush.msra.mxu0 0.0
      %918 = vmatpush.msra.mxu0 0.0
      %919 = vmatpush.msra.mxu0 %v763
      %920 = vmatpush.msra.mxu0 %v755
      %921 = vmatpush.msra.mxu0 %v747
      %922 = vmatpush.msra.mxu0 %v739
      %923 = vmatmul.f32.gmra.mxu0 %v765
      %v924 = vpop.f32.mrf.mxu0
      %v925 = vadd.f32 0.0, %v924
      %926 = vdwg.mxu0
      %v927 = vmul.f32 %v590, %v785
      %v928 = vmul.f32 %v610, %v805
      %v929 = vmul.f32 %v630, %v825
      %v930 = vmul.f32 %v650, %v845
      %v931 = vmul.f32 %v670, %v865
      %v932 = vmul.f32 %v690, %v885
      %v933 = vmul.f32 %v710, %v905
      %v934 = vmul.f32 %v730, %v925
      %v935 = vld [vmem:[%s4] sm:$0xff]
      %v936 = vld [vmem:[%s4 + $0x8] sm:$0xff]
      %v937 = vld [vmem:[%s4 + $0x10] sm:$0xff]
      %v938 = vld [vmem:[%s4 + $0x18] sm:$0xff]
      %v939 = vld [vmem:[%s4 + $0x20] sm:$0xff]
      %v940 = vld [vmem:[%s4 + $0x28] sm:$0xff]
      %v941 = vld [vmem:[%s4 + $0x30] sm:$0xff]
      %v942 = vld [vmem:[%s4 + $0x38] sm:$0xff]
      %v943 = vld [vmem:[%s4 + $0x40] sm:$0xff]
      %v944 = vld [vmem:[%s4 + $0x48] sm:$0xff]
      %v945 = vld [vmem:[%s4 + $0x50] sm:$0xff]
      %v946 = vld [vmem:[%s4 + $0x58] sm:$0xff]
      %v947 = vld [vmem:[%s4 + $0x60] sm:$0xff]
      %v948 = vld [vmem:[%s4 + $0x68] sm:$0xff]
      %v949 = vld [vmem:[%s4 + $0x70] sm:$0xff]
      %v950 = vld [vmem:[%s4 + $0x78] sm:$0xff]
      %v951 = vld [vmem:[%s4 + $0x80] sm:$0xff]
      %v952 = vld [vmem:[%s4 + $0x88] sm:$0xff]
      %v953 = vld [vmem:[%s4 + $0x90] sm:$0xff]
      %v954 = vld [vmem:[%s4 + $0x98] sm:$0xff]
      %v955 = vld [vmem:[%s4 + $0xa0] sm:$0xff]
      %v956 = vld [vmem:[%s4 + $0xa8] sm:$0xff]
      %v957 = vld [vmem:[%s4 + $0xb0] sm:$0xff]
      %v958 = vld [vmem:[%s4 + $0xb8] sm:$0xff]
      %v959 = vld [vmem:[%s4 + $0xc0] sm:$0xff]
      %v960 = vld [vmem:[%s4 + $0xc8] sm:$0xff]
      %v961 = vld [vmem:[%s4 + $0xd0] sm:$0xff]
      %v962 = vld [vmem:[%s4 + $0xd8] sm:$0xff]
      %v963 = vld [vmem:[%s4 + $0xe0] sm:$0xff]
      %v964 = vld [vmem:[%s4 + $0xe8] sm:$0xff]
      %v965 = vld [vmem:[%s4 + $0xf0] sm:$0xff]
      %v966 = vld [vmem:[%s4 + $0xf8] sm:$0xff]
      %v967 = vld [vmem:[%s4 + $0x100] sm:$0xff]
      %v968 = vld [vmem:[%s4 + $0x108] sm:$0xff]
      %v969 = vld [vmem:[%s4 + $0x110] sm:$0xff]
      %v970 = vld [vmem:[%s4 + $0x118] sm:$0xff]
      %v971 = vld [vmem:[%s4 + $0x120] sm:$0xff]
      %v972 = vld [vmem:[%s4 + $0x128] sm:$0xff]
      %v973 = vld [vmem:[%s4 + $0x130] sm:$0xff]
      %v974 = vld [vmem:[%s4 + $0x138] sm:$0xff]
      %v975 = vld [vmem:[%s4 + $0x140] sm:$0xff]
      %v976 = vld [vmem:[%s4 + $0x148] sm:$0xff]
      %v977 = vld [vmem:[%s4 + $0x150] sm:$0xff]
      %v978 = vld [vmem:[%s4 + $0x158] sm:$0xff]
      %v979 = vld [vmem:[%s4 + $0x160] sm:$0xff]
      %v980 = vld [vmem:[%s4 + $0x168] sm:$0xff]
      %v981 = vld [vmem:[%s4 + $0x170] sm:$0xff]
      %v982 = vld [vmem:[%s4 + $0x178] sm:$0xff]
      %v983 = vld [vmem:[%s4 + $0x180] sm:$0xff]
      %v984 = vld [vmem:[%s4 + $0x188] sm:$0xff]
      %v985 = vld [vmem:[%s4 + $0x190] sm:$0xff]
      %v986 = vld [vmem:[%s4 + $0x198] sm:$0xff]
      %v987 = vld [vmem:[%s4 + $0x1a0] sm:$0xff]
      %v988 = vld [vmem:[%s4 + $0x1a8] sm:$0xff]
      %v989 = vld [vmem:[%s4 + $0x1b0] sm:$0xff]
      %v990 = vld [vmem:[%s4 + $0x1b8] sm:$0xff]
      %v991 = vld [vmem:[%s4 + $0x1c0] sm:$0xff]
      %v992 = vld [vmem:[%s4 + $0x1c8] sm:$0xff]
      %v993 = vld [vmem:[%s4 + $0x1d0] sm:$0xff]
      %v994 = vld [vmem:[%s4 + $0x1d8] sm:$0xff]
      %v995 = vld [vmem:[%s4 + $0x1e0] sm:$0xff]
      %v996 = vld [vmem:[%s4 + $0x1e8] sm:$0xff]
      %v997 = vld [vmem:[%s4 + $0x1f0] sm:$0xff]
      %v998 = vld [vmem:[%s4 + $0x1f8] sm:$0xff]
      %v999 = vld [vmem:[%s4 + $0x200] sm:$0xff]
      %v1000 = vld [vmem:[%s4 + $0x208] sm:$0xff]
      %v1001 = vld [vmem:[%s4 + $0x210] sm:$0xff]
      %v1002 = vld [vmem:[%s4 + $0x218] sm:$0xff]
      %v1003 = vld [vmem:[%s4 + $0x220] sm:$0xff]
      %v1004 = vld [vmem:[%s4 + $0x228] sm:$0xff]
      %v1005 = vld [vmem:[%s4 + $0x230] sm:$0xff]
      %v1006 = vld [vmem:[%s4 + $0x238] sm:$0xff]
      %v1007 = vld [vmem:[%s4 + $0x240] sm:$0xff]
      %v1008 = vld [vmem:[%s4 + $0x248] sm:$0xff]
      %v1009 = vld [vmem:[%s4 + $0x250] sm:$0xff]
      %v1010 = vld [vmem:[%s4 + $0x258] sm:$0xff]
      %v1011 = vld [vmem:[%s4 + $0x260] sm:$0xff]
      %v1012 = vld [vmem:[%s4 + $0x268] sm:$0xff]
      %v1013 = vld [vmem:[%s4 + $0x270] sm:$0xff]
      %v1014 = vld [vmem:[%s4 + $0x278] sm:$0xff]
      %v1015 = vld [vmem:[%s4 + $0x280] sm:$0xff]
      %v1016 = vld [vmem:[%s4 + $0x288] sm:$0xff]
      %v1017 = vld [vmem:[%s4 + $0x290] sm:$0xff]
      %v1018 = vld [vmem:[%s4 + $0x298] sm:$0xff]
      %v1019 = vld [vmem:[%s4 + $0x2a0] sm:$0xff]
      %v1020 = vld [vmem:[%s4 + $0x2a8] sm:$0xff]
      %v1021 = vld [vmem:[%s4 + $0x2b0] sm:$0xff]
      %v1022 = vld [vmem:[%s4 + $0x2b8] sm:$0xff]
      %v1023 = vld [vmem:[%s4 + $0x2c0] sm:$0xff]
      %v1024 = vld [vmem:[%s4 + $0x2c8] sm:$0xff]
      %v1025 = vld [vmem:[%s4 + $0x2d0] sm:$0xff]
      %v1026 = vld [vmem:[%s4 + $0x2d8] sm:$0xff]
      %v1027 = vld [vmem:[%s4 + $0x2e0] sm:$0xff]
      %v1028 = vld [vmem:[%s4 + $0x2e8] sm:$0xff]
      %v1029 = vld [vmem:[%s4 + $0x2f0] sm:$0xff]
      %v1030 = vld [vmem:[%s4 + $0x2f8] sm:$0xff]
      %v1031 = vld [vmem:[%s4 + $0x300] sm:$0xff]
      %v1032 = vld [vmem:[%s4 + $0x308] sm:$0xff]
      %v1033 = vld [vmem:[%s4 + $0x310] sm:$0xff]
      %v1034 = vld [vmem:[%s4 + $0x318] sm:$0xff]
      %v1035 = vld [vmem:[%s4 + $0x320] sm:$0xff]
      %v1036 = vld [vmem:[%s4 + $0x328] sm:$0xff]
      %v1037 = vld [vmem:[%s4 + $0x330] sm:$0xff]
      %v1038 = vld [vmem:[%s4 + $0x338] sm:$0xff]
      %v1039 = vld [vmem:[%s4 + $0x340] sm:$0xff]
      %v1040 = vld [vmem:[%s4 + $0x348] sm:$0xff]
      %v1041 = vld [vmem:[%s4 + $0x350] sm:$0xff]
      %v1042 = vld [vmem:[%s4 + $0x358] sm:$0xff]
      %v1043 = vld [vmem:[%s4 + $0x360] sm:$0xff]
      %v1044 = vld [vmem:[%s4 + $0x368] sm:$0xff]
      %v1045 = vld [vmem:[%s4 + $0x370] sm:$0xff]
      %v1046 = vld [vmem:[%s4 + $0x378] sm:$0xff]
      %v1047 = vld [vmem:[%s4 + $0x380] sm:$0xff]
      %v1048 = vld [vmem:[%s4 + $0x388] sm:$0xff]
      %v1049 = vld [vmem:[%s4 + $0x390] sm:$0xff]
      %v1050 = vld [vmem:[%s4 + $0x398] sm:$0xff]
      %v1051 = vld [vmem:[%s4 + $0x3a0] sm:$0xff]
      %v1052 = vld [vmem:[%s4 + $0x3a8] sm:$0xff]
      %v1053 = vld [vmem:[%s4 + $0x3b0] sm:$0xff]
      %v1054 = vld [vmem:[%s4 + $0x3b8] sm:$0xff]
      %v1055 = vld [vmem:[%s4 + $0x3c0] sm:$0xff]
      %v1056 = vld [vmem:[%s4 + $0x3c8] sm:$0xff]
      %v1057 = vld [vmem:[%s4 + $0x3d0] sm:$0xff]
      %v1058 = vld [vmem:[%s4 + $0x3d8] sm:$0xff]
      %v1059 = vld [vmem:[%s4 + $0x3e0] sm:$0xff]
      %v1060 = vld [vmem:[%s4 + $0x3e8] sm:$0xff]
      %v1061 = vld [vmem:[%s4 + $0x3f0] sm:$0xff]
      %v1062 = vld [vmem:[%s4 + $0x3f8] sm:$0xff]
      %v1063 = vld [vmem:[%s5] sm:$0xff]
      %v1064 = vld [vmem:[%s5 + $0x8] sm:$0xff]
      %v1065 = vld [vmem:[%s5 + $0x10] sm:$0xff]
      %v1066 = vld [vmem:[%s5 + $0x18] sm:$0xff]
      %1067 = vmatpush.msra.mxu0 0.0
      %1068 = vmatpush.msra.mxu0 0.0
      %1069 = vmatpush.msra.mxu0 0.0
      %1070 = vmatpush.msra.mxu0 0.0
      %1071 = vmatpush.msra.mxu0 0.0
      %1072 = vmatpush.msra.mxu0 0.0
      %1073 = vmatpush.msra.mxu0 0.0
      %1074 = vmatpush.msra.mxu0 0.0
      %1075 = vmatpush.msra.mxu0 0.0
      %1076 = vmatpush.msra.mxu0 0.0
      %1077 = vmatpush.msra.mxu0 0.0
      %1078 = vmatpush.msra.mxu0 0.0
      %1079 = vmatpush.msra.mxu0 %v1066
      %1080 = vmatpush.msra.mxu0 %v1065
      %1081 = vmatpush.msra.mxu0 %v1064
      %1082 = vmatpush.msra.mxu0 %v1063
      %1083 = vmatmul.f32.gmra.mxu0 %v570
      %v1084 = vpop.f32.mrf.mxu0
      %v1085 = vadd.f32 0.0, %v1084
      %1086 = vdwg.mxu0
      %1087 = vmatpush.msra.mxu0 %v950
      %1088 = vmatpush.msra.mxu0 %v949
      %1089 = vmatpush.msra.mxu0 %v948
      %1090 = vmatpush.msra.mxu0 %v947
      %1091 = vmatpush.msra.mxu0 %v946
      %1092 = vmatpush.msra.mxu0 %v945
      %1093 = vmatpush.msra.mxu0 %v944
      %1094 = vmatpush.msra.mxu0 %v943
      %1095 = vmatpush.msra.mxu0 %v942
      %1096 = vmatpush.msra.mxu0 %v941
      %1097 = vmatpush.msra.mxu0 %v940
      %1098 = vmatpush.msra.mxu0 %v939
      %1099 = vmatpush.msra.mxu0 %v938
      %1100 = vmatpush.msra.mxu0 %v937
      %1101 = vmatpush.msra.mxu0 %v936
      %1102 = vmatpush.msra.mxu0 %v935
      %1103 = vmatmul.f32.gmra.mxu0 %v927
      %v1104 = vpop.f32.mrf.mxu0
      %v1105 = vadd.f32 %v1085, %v1104
      %1106 = vdwg.mxu0
      %1107 = vmatpush.msra.mxu0 %v966
      %1108 = vmatpush.msra.mxu0 %v965
      %1109 = vmatpush.msra.mxu0 %v964
      %1110 = vmatpush.msra.mxu0 %v963
      %1111 = vmatpush.msra.mxu0 %v962
      %1112 = vmatpush.msra.mxu0 %v961
      %1113 = vmatpush.msra.mxu0 %v960
      %1114 = vmatpush.msra.mxu0 %v959
      %1115 = vmatpush.msra.mxu0 %v958
      %1116 = vmatpush.msra.mxu0 %v957
      %1117 = vmatpush.msra.mxu0 %v956
      %1118 = vmatpush.msra.mxu0 %v955
      %1119 = vmatpush.msra.mxu0 %v954
      %1120 = vmatpush.msra.mxu0 %v953
      %1121 = vmatpush.msra.mxu0 %v952
      %1122 = vmatpush.msra.mxu0 %v951
      %1123 = vmatmul.f32.gmra.mxu0 %v928
      %v1124 = vpop.f32.mrf.mxu0
      %v1125 = vadd.f32 %v1105, %v1124
      %1126 = vdwg.mxu0
      %1127 = vmatpush.msra.mxu0 %v982
      %1128 = vmatpush.msra.mxu0 %v981
      %1129 = vmatpush.msra.mxu0 %v980
      %1130 = vmatpush.msra.mxu0 %v979
      %1131 = vmatpush.msra.mxu0 %v978
      %1132 = vmatpush.msra.mxu0 %v977
      %1133 = vmatpush.msra.mxu0 %v976
      %1134 = vmatpush.msra.mxu0 %v975
      %1135 = vmatpush.msra.mxu0 %v974
      %1136 = vmatpush.msra.mxu0 %v973
      %1137 = vmatpush.msra.mxu0 %v972
      %1138 = vmatpush.msra.mxu0 %v971
      %1139 = vmatpush.msra.mxu0 %v970
      %1140 = vmatpush.msra.mxu0 %v969
      %1141 = vmatpush.msra.mxu0 %v968
      %1142 = vmatpush.msra.mxu0 %v967
      %1143 = vmatmul.f32.gmra.mxu0 %v929
      %v1144 = vpop.f32.mrf.mxu0
      %v1145 = vadd.f32 %v1125, %v1144
      %1146 = vdwg.mxu0
      %1147 = vmatpush.msra.mxu0 %v998
      %1148 = vmatpush.msra.mxu0 %v997
      %1149 = vmatpush.msra.mxu0 %v996
      %1150 = vmatpush.msra.mxu0 %v995
      %1151 = vmatpush.msra.mxu0 %v994
      %1152 = vmatpush.msra.mxu0 %v993
      %1153 = vmatpush.msra.mxu0 %v992
      %1154 = vmatpush.msra.mxu0 %v991
      %1155 = vmatpush.msra.mxu0 %v990
      %1156 = vmatpush.msra.mxu0 %v989
      %1157 = vmatpush.msra.mxu0 %v988
      %1158 = vmatpush.msra.mxu0 %v987
      %1159 = vmatpush.msra.mxu0 %v986
      %1160 = vmatpush.msra.mxu0 %v985
      %1161 = vmatpush.msra.mxu0 %v984
      %1162 = vmatpush.msra.mxu0 %v983
      %1163 = vmatmul.f32.gmra.mxu0 %v930
      %v1164 = vpop.f32.mrf.mxu0
      %v1165 = vadd.f32 %v1145, %v1164
      %1166 = vdwg.mxu0
      %1167 = vmatpush.msra.mxu0 %v1014
      %1168 = vmatpush.msra.mxu0 %v1013
      %1169 = vmatpush.msra.mxu0 %v1012
      %1170 = vmatpush.msra.mxu0 %v1011
      %1171 = vmatpush.msra.mxu0 %v1010
      %1172 = vmatpush.msra.mxu0 %v1009
      %1173 = vmatpush.msra.mxu0 %v1008
      %1174 = vmatpush.msra.mxu0 %v1007
      %1175 = vmatpush.msra.mxu0 %v1006
      %1176 = vmatpush.msra.mxu0 %v1005
      %1177 = vmatpush.msra.mxu0 %v1004
      %1178 = vmatpush.msra.mxu0 %v1003
      %1179 = vmatpush.msra.mxu0 %v1002
      %1180 = vmatpush.msra.mxu0 %v1001
      %1181 = vmatpush.msra.mxu0 %v1000
      %1182 = vmatpush.msra.mxu0 %v999
      %1183 = vmatmul.f32.gmra.mxu0 %v931
      %v1184 = vpop.f32.mrf.mxu0
      %v1185 = vadd.f32 %v1165, %v1184
      %1186 = vdwg.mxu0
      %1187 = vmatpush.msra.mxu0 %v1030
      %1188 = vmatpush.msra.mxu0 %v1029
      %1189 = vmatpush.msra.mxu0 %v1028
      %1190 = vmatpush.msra.mxu0 %v1027
      %1191 = vmatpush.msra.mxu0 %v1026
      %1192 = vmatpush.msra.mxu0 %v1025
      %1193 = vmatpush.msra.mxu0 %v1024
      %1194 = vmatpush.msra.mxu0 %v1023
      %1195 = vmatpush.msra.mxu0 %v1022
      %1196 = vmatpush.msra.mxu0 %v1021
      %1197 = vmatpush.msra.mxu0 %v1020
      %1198 = vmatpush.msra.mxu0 %v1019
      %1199 = vmatpush.msra.mxu0 %v1018
      %1200 = vmatpush.msra.mxu0 %v1017
      %1201 = vmatpush.msra.mxu0 %v1016
      %1202 = vmatpush.msra.mxu0 %v1015
      %1203 = vmatmul.f32.gmra.mxu0 %v932
      %v1204 = vpop.f32.mrf.mxu0
      %v1205 = vadd.f32 %v1185, %v1204
      %1206 = vdwg.mxu0
      %1207 = vmatpush.msra.mxu0 %v1046
      %1208 = vmatpush.msra.mxu0 %v1045
      %1209 = vmatpush.msra.mxu0 %v1044
      %1210 = vmatpush.msra.mxu0 %v1043
      %1211 = vmatpush.msra.mxu0 %v1042
      %1212 = vmatpush.msra.mxu0 %v1041
      %1213 = vmatpush.msra.mxu0 %v1040
      %1214 = vmatpush.msra.mxu0 %v1039
      %1215 = vmatpush.msra.mxu0 %v1038
      %1216 = vmatpush.msra.mxu0 %v1037
      %1217 = vmatpush.msra.mxu0 %v1036
      %1218 = vmatpush.msra.mxu0 %v1035
      %1219 = vmatpush.msra.mxu0 %v1034
      %1220 = vmatpush.msra.mxu0 %v1033
      %1221 = vmatpush.msra.mxu0 %v1032
      %1222 = vmatpush.msra.mxu0 %v1031
      %1223 = vmatmul.f32.gmra.mxu0 %v933
      %v1224 = vpop.f32.mrf.mxu0
      %v1225 = vadd.f32 %v1205, %v1224
      %1226 = vdwg.mxu0
      %1227 = vmatpush.msra.mxu0 %v1062
      %1228 = vmatpush.msra.mxu0 %v1061
      %1229 = vmatpush.msra.mxu0 %v1060
      %1230 = vmatpush.msra.mxu0 %v1059
      %1231 = vmatpush.msra.mxu0 %v1058
      %1232 = vmatpush.msra.mxu0 %v1057
      %1233 = vmatpush.msra.mxu0 %v1056
      %1234 = vmatpush.msra.mxu0 %v1055
      %1235 = vmatpush.msra.mxu0 %v1054
      %1236 = vmatpush.msra.mxu0 %v1053
      %1237 = vmatpush.msra.mxu0 %v1052
      %1238 = vmatpush.msra.mxu0 %v1051
      %1239 = vmatpush.msra.mxu0 %v1050
      %1240 = vmatpush.msra.mxu0 %v1049
      %1241 = vmatpush.msra.mxu0 %v1048
      %1242 = vmatpush.msra.mxu0 %v1047
      %1243 = vmatmul.f32.gmra.mxu0 %v934
      %v1244 = vpop.f32.mrf.mxu0
      %v1245 = vadd.f32 %v1225, %v1244
      %1246 = vdwg.mxu0
      %v1247 = vld [vmem:[%s6] sm:$0xff]
      %v1248 = vld [vmem:[%s6 + $0x8] sm:$0xff]
      %v1249 = vld [vmem:[%s6 + $0x10] sm:$0xff]
      %v1250 = vld [vmem:[%s6 + $0x18] sm:$0xff]
      %1251 = vmatpush.msra.mxu0 0.0
      %1252 = vmatpush.msra.mxu0 0.0
      %1253 = vmatpush.msra.mxu0 0.0
      %1254 = vmatpush.msra.mxu0 0.0
      %1255 = vmatpush.msra.mxu0 0.0
      %1256 = vmatpush.msra.mxu0 0.0
      %1257 = vmatpush.msra.mxu0 0.0
      %1258 = vmatpush.msra.mxu0 0.0
      %1259 = vmatpush.msra.mxu0 0.0
      %1260 = vmatpush.msra.mxu0 0.0
      %1261 = vmatpush.msra.mxu0 0.0
      %1262 = vmatpush.msra.mxu0 0.0
      %1263 = vmatpush.msra.mxu0 %v1250
      %1264 = vmatpush.msra.mxu0 %v1249
      %1265 = vmatpush.msra.mxu0 %v1248
      %1266 = vmatpush.msra.mxu0 %v1247
      %1267 = vmatmul.f32.gmra.mxu0 %v765
      %v1268 = vpop.f32.mrf.mxu0
      %v1269 = vadd.f32 0.0, %v1268
      %1270 = vdwg.mxu0
      %v1271 = vadd.f32 %v1245, %v1269
      %v1272 = vld [vmem:[%s7] sm:$0x1]
      %v1274 = vperm.slane %v1272, 0
      %v1276 = vadd.f32 %v1271, %v1274
      %v1277 = vld [vmem:[%s8] sm:$0xff]
      %v1278 = vld [vmem:[%s8 + $0x8] sm:$0xff]
      %v1279 = vld [vmem:[%s8 + $0x10] sm:$0xff]
      %v1280 = vld [vmem:[%s8 + $0x18] sm:$0xff]
      %v1281 = vld [vmem:[%s9] sm:$0xff]
      %v1282 = vld [vmem:[%s9 + $0x8] sm:$0xff]
      %v1283 = vld [vmem:[%s9 + $0x10] sm:$0xff]
      %v1284 = vld [vmem:[%s9 + $0x18] sm:$0xff]
      %1285 = vmatpush.msra.mxu0 0.0
      %1286 = vmatpush.msra.mxu0 0.0
      %1287 = vmatpush.msra.mxu0 0.0
      %1288 = vmatpush.msra.mxu0 0.0
      %1289 = vmatpush.msra.mxu0 0.0
      %1290 = vmatpush.msra.mxu0 0.0
      %1291 = vmatpush.msra.mxu0 0.0
      %1292 = vmatpush.msra.mxu0 0.0
      %1293 = vmatpush.msra.mxu0 0.0
      %1294 = vmatpush.msra.mxu0 0.0
      %1295 = vmatpush.msra.mxu0 0.0
      %1296 = vmatpush.msra.mxu0 0.0
      %1297 = vmatpush.msra.mxu0 %v1284
      %1298 = vmatpush.msra.mxu0 %v1283
      %1299 = vmatpush.msra.mxu0 %v1282
      %1300 = vmatpush.msra.mxu0 %v1281
      %1301 = vmatmul.f32.gmra.mxu0 %v570
      %v1302 = vpop.f32.mrf.mxu0
      %v1303 = vadd.f32 0.0, %v1302
      %1304 = vdwg.mxu0
      %v1306 = vsel %vm568, %v1276, 0
      %1308 = vmatpush.msra.mxu0 0.0
      %1309 = vmatpush.msra.mxu0 0.0
      %1310 = vmatpush.msra.mxu0 0.0
      %1311 = vmatpush.msra.mxu0 0.0
      %1312 = vmatpush.msra.mxu0 0.0
      %1313 = vmatpush.msra.mxu0 0.0
      %1314 = vmatpush.msra.mxu0 0.0
      %1315 = vmatpush.msra.mxu0 0.0
      %1316 = vmatpush.msra.mxu0 0.0
      %1317 = vmatpush.msra.mxu0 0.0
      %1318 = vmatpush.msra.mxu0 0.0
      %1319 = vmatpush.msra.mxu0 0.0
      %1320 = vmatpush.msra.mxu0 %v1280
      %1321 = vmatpush.msra.mxu0 %v1279
      %1322 = vmatpush.msra.mxu0 %v1278
      %1323 = vmatpush.msra.mxu0 %v1277
      %1324 = vmatmul.f32.gmra.mxu0 %v1306
      %v1325 = vpop.f32.mrf.mxu0
      %v1326 = vadd.f32 %v1303, %v1325
      %1327 = vdwg.mxu0
      %v1328 = vld [vmem:[%s10] sm:$0xff]
      %v1329 = vld [vmem:[%s10 + $0x8] sm:$0xff]
      %v1330 = vld [vmem:[%s10 + $0x10] sm:$0xff]
      %v1331 = vld [vmem:[%s10 + $0x18] sm:$0xff]
      %1332 = vmatpush.msra.mxu0 0.0
      %1333 = vmatpush.msra.mxu0 0.0
      %1334 = vmatpush.msra.mxu0 0.0
      %1335 = vmatpush.msra.mxu0 0.0
      %1336 = vmatpush.msra.mxu0 0.0
      %1337 = vmatpush.msra.mxu0 0.0
      %1338 = vmatpush.msra.mxu0 0.0
      %1339 = vmatpush.msra.mxu0 0.0
      %1340 = vmatpush.msra.mxu0 0.0
      %1341 = vmatpush.msra.mxu0 0.0
      %1342 = vmatpush.msra.mxu0 0.0
      %1343 = vmatpush.msra.mxu0 0.0
      %1344 = vmatpush.msra.mxu0 %v1331
      %1345 = vmatpush.msra.mxu0 %v1330
      %1346 = vmatpush.msra.mxu0 %v1329
      %1347 = vmatpush.msra.mxu0 %v1328
      %1348 = vmatmul.f32.gmra.mxu0 %v765
      %v1349 = vpop.f32.mrf.mxu0
      %v1350 = vadd.f32 0.0, %v1349
      %1351 = vdwg.mxu0
      %v1352 = vadd.f32 %v1326, %v1350
      %v1353 = vld [vmem:[%s11] sm:$0x1]
      %v1355 = vperm.slane %v1353, 0
      %v1357 = vadd.f32 %v1352, %v1355
      %v1358 = vmax.f32 %v1357, 0.0
      %v1359 = vld [vmem:[%s12] sm:$0xff]
      %v1360 = vld [vmem:[%s12 + $0x8] sm:$0xff]
      %v1361 = vld [vmem:[%s12 + $0x10] sm:$0xff]
      %v1362 = vld [vmem:[%s12 + $0x18] sm:$0xff]
      %v1363 = vld [vmem:[%s12 + $0x20] sm:$0xff]
      %v1364 = vld [vmem:[%s12 + $0x28] sm:$0xff]
      %v1365 = vld [vmem:[%s12 + $0x30] sm:$0xff]
      %v1366 = vld [vmem:[%s12 + $0x38] sm:$0xff]
      %v1367 = vld [vmem:[%s13] sm:$0x1]
      %v1369 = vperm.slane %v1367, 0
      %vm1371 = vcmask 523264
      %v1373 = vsel %vm1371, %v1358, 0
      %1375 = vmatpush.msra.mxu0 0.0
      %1376 = vmatpush.msra.mxu0 0.0
      %1377 = vmatpush.msra.mxu0 0.0
      %1378 = vmatpush.msra.mxu0 0.0
      %1379 = vmatpush.msra.mxu0 0.0
      %1380 = vmatpush.msra.mxu0 0.0
      %1381 = vmatpush.msra.mxu0 0.0
      %1382 = vmatpush.msra.mxu0 0.0
      %1383 = vmatpush.msra.mxu0 %v1366
      %1384 = vmatpush.msra.mxu0 %v1365
      %1385 = vmatpush.msra.mxu0 %v1364
      %1386 = vmatpush.msra.mxu0 %v1363
      %1387 = vmatpush.msra.mxu0 %v1362
      %1388 = vmatpush.msra.mxu0 %v1361
      %1389 = vmatpush.msra.mxu0 %v1360
      %1390 = vmatpush.msra.mxu0 %v1359
      %1391 = vmatmul.f32.gmra.mxu0 %v1373
      %v1392 = vpop.f32.mrf.mxu0
      %v1393 = vadd.f32 %v1369, %v1392
      %1394 = vdwg.mxu0
      %v1395 = vmax.f32 %v1393, 0.0
      %v1396 = vld [vmem:[%s14] sm:$0xff]
      %v1397 = vld [vmem:[%s14 + $0x8] sm:$0xff]
      %v1398 = vld [vmem:[%s14 + $0x10] sm:$0xff]
      %v1399 = vld [vmem:[%s14 + $0x18] sm:$0xff]
      %v1400 = vld [vmem:[%s14 + $0x20] sm:$0xff]
      %v1401 = vld [vmem:[%s14 + $0x28] sm:$0xff]
      %v1402 = vld [vmem:[%s14 + $0x30] sm:$0xff]
      %v1403 = vld [vmem:[%s14 + $0x38] sm:$0xff]
      %v1404 = vld [vmem:[%s15] sm:$0x1]
      %v1406 = vperm.slane %v1404, 0
      %v1409 = vsel %vm1371, %v1395, 0
      %1411 = vmatpush.msra.mxu0 0.0
      %1412 = vmatpush.msra.mxu0 0.0
      %1413 = vmatpush.msra.mxu0 0.0
      %1414 = vmatpush.msra.mxu0 0.0
      %1415 = vmatpush.msra.mxu0 0.0
      %1416 = vmatpush.msra.mxu0 0.0
      %1417 = vmatpush.msra.mxu0 0.0
      %1418 = vmatpush.msra.mxu0 0.0
      %1419 = vmatpush.msra.mxu0 %v1403
      %1420 = vmatpush.msra.mxu0 %v1402
      %1421 = vmatpush.msra.mxu0 %v1401
      %1422 = vmatpush.msra.mxu0 %v1400
      %1423 = vmatpush.msra.mxu0 %v1399
      %1424 = vmatpush.msra.mxu0 %v1398
      %1425 = vmatpush.msra.mxu0 %v1397
      %1426 = vmatpush.msra.mxu0 %v1396
      %1427 = vmatmul.f32.gmra.mxu0 %v1409
      %v1428 = vpop.f32.mrf.mxu0
      %v1429 = vadd.f32 %v1406, %v1428
      %1430 = vdwg.mxu0
      %1431 = vst.msk [vmem:[%s533] sm:$0xff] %vm568, %v1429
      %p1432 = scmp.lt.s32.totalorder %s27, 1
      %s1433 = scalar_select %p1432, %s27, 1
      %s1434 = smul.addr %s1433, 8
      %s1435 = scalar_lea.vmem %s16, %s1434
      // Predicated region
      $region85: #{edge_attribute_decoder.1} parent=83 // pred_check
        %p1436 = pneg %p391
      $region86: #{edge_attribute_decoder.1} parent=83 // pred_check_branch
        %1438 = sbr.rel (%p1436) target = $region88
      $region87: #{edge_attribute_decoder.1} parent=83 // pred_region
        _
      $region88: #{edge_attribute_decoder.1} parent=83 // pred_fallthru
        _
    $region84: #{edge_attribute_decoder.1} parent=5 // pred_fallthru
      _
    %p1439 = scmp.le.s32.totalorder 2, %s22
    // Predicated region
    $region89: #{edge_attribute_decoder.1} parent=5 // pred_check
      %p1440 = pneg %p1439
    $region90: #{edge_attribute_decoder.1} parent=5 // pred_check_branch
      %1442 = sbr.rel (%p1440) target = $region92
    $region91: #{edge_attribute_decoder.1} parent=5 // pred_region
      %s1443 = ssub.s32 %s22, 2
      // Predicated region
      $region93: #{edge_attribute_decoder.1} parent=91 // pred_check
        %p1444 = pneg %p397
      $region94: #{edge_attribute_decoder.1} parent=91 // pred_check_branch
        %1446 = sbr.rel (%p1444) target = $region96
      $region95: #{edge_attribute_decoder.1} parent=91 // pred_region
        %p1447 = scmp.lt.s32.totalorder %s28, 1
        %s1448 = scalar_select %p1447, %s28, 1
        %s1449 = smul.addr %s1448, 8
        %s1450 = scalar_lea.vmem %s16, %s1449
      $region96: #{edge_attribute_decoder.1} parent=91 // pred_fallthru
        _
    $region92: #{edge_attribute_decoder.1} parent=5 // pred_fallthru
      _
  $region6: #{edge_attribute_decoder.1} parent=0 // loop_footer
    %s26 = sadd.s32 1, %s22
  $region7: #{edge_attribute_decoder.1} parent=0 // loop_footer_branch
    %21 = sbr.rel target = $region3
  $region8: #{edge_attribute_decoder.1} parent=0 // loop_exit
    _

</llo_original>
